<compile_context>
chip_gen: v7x
topology: tpu7x:2x2x1
jax: 0.10.0
libtpu: 0.0.40
codegen_flags: <defaults>
</compile_context>

<pallas_src>
import functools
import math

import jax
import jax.numpy as jnp
from jax.experimental import pallas as pl
from jax.experimental.pallas import tpu as pltpu


def cross_attention_kernel(x_ref, y_ref,
                           wq_ref, bq_ref,
                           wk_ref, bk_ref,
                           wv_ref, bv_ref,
                           o_ref, *, lane_dense_out: bool):
    # x_ref: (Bt, Sq, D)   y_ref: (Bt, Sk, D)
    # w*_ref: (D, D) in (in, out) layout (pre-transposed; 1/sqrt(D) folded into wq/bq)
    # b*_ref: (1, D)
    Bt, Sq, D = x_ref.shape
    _, Sk, _ = y_ref.shape

    # Flatten batch+seq so each projection is one well-filled MXU matmul.
    x2 = x_ref[...].reshape(Bt * Sq, D)          # (Bt*Sq, D)
    y2 = y_ref[...].reshape(Bt * Sk, D)          # (Bt*Sk, D)

    # Q projection: 1/sqrt(D) already folded into wq/bq in the wrapper.
    q = jnp.dot(x2, wq_ref[...], preferred_element_type=jnp.float32) + bq_ref[...]

    # Separate K / V matmuls: avoids an intra-tile lane slice (kv[:, :D]) that
    # would force an XLU relayout of the fused tile whenever D % 128 != 0.
    # TODO(synk): fuse K/V into one (D, 2D) matmul when D % 128 == 0 (tile-aligned split).
    k = jnp.dot(y2, wk_ref[...], preferred_element_type=jnp.float32) + bk_ref[...]
    v = jnp.dot(y2, wv_ref[...], preferred_element_type=jnp.float32) + bv_ref[...]

    q = q.reshape(Bt, Sq, D)
    k = k.reshape(Bt, Sk, D)
    v = v.reshape(Bt, Sk, D)

    # Batched attention matmuls (dot_general consumes the RHS contraction natively).
    scores = jnp.einsum('bqd,bkd->bqk', q, k,
                        preferred_element_type=jnp.float32)   # (Bt, Sq, Sk)

    # Numerically-stable softmax along the key axis.
    m = jnp.max(scores, axis=-1, keepdims=True)
    e = jnp.exp(scores - m)
    s = jnp.sum(e, axis=-1, keepdims=True)
    # EUP reciprocal (free bundle slot) + 2 Newton-Raphson steps -> full f32 accuracy.
    r = pl.reciprocal(s, approx=True)
    r = r * (2.0 - s * r)
    r = r * (2.0 - s * r)
    attn = e * r

    out = jnp.einsum('bqk,bkd->bqd', attn, v,
                     preferred_element_type=jnp.float32)       # (Bt, Sq, D)

    # TODO(synk): for production Sq/Sk add an Sk-tiled online-softmax grid axis
    # ("arbitrary", m/l/acc VMEM scratch) instead of the dense (Sq, Sk) scores tile,
    # sized per chip (v7x has 64 MiB VMEM/TC vs 128 MiB on v5e/v6e).

    if lane_dense_out:
        # Lane-dense store: (Bt, Sq*D) last dim is a multiple of 128 -> unmasked vst.
        o_ref[...] = out.reshape(Bt, Sq * D).astype(o_ref.dtype)
    else:
        o_ref[...] = out.astype(o_ref.dtype)


def _chip_info():
    """Return (tensorcores_per_chip, vmem_bytes). Conservative fallbacks."""
    vmem_bytes = 64 * 1024 * 1024           # safe lower bound (v7x per-TC VMEM)
    try:
        vmem_bytes = int(pltpu.get_tpu_info().vmem_capacity_bytes)
    except Exception:
        pass
    num_cores = 1                           # v5e / v6e: single TensorCore
    try:
        kind = jax.devices()[0].device_kind.lower()
        if "v7" in kind or "7x" in kind:
            num_cores = 2                   # v7x: two TensorCores per chip
    except Exception:
        pass
    return num_cores, vmem_bytes


def _per_step_vmem_bytes(block_b, Sq, Sk, D):
    """Rough per-grid-step VMEM footprint estimate (f32)."""
    f32 = 4
    io = 2 * block_b * (Sq * D + Sk * D + Sq * D) * f32        # x, y, out (double-buffered)
    weights = (3 * D * D + 3 * D) * f32                        # single-buffered weights/biases
    interm = block_b * (4 * Sq * D + 2 * Sk * D + 3 * Sq * Sk) * f32  # q/k/v/scores/exp/out
    return io + weights + interm


def _pick_block_b(B, Sq, Sk, D, num_cores, vmem_budget):
    """Largest batch tile (divisor of B) that fits the VMEM budget.
    On 1-TC chips (v5e/v6e) take the whole batch (grid=(1,), no per-step
    overhead); on v7x keep grid length >= 2 so both TensorCores get work."""
    divisors = [d for d in range(1, B + 1) if B % d == 0]
    fits = [d for d in divisors if _per_step_vmem_bytes(d, Sq, Sk, D) <= vmem_budget]
    if not fits:
        return 1
    if num_cores >= 2 and B >= num_cores:
        multi = [d for d in fits if B // d >= num_cores]
        if multi:
            return max(multi)
    return max(fits)


def cross_attention(x, y, wq, bq, wk, bk, wv, bv):
    B, Sq, D = x.shape
    _, Sk, _ = y.shape
    f32 = 4

    # nn.Linear convention: W is (out, in), y = x @ W.T + b.
    # Pre-transpose once in the wrapper; fold the 1/sqrt(D) attention scale into
    # the query projection (scaling both W and b is algebraically exact).
    scale = 1.0 / math.sqrt(float(D))
    wq_t = jnp.asarray(wq).T * scale                     # (D, D)  in->out
    bq2 = (jnp.asarray(bq) * scale).reshape(1, D)
    wk_t = jnp.asarray(wk).T
    bk2 = jnp.asarray(bk).reshape(1, D)
    wv_t = jnp.asarray(wv).T
    bv2 = jnp.asarray(bv).reshape(1, D)

    num_cores, vmem_bytes = _chip_info()
    block_b = _pick_block_b(B, Sq, Sk, D, num_cores, vmem_bytes // 2)
    grid = (B // block_b,)

    needed = _per_step_vmem_bytes(block_b, Sq, Sk, D) + (4 << 20)
    vmem_limit = int(min(max(needed, 32 << 20), vmem_bytes * 3 // 4))

    cost = pl.CostEstimate(
        flops=2 * B * (Sq * D * D + 2 * Sk * D * D + 2 * Sq * Sk * D),
        transcendentals=B * Sq * Sk,
        bytes_accessed=f32 * (2 * B * Sq * D + B * Sk * D + 3 * D * D + 3 * D),
    )

    def build(lane_dense_out, single_buffer_weights):
        if single_buffer_weights:
            # Grid-invariant operands: one VMEM buffer is enough (never re-fetched).
            def const_spec(shape):
                return pl.BlockSpec(shape, lambda b: (0, 0),
                                    pipeline_mode=pl.Buffered(1))
        else:
            def const_spec(shape):
                return pl.BlockSpec(shape, lambda b: (0, 0))

        x_spec = pl.BlockSpec((block_b, Sq, D), lambda b: (b, 0, 0))
        y_spec = pl.BlockSpec((block_b, Sk, D), lambda b: (b, 0, 0))
        in_specs = [x_spec, y_spec,
                    const_spec((D, D)), const_spec((1, D)),
                    const_spec((D, D)), const_spec((1, D)),
                    const_spec((D, D)), const_spec((1, D))]

        if lane_dense_out:
            out_shape = jax.ShapeDtypeStruct((B, Sq * D), x.dtype)
            out_spec = pl.BlockSpec((block_b, Sq * D), lambda b: (b, 0))
        else:
            out_shape = jax.ShapeDtypeStruct((B, Sq, D), x.dtype)
            out_spec = pl.BlockSpec((block_b, Sq, D), lambda b: (b, 0, 0))

        return pl.pallas_call(
            functools.partial(cross_attention_kernel, lane_dense_out=lane_dense_out),
            out_shape=out_shape,
            grid_spec=pltpu.PrefetchScalarGridSpec(
                num_scalar_prefetch=0,
                grid=grid,
                in_specs=in_specs,
                out_specs=out_spec,
            ),
            compiler_params=pltpu.CompilerParams(
                dimension_semantics=("parallel",),
                vmem_limit_bytes=vmem_limit,
            ),
            cost_estimate=cost,
        )

    args = (x, y, wq_t, bq2, wk_t, bk2, wv_t, bv2)

    # Lane-dense output is only worth it / legal when D is narrower than a vreg
    # but Sq*D tiles to full 128-lane rows and the out block stays (8,128)-friendly.
    lane_dense_ok = (D % 128 != 0 and (Sq * D) % 128 == 0
                     and (block_b == B or block_b % 8 == 0))

    # Graceful degradation: Buffered(1) and the (Sq, D)->(Sq*D,) minor-dim merge
    # are the only version-sensitive features; fall back toward the known-good
    # configuration (3-D output, default buffering) if lowering rejects them.
    attempts = []
    if lane_dense_ok:
        attempts.append((True, True))
        attempts.append((True, False))
    attempts.append((False, True))
    attempts.append((False, False))

    for lane_dense_out, single_buf in attempts[:-1]:
        try:
            out = build(lane_dense_out, single_buf)(*args)
            out = jax.block_until_ready(out)
            return out.reshape(B, Sq, D)
        except Exception:
            continue
    lane_dense_out, single_buf = attempts[-1]
    out = build(lane_dense_out, single_buf)(*args)
    return out.reshape(B, Sq, D)


def _reference(x, y, wq, bq, wk, bk, wv, bv):
    D = x.shape[-1]
    Q = jnp.einsum("bsd,ed->bse", x, wq) + bq
    K = jnp.einsum("bsd,ed->bse", y, wk) + bk
    V = jnp.einsum("bsd,ed->bse", y, wv) + bv
    scores = jnp.einsum("bqd,bkd->bqk", Q, K) / jnp.sqrt(jnp.float32(D))
    attn = jax.nn.softmax(scores, axis=-1)
    return jnp.einsum("bqk,bkd->bqd", attn, V)


if __name__ == "__main__":
    B, Sq, Sk, D = 2, 8, 8, 32   # z_dim = 32

    key = jax.random.PRNGKey(0)
    kx, ky, kq, kk, kv = jax.random.split(key, 5)

    x = jax.random.normal(kx, (B, Sq, D), dtype=jnp.float32)
    y = jax.random.normal(ky, (B, Sk, D), dtype=jnp.float32)

    # nn.Linear weights: orthogonal init (gain=1), bias = 0 (as in weight_init)
    ortho = jax.nn.initializers.orthogonal()
    wq = ortho(kq, (D, D), jnp.float32)
    wk = ortho(kk, (D, D), jnp.float32)
    wv = ortho(kv, (D, D), jnp.float32)
    bq = jnp.zeros((D,), jnp.float32)
    bk = jnp.zeros((D,), jnp.float32)
    bv = jnp.zeros((D,), jnp.float32)

    out = cross_attention(x, y, wq, bq, wk, bk, wv, bv)
    out = jax.block_until_ready(out)

    ref = _reference(x, y, wq, bq, wk, bk, wv, bv)
    assert out.shape == (B, Sq, D)
    assert jnp.allclose(out, ref, atol=1e-5, rtol=1e-5), "mismatch vs reference"

    print("KERNEL_OK")
</pallas_src>

<mosaic_0001>
module attributes {stable_mosaic.version = 11 : i64} {
  func.func @cross_attention_kernel(%arg0: i32, %arg1: memref<2x8x32xf32, #tpu.memory_space<vmem>>, %arg2: memref<2x8x32xf32, #tpu.memory_space<vmem>>, %arg3: memref<32x32xf32, #tpu.memory_space<vmem>>, %arg4: memref<1x32xf32, #tpu.memory_space<vmem>>, %arg5: memref<32x32xf32, #tpu.memory_space<vmem>>, %arg6: memref<1x32xf32, #tpu.memory_space<vmem>>, %arg7: memref<32x32xf32, #tpu.memory_space<vmem>>, %arg8: memref<1x32xf32, #tpu.memory_space<vmem>>, %arg9: memref<2x256xf32, #tpu.memory_space<vmem>>) attributes {dimension_semantics = [#tpu.dimension_semantics<parallel>], iteration_bounds = array<i64: 1>, scalar_prefetch = 0 : i64, scratch_operands = 0 : i64, tpu.core_type = #tpu.core_type<tc>, window_params = [{transform_indices = @transform_0, window_bounds = array<i64: 2, 8, 32>}, {transform_indices = @transform_1, window_bounds = array<i64: 2, 8, 32>}, {pipeline_mode = #tpu.pipeline_mode<synchronous>, transform_indices = @transform_2, window_bounds = array<i64: 32, 32>}, {pipeline_mode = #tpu.pipeline_mode<synchronous>, transform_indices = @transform_3, window_bounds = array<i64: 1, 32>}, {pipeline_mode = #tpu.pipeline_mode<synchronous>, transform_indices = @transform_4, window_bounds = array<i64: 32, 32>}, {pipeline_mode = #tpu.pipeline_mode<synchronous>, transform_indices = @transform_5, window_bounds = array<i64: 1, 32>}, {pipeline_mode = #tpu.pipeline_mode<synchronous>, transform_indices = @transform_6, window_bounds = array<i64: 32, 32>}, {pipeline_mode = #tpu.pipeline_mode<synchronous>, transform_indices = @transform_7, window_bounds = array<i64: 1, 32>}, {transform_indices = @transform_8, window_bounds = array<i64: 2, 256>}]} {
    %c0 = arith.constant 0 : index
    %c0_0 = arith.constant 0 : index
    %c0_1 = arith.constant 0 : index
    %0 = vector.load %arg1[%c0, %c0_0, %c0_1] : memref<2x8x32xf32, #tpu.memory_space<vmem>>, vector<2x8x32xf32>
    %1 = vector.shape_cast %0 : vector<2x8x32xf32> to vector<16x32xf32>
    %c0_2 = arith.constant 0 : index
    %c0_3 = arith.constant 0 : index
    %c0_4 = arith.constant 0 : index
    %2 = vector.load %arg2[%c0_2, %c0_3, %c0_4] : memref<2x8x32xf32, #tpu.memory_space<vmem>>, vector<2x8x32xf32>
    %3 = vector.shape_cast %2 : vector<2x8x32xf32> to vector<16x32xf32>
    %c0_5 = arith.constant 0 : index
    %c0_6 = arith.constant 0 : index
    %4 = vector.load %arg3[%c0_5, %c0_6] : memref<32x32xf32, #tpu.memory_space<vmem>>, vector<32x32xf32>
    %cst = arith.constant dense<0.000000e+00> : vector<16x32xf32>
    %5 = tpu.matmul %1, %4, %cst {dimension_numbers = #tpu.dot_dimension_numbers<[1], [0], [0], [1], [0, 0, 1, 1], [], []>} : vector<16x32xf32>, vector<32x32xf32>, vector<16x32xf32> -> vector<16x32xf32>
    %c0_7 = arith.constant 0 : index
    %c0_8 = arith.constant 0 : index
    %6 = vector.load %arg4[%c0_7, %c0_8] : memref<1x32xf32, #tpu.memory_space<vmem>>, vector<1x32xf32>
    %7 = vector.broadcast %6 : vector<1x32xf32> to vector<16x32xf32>
    %8 = arith.addf %5, %7 : vector<16x32xf32>
    %c0_9 = arith.constant 0 : index
    %c0_10 = arith.constant 0 : index
    %9 = vector.load %arg5[%c0_9, %c0_10] : memref<32x32xf32, #tpu.memory_space<vmem>>, vector<32x32xf32>
    %cst_11 = arith.constant dense<0.000000e+00> : vector<16x32xf32>
    %10 = tpu.matmul %3, %9, %cst_11 {dimension_numbers = #tpu.dot_dimension_numbers<[1], [0], [0], [1], [0, 0, 1, 1], [], []>} : vector<16x32xf32>, vector<32x32xf32>, vector<16x32xf32> -> vector<16x32xf32>
    %c0_12 = arith.constant 0 : index
    %c0_13 = arith.constant 0 : index
    %11 = vector.load %arg6[%c0_12, %c0_13] : memref<1x32xf32, #tpu.memory_space<vmem>>, vector<1x32xf32>
    %12 = vector.broadcast %11 : vector<1x32xf32> to vector<16x32xf32>
    %13 = arith.addf %10, %12 : vector<16x32xf32>
    %c0_14 = arith.constant 0 : index
    %c0_15 = arith.constant 0 : index
    %14 = vector.load %arg7[%c0_14, %c0_15] : memref<32x32xf32, #tpu.memory_space<vmem>>, vector<32x32xf32>
    %cst_16 = arith.constant dense<0.000000e+00> : vector<16x32xf32>
    %15 = tpu.matmul %3, %14, %cst_16 {dimension_numbers = #tpu.dot_dimension_numbers<[1], [0], [0], [1], [0, 0, 1, 1], [], []>} : vector<16x32xf32>, vector<32x32xf32>, vector<16x32xf32> -> vector<16x32xf32>
    %c0_17 = arith.constant 0 : index
    %c0_18 = arith.constant 0 : index
    %16 = vector.load %arg8[%c0_17, %c0_18] : memref<1x32xf32, #tpu.memory_space<vmem>>, vector<1x32xf32>
    %17 = vector.broadcast %16 : vector<1x32xf32> to vector<16x32xf32>
    %18 = arith.addf %15, %17 : vector<16x32xf32>
    %19 = vector.shape_cast %8 : vector<16x32xf32> to vector<2x8x32xf32>
    %20 = vector.shape_cast %13 : vector<16x32xf32> to vector<2x8x32xf32>
    %21 = vector.shape_cast %18 : vector<16x32xf32> to vector<2x8x32xf32>
    "tpu.trace_start"() <{level = 10 : i32, message = "bqd,bkd->bqk"}> : () -> ()
    %cst_19 = arith.constant dense<0.000000e+00> : vector<2x8x8xf32>
    %22 = tpu.matmul %19, %20, %cst_19 {dimension_numbers = #tpu.dot_dimension_numbers<[2], [2], [1], [1], [0, 0, 0, 1, 1, 1], [0], [0]>} : vector<2x8x32xf32>, vector<2x8x32xf32>, vector<2x8x8xf32> -> vector<2x8x8xf32>
    "tpu.trace_stop"() : () -> ()
    %cst_20 = arith.constant dense<0xFF800000> : vector<2x8xf32>
    %23 = vector.multi_reduction <maximumf>, %22, %cst_20 [2] : vector<2x8x8xf32> to vector<2x8xf32>
    %24 = vector.shape_cast %23 : vector<2x8xf32> to vector<2x8x1xf32>
    %25 = vector.broadcast %24 : vector<2x8x1xf32> to vector<2x8x8xf32>
    %26 = arith.subf %22, %25 : vector<2x8x8xf32>
    %27 = math.exp %26 : vector<2x8x8xf32>
    %cst_21 = arith.constant dense<0.000000e+00> : vector<2x8xf32>
    %28 = vector.multi_reduction <add>, %27, %cst_21 [2] : vector<2x8x8xf32> to vector<2x8xf32>
    %29 = vector.shape_cast %28 : vector<2x8xf32> to vector<2x8x1xf32>
    %30 = tpu.reciprocal %29 {approx = true} : vector<2x8x1xf32> -> vector<2x8x1xf32>
    %31 = arith.mulf %29, %30 : vector<2x8x1xf32>
    %cst_22 = arith.constant 2.000000e+00 : f32
    %32 = vector.broadcast %cst_22 : f32 to vector<2x8x1xf32>
    %33 = arith.subf %32, %31 : vector<2x8x1xf32>
    %34 = arith.mulf %30, %33 : vector<2x8x1xf32>
    %35 = arith.mulf %29, %34 : vector<2x8x1xf32>
    %cst_23 = arith.constant 2.000000e+00 : f32
    %36 = vector.broadcast %cst_23 : f32 to vector<2x8x1xf32>
    %37 = arith.subf %36, %35 : vector<2x8x1xf32>
    %38 = arith.mulf %34, %37 : vector<2x8x1xf32>
    %39 = vector.broadcast %38 : vector<2x8x1xf32> to vector<2x8x8xf32>
    %40 = arith.mulf %27, %39 : vector<2x8x8xf32>
    "tpu.trace_start"() <{level = 10 : i32, message = "bqk,bkd->bqd"}> : () -> ()
    %cst_24 = arith.constant dense<0.000000e+00> : vector<2x8x32xf32>
    %41 = tpu.matmul %40, %21, %cst_24 {dimension_numbers = #tpu.dot_dimension_numbers<[2], [1], [1], [2], [0, 0, 0, 1, 1, 2], [0], [0]>} : vector<2x8x8xf32>, vector<2x8x32xf32>, vector<2x8x32xf32> -> vector<2x8x32xf32>
    "tpu.trace_stop"() : () -> ()
    %42 = vector.shape_cast %41 : vector<2x8x32xf32> to vector<2x256xf32>
    %c0_25 = arith.constant 0 : index
    %c0_26 = arith.constant 0 : index
    %43 = vector.load %arg9[%c0_25, %c0_26] : memref<2x256xf32, #tpu.memory_space<vmem>>, vector<2x256xf32>
    tpu.vector_store %arg9[%c0_25, %c0_26], %42 {strides = array<i32>} : memref<2x256xf32, #tpu.memory_space<vmem>>, vector<2x256xf32>,
    return
  }
  func.func @transform_0(%arg0: i32) -> (i32, i32, i32) {
    %c0_i32 = arith.constant 0 : i32
    %c0_i32_0 = arith.constant 0 : i32
    %c0_i32_1 = arith.constant 0 : i32
    return %arg0, %c0_i32, %c0_i32_0 : i32, i32, i32
  }
  func.func @transform_1(%arg0: i32) -> (i32, i32, i32) {
    %c0_i32 = arith.constant 0 : i32
    %c0_i32_0 = arith.constant 0 : i32
    %c0_i32_1 = arith.constant 0 : i32
    return %arg0, %c0_i32, %c0_i32_0 : i32, i32, i32
  }
  func.func @transform_2(%arg0: i32) -> (i32, i32) {
    %c0_i32 = arith.constant 0 : i32
    %c0_i32_0 = arith.constant 0 : i32
    %c0_i32_1 = arith.constant 0 : i32
    return %c0_i32, %c0_i32_0 : i32, i32
  }
  func.func @transform_3(%arg0: i32) -> (i32, i32) {
    %c0_i32 = arith.constant 0 : i32
    %c0_i32_0 = arith.constant 0 : i32
    %c0_i32_1 = arith.constant 0 : i32
    return %c0_i32, %c0_i32_0 : i32, i32
  }
  func.func @transform_4(%arg0: i32) -> (i32, i32) {
    %c0_i32 = arith.constant 0 : i32
    %c0_i32_0 = arith.constant 0 : i32
    %c0_i32_1 = arith.constant 0 : i32
    return %c0_i32, %c0_i32_0 : i32, i32
  }
  func.func @transform_5(%arg0: i32) -> (i32, i32) {
    %c0_i32 = arith.constant 0 : i32
    %c0_i32_0 = arith.constant 0 : i32
    %c0_i32_1 = arith.constant 0 : i32
    return %c0_i32, %c0_i32_0 : i32, i32
  }
  func.func @transform_6(%arg0: i32) -> (i32, i32) {
    %c0_i32 = arith.constant 0 : i32
    %c0_i32_0 = arith.constant 0 : i32
    %c0_i32_1 = arith.constant 0 : i32
    return %c0_i32, %c0_i32_0 : i32, i32
  }
  func.func @transform_7(%arg0: i32) -> (i32, i32) {
    %c0_i32 = arith.constant 0 : i32
    %c0_i32_0 = arith.constant 0 : i32
    %c0_i32_1 = arith.constant 0 : i32
    return %c0_i32, %c0_i32_0 : i32, i32
  }
  func.func @transform_8(%arg0: i32) -> (i32, i32) {
    %c0_i32 = arith.constant 0 : i32
    %c0_i32_0 = arith.constant 0 : i32
    return %arg0, %c0_i32 : i32, i32
  }
}

module attributes {stable_mosaic.version = 11 : i64} {
  func.func @cross_attention_kernel(%arg0: i32, %arg1: memref<2x8x32xf32, #tpu.memory_space<vmem>>, %arg2: memref<2x8x32xf32, #tpu.memory_space<vmem>>, %arg3: memref<32x32xf32, #tpu.memory_space<vmem>>, %arg4: memref<1x32xf32, #tpu.memory_space<vmem>>, %arg5: memref<32x32xf32, #tpu.memory_space<vmem>>, %arg6: memref<1x32xf32, #tpu.memory_space<vmem>>, %arg7: memref<32x32xf32, #tpu.memory_space<vmem>>, %arg8: memref<1x32xf32, #tpu.memory_space<vmem>>, %arg9: memref<2x256xf32, #tpu.memory_space<vmem>>) attributes {dimension_semantics = [#tpu.dimension_semantics<parallel>], iteration_bounds = array<i64: 1>, scalar_prefetch = 0 : i64, scratch_operands = 0 : i64, tpu.core_type = #tpu.core_type<tc>, window_params = [{transform_indices = @transform_0, window_bounds = array<i64: 2, 8, 32>}, {transform_indices = @transform_1, window_bounds = array<i64: 2, 8, 32>}, {pipeline_mode = #tpu.pipeline_mode<synchronous>, transform_indices = @transform_2, window_bounds = array<i64: 32, 32>}, {pipeline_mode = #tpu.pipeline_mode<synchronous>, transform_indices = @transform_3, window_bounds = array<i64: 1, 32>}, {pipeline_mode = #tpu.pipeline_mode<synchronous>, transform_indices = @transform_4, window_bounds = array<i64: 32, 32>}, {pipeline_mode = #tpu.pipeline_mode<synchronous>, transform_indices = @transform_5, window_bounds = array<i64: 1, 32>}, {pipeline_mode = #tpu.pipeline_mode<synchronous>, transform_indices = @transform_6, window_bounds = array<i64: 32, 32>}, {pipeline_mode = #tpu.pipeline_mode<synchronous>, transform_indices = @transform_7, window_bounds = array<i64: 1, 32>}, {transform_indices = @transform_8, window_bounds = array<i64: 2, 256>}]} {
    %c0 = arith.constant 0 : index
    %c0_0 = arith.constant 0 : index
    %c0_1 = arith.constant 0 : index
    %0 = vector.load %arg1[%c0, %c0_0, %c0_1] : memref<2x8x32xf32, #tpu.memory_space<vmem>>, vector<2x8x32xf32>
    %1 = vector.shape_cast %0 : vector<2x8x32xf32> to vector<16x32xf32>
    %c0_2 = arith.constant 0 : index
    %c0_3 = arith.constant 0 : index
    %c0_4 = arith.constant 0 : index
    %2 = vector.load %arg2[%c0_2, %c0_3, %c0_4] : memref<2x8x32xf32, #tpu.memory_space<vmem>>, vector<2x8x32xf32>
    %3 = vector.shape_cast %2 : vector<2x8x32xf32> to vector<16x32xf32>
    %c0_5 = arith.constant 0 : index
    %c0_6 = arith.constant 0 : index
    %4 = vector.load %arg3[%c0_5, %c0_6] : memref<32x32xf32, #tpu.memory_space<vmem>>, vector<32x32xf32>
    %cst = arith.constant dense<0.000000e+00> : vector<16x32xf32>
    %5 = tpu.matmul %1, %4, %cst {dimension_numbers = #tpu.dot_dimension_numbers<[1], [0], [0], [1], [0, 0, 1, 1], [], []>} : vector<16x32xf32>, vector<32x32xf32>, vector<16x32xf32> -> vector<16x32xf32>
    %c0_7 = arith.constant 0 : index
    %c0_8 = arith.constant 0 : index
    %6 = vector.load %arg4[%c0_7, %c0_8] : memref<1x32xf32, #tpu.memory_space<vmem>>, vector<1x32xf32>
    %7 = vector.broadcast %6 : vector<1x32xf32> to vector<16x32xf32>
    %8 = arith.addf %5, %7 : vector<16x32xf32>
    %c0_9 = arith.constant 0 : index
    %c0_10 = arith.constant 0 : index
    %9 = vector.load %arg5[%c0_9, %c0_10] : memref<32x32xf32, #tpu.memory_space<vmem>>, vector<32x32xf32>
    %cst_11 = arith.constant dense<0.000000e+00> : vector<16x32xf32>
    %10 = tpu.matmul %3, %9, %cst_11 {dimension_numbers = #tpu.dot_dimension_numbers<[1], [0], [0], [1], [0, 0, 1, 1], [], []>} : vector<16x32xf32>, vector<32x32xf32>, vector<16x32xf32> -> vector<16x32xf32>
    %c0_12 = arith.constant 0 : index
    %c0_13 = arith.constant 0 : index
    %11 = vector.load %arg6[%c0_12, %c0_13] : memref<1x32xf32, #tpu.memory_space<vmem>>, vector<1x32xf32>
    %12 = vector.broadcast %11 : vector<1x32xf32> to vector<16x32xf32>
    %13 = arith.addf %10, %12 : vector<16x32xf32>
    %c0_14 = arith.constant 0 : index
    %c0_15 = arith.constant 0 : index
    %14 = vector.load %arg7[%c0_14, %c0_15] : memref<32x32xf32, #tpu.memory_space<vmem>>, vector<32x32xf32>
    %cst_16 = arith.constant dense<0.000000e+00> : vector<16x32xf32>
    %15 = tpu.matmul %3, %14, %cst_16 {dimension_numbers = #tpu.dot_dimension_numbers<[1], [0], [0], [1], [0, 0, 1, 1], [], []>} : vector<16x32xf32>, vector<32x32xf32>, vector<16x32xf32> -> vector<16x32xf32>
    %c0_17 = arith.constant 0 : index
    %c0_18 = arith.constant 0 : index
    %16 = vector.load %arg8[%c0_17, %c0_18] : memref<1x32xf32, #tpu.memory_space<vmem>>, vector<1x32xf32>
    %17 = vector.broadcast %16 : vector<1x32xf32> to vector<16x32xf32>
    %18 = arith.addf %15, %17 : vector<16x32xf32>
    %19 = vector.shape_cast %8 : vector<16x32xf32> to vector<2x8x32xf32>
    %20 = vector.shape_cast %13 : vector<16x32xf32> to vector<2x8x32xf32>
    %21 = vector.shape_cast %18 : vector<16x32xf32> to vector<2x8x32xf32>
    "tpu.trace_start"() <{level = 10 : i32, message = "bqd,bkd->bqk"}> : () -> ()
    %cst_19 = arith.constant dense<0.000000e+00> : vector<2x8x8xf32>
    %22 = tpu.matmul %19, %20, %cst_19 {dimension_numbers = #tpu.dot_dimension_numbers<[2], [2], [1], [1], [0, 0, 0, 1, 1, 1], [0], [0]>} : vector<2x8x32xf32>, vector<2x8x32xf32>, vector<2x8x8xf32> -> vector<2x8x8xf32>
    "tpu.trace_stop"() : () -> ()
    %cst_20 = arith.constant dense<0xFF800000> : vector<2x8xf32>
    %23 = vector.multi_reduction <maximumf>, %22, %cst_20 [2] : vector<2x8x8xf32> to vector<2x8xf32>
    %24 = vector.shape_cast %23 : vector<2x8xf32> to vector<2x8x1xf32>
    %25 = vector.broadcast %24 : vector<2x8x1xf32> to vector<2x8x8xf32>
    %26 = arith.subf %22, %25 : vector<2x8x8xf32>
    %27 = math.exp %26 : vector<2x8x8xf32>
    %cst_21 = arith.constant dense<0.000000e+00> : vector<2x8xf32>
    %28 = vector.multi_reduction <add>, %27, %cst_21 [2] : vector<2x8x8xf32> to vector<2x8xf32>
    %29 = vector.shape_cast %28 : vector<2x8xf32> to vector<2x8x1xf32>
    %30 = tpu.reciprocal %29 {approx = true} : vector<2x8x1xf32> -> vector<2x8x1xf32>
    %31 = arith.mulf %29, %30 : vector<2x8x1xf32>
    %cst_22 = arith.constant 2.000000e+00 : f32
    %32 = vector.broadcast %cst_22 : f32 to vector<2x8x1xf32>
    %33 = arith.subf %32, %31 : vector<2x8x1xf32>
    %34 = arith.mulf %30, %33 : vector<2x8x1xf32>
    %35 = arith.mulf %29, %34 : vector<2x8x1xf32>
    %cst_23 = arith.constant 2.000000e+00 : f32
    %36 = vector.broadcast %cst_23 : f32 to vector<2x8x1xf32>
    %37 = arith.subf %36, %35 : vector<2x8x1xf32>
    %38 = arith.mulf %34, %37 : vector<2x8x1xf32>
    %39 = vector.broadcast %38 : vector<2x8x1xf32> to vector<2x8x8xf32>
    %40 = arith.mulf %27, %39 : vector<2x8x8xf32>
    "tpu.trace_start"() <{level = 10 : i32, message = "bqk,bkd->bqd"}> : () -> ()
    %cst_24 = arith.constant dense<0.000000e+00> : vector<2x8x32xf32>
    %41 = tpu.matmul %40, %21, %cst_24 {dimension_numbers = #tpu.dot_dimension_numbers<[2], [1], [1], [2], [0, 0, 0, 1, 1, 2], [0], [0]>} : vector<2x8x8xf32>, vector<2x8x32xf32>, vector<2x8x32xf32> -> vector<2x8x32xf32>
    "tpu.trace_stop"() : () -> ()
    %42 = vector.shape_cast %41 : vector<2x8x32xf32> to vector<2x256xf32>
    %c0_25 = arith.constant 0 : index
    %c0_26 = arith.constant 0 : index
    %43 = vector.load %arg9[%c0_25, %c0_26] : memref<2x256xf32, #tpu.memory_space<vmem>>, vector<2x256xf32>
    tpu.vector_store %arg9[%c0_25, %c0_26], %42 {strides = array<i32>} : memref<2x256xf32, #tpu.memory_space<vmem>>, vector<2x256xf32>,
    return
  }
  func.func @transform_0(%arg0: i32) -> (i32, i32, i32) {
    %c0_i32 = arith.constant 0 : i32
    %c0_i32_0 = arith.constant 0 : i32
    %c0_i32_1 = arith.constant 0 : i32
    return %arg0, %c0_i32, %c0_i32_0 : i32, i32, i32
  }
  func.func @transform_1(%arg0: i32) -> (i32, i32, i32) {
    %c0_i32 = arith.constant 0 : i32
    %c0_i32_0 = arith.constant 0 : i32
    %c0_i32_1 = arith.constant 0 : i32
    return %arg0, %c0_i32, %c0_i32_0 : i32, i32, i32
  }
  func.func @transform_2(%arg0: i32) -> (i32, i32) {
    %c0_i32 = arith.constant 0 : i32
    %c0_i32_0 = arith.constant 0 : i32
    %c0_i32_1 = arith.constant 0 : i32
    return %c0_i32, %c0_i32_0 : i32, i32
  }
  func.func @transform_3(%arg0: i32) -> (i32, i32) {
    %c0_i32 = arith.constant 0 : i32
    %c0_i32_0 = arith.constant 0 : i32
    %c0_i32_1 = arith.constant 0 : i32
    return %c0_i32, %c0_i32_0 : i32, i32
  }
  func.func @transform_4(%arg0: i32) -> (i32, i32) {
    %c0_i32 = arith.constant 0 : i32
    %c0_i32_0 = arith.constant 0 : i32
    %c0_i32_1 = arith.constant 0 : i32
    return %c0_i32, %c0_i32_0 : i32, i32
  }
  func.func @transform_5(%arg0: i32) -> (i32, i32) {
    %c0_i32 = arith.constant 0 : i32
    %c0_i32_0 = arith.constant 0 : i32
    %c0_i32_1 = arith.constant 0 : i32
    return %c0_i32, %c0_i32_0 : i32, i32
  }
  func.func @transform_6(%arg0: i32) -> (i32, i32) {
    %c0_i32 = arith.constant 0 : i32
    %c0_i32_0 = arith.constant 0 : i32
    %c0_i32_1 = arith.constant 0 : i32
    return %c0_i32, %c0_i32_0 : i32, i32
  }
  func.func @transform_7(%arg0: i32) -> (i32, i32) {
    %c0_i32 = arith.constant 0 : i32
    %c0_i32_0 = arith.constant 0 : i32
    %c0_i32_1 = arith.constant 0 : i32
    return %c0_i32, %c0_i32_0 : i32, i32
  }
  func.func @transform_8(%arg0: i32) -> (i32, i32) {
    %c0_i32 = arith.constant 0 : i32
    %c0_i32_0 = arith.constant 0 : i32
    return %arg0, %c0_i32 : i32, i32
  }
}

module attributes {stable_mosaic.version = 11 : i64} {
  func.func @cross_attention_kernel(%arg0: i32, %arg1: memref<2x8x32xf32, #tpu.memory_space<vmem>>, %arg2: memref<2x8x32xf32, #tpu.memory_space<vmem>>, %arg3: memref<32x32xf32, #tpu.memory_space<vmem>>, %arg4: memref<1x32xf32, #tpu.memory_space<vmem>>, %arg5: memref<32x32xf32, #tpu.memory_space<vmem>>, %arg6: memref<1x32xf32, #tpu.memory_space<vmem>>, %arg7: memref<32x32xf32, #tpu.memory_space<vmem>>, %arg8: memref<1x32xf32, #tpu.memory_space<vmem>>, %arg9: memref<2x8x32xf32, #tpu.memory_space<vmem>>) attributes {dimension_semantics = [#tpu.dimension_semantics<parallel>], iteration_bounds = array<i64: 1>, scalar_prefetch = 0 : i64, scratch_operands = 0 : i64, tpu.core_type = #tpu.core_type<tc>, window_params = [{transform_indices = @transform_0, window_bounds = array<i64: 2, 8, 32>}, {transform_indices = @transform_1, window_bounds = array<i64: 2, 8, 32>}, {pipeline_mode = #tpu.pipeline_mode<synchronous>, transform_indices = @transform_2, window_bounds = array<i64: 32, 32>}, {pipeline_mode = #tpu.pipeline_mode<synchronous>, transform_indices = @transform_3, window_bounds = array<i64: 1, 32>}, {pipeline_mode = #tpu.pipeline_mode<synchronous>, transform_indices = @transform_4, window_bounds = array<i64: 32, 32>}, {pipeline_mode = #tpu.pipeline_mode<synchronous>, transform_indices = @transform_5, window_bounds = array<i64: 1, 32>}, {pipeline_mode = #tpu.pipeline_mode<synchronous>, transform_indices = @transform_6, window_bounds = array<i64: 32, 32>}, {pipeline_mode = #tpu.pipeline_mode<synchronous>, transform_indices = @transform_7, window_bounds = array<i64: 1, 32>}, {transform_indices = @transform_8, window_bounds = array<i64: 2, 8, 32>}]} {
    %c0 = arith.constant 0 : index
    %c0_0 = arith.constant 0 : index
    %c0_1 = arith.constant 0 : index
    %0 = vector.load %arg1[%c0, %c0_0, %c0_1] : memref<2x8x32xf32, #tpu.memory_space<vmem>>, vector<2x8x32xf32>
    %1 = vector.shape_cast %0 : vector<2x8x32xf32> to vector<16x32xf32>
    %c0_2 = arith.constant 0 : index
    %c0_3 = arith.constant 0 : index
    %c0_4 = arith.constant 0 : index
    %2 = vector.load %arg2[%c0_2, %c0_3, %c0_4] : memref<2x8x32xf32, #tpu.memory_space<vmem>>, vector<2x8x32xf32>
    %3 = vector.shape_cast %2 : vector<2x8x32xf32> to vector<16x32xf32>
    %c0_5 = arith.constant 0 : index
    %c0_6 = arith.constant 0 : index
    %4 = vector.load %arg3[%c0_5, %c0_6] : memref<32x32xf32, #tpu.memory_space<vmem>>, vector<32x32xf32>
    %cst = arith.constant dense<0.000000e+00> : vector<16x32xf32>
    %5 = tpu.matmul %1, %4, %cst {dimension_numbers = #tpu.dot_dimension_numbers<[1], [0], [0], [1], [0, 0, 1, 1], [], []>} : vector<16x32xf32>, vector<32x32xf32>, vector<16x32xf32> -> vector<16x32xf32>
    %c0_7 = arith.constant 0 : index
    %c0_8 = arith.constant 0 : index
    %6 = vector.load %arg4[%c0_7, %c0_8] : memref<1x32xf32, #tpu.memory_space<vmem>>, vector<1x32xf32>
    %7 = vector.broadcast %6 : vector<1x32xf32> to vector<16x32xf32>
    %8 = arith.addf %5, %7 : vector<16x32xf32>
    %c0_9 = arith.constant 0 : index
    %c0_10 = arith.constant 0 : index
    %9 = vector.load %arg5[%c0_9, %c0_10] : memref<32x32xf32, #tpu.memory_space<vmem>>, vector<32x32xf32>
    %cst_11 = arith.constant dense<0.000000e+00> : vector<16x32xf32>
    %10 = tpu.matmul %3, %9, %cst_11 {dimension_numbers = #tpu.dot_dimension_numbers<[1], [0], [0], [1], [0, 0, 1, 1], [], []>} : vector<16x32xf32>, vector<32x32xf32>, vector<16x32xf32> -> vector<16x32xf32>
    %c0_12 = arith.constant 0 : index
    %c0_13 = arith.constant 0 : index
    %11 = vector.load %arg6[%c0_12, %c0_13] : memref<1x32xf32, #tpu.memory_space<vmem>>, vector<1x32xf32>
    %12 = vector.broadcast %11 : vector<1x32xf32> to vector<16x32xf32>
    %13 = arith.addf %10, %12 : vector<16x32xf32>
    %c0_14 = arith.constant 0 : index
    %c0_15 = arith.constant 0 : index
    %14 = vector.load %arg7[%c0_14, %c0_15] : memref<32x32xf32, #tpu.memory_space<vmem>>, vector<32x32xf32>
    %cst_16 = arith.constant dense<0.000000e+00> : vector<16x32xf32>
    %15 = tpu.matmul %3, %14, %cst_16 {dimension_numbers = #tpu.dot_dimension_numbers<[1], [0], [0], [1], [0, 0, 1, 1], [], []>} : vector<16x32xf32>, vector<32x32xf32>, vector<16x32xf32> -> vector<16x32xf32>
    %c0_17 = arith.constant 0 : index
    %c0_18 = arith.constant 0 : index
    %16 = vector.load %arg8[%c0_17, %c0_18] : memref<1x32xf32, #tpu.memory_space<vmem>>, vector<1x32xf32>
    %17 = vector.broadcast %16 : vector<1x32xf32> to vector<16x32xf32>
    %18 = arith.addf %15, %17 : vector<16x32xf32>
    %19 = vector.shape_cast %8 : vector<16x32xf32> to vector<2x8x32xf32>
    %20 = vector.shape_cast %13 : vector<16x32xf32> to vector<2x8x32xf32>
    %21 = vector.shape_cast %18 : vector<16x32xf32> to vector<2x8x32xf32>
    "tpu.trace_start"() <{level = 10 : i32, message = "bqd,bkd->bqk"}> : () -> ()
    %cst_19 = arith.constant dense<0.000000e+00> : vector<2x8x8xf32>
    %22 = tpu.matmul %19, %20, %cst_19 {dimension_numbers = #tpu.dot_dimension_numbers<[2], [2], [1], [1], [0, 0, 0, 1, 1, 1], [0], [0]>} : vector<2x8x32xf32>, vector<2x8x32xf32>, vector<2x8x8xf32> -> vector<2x8x8xf32>
    "tpu.trace_stop"() : () -> ()
    %cst_20 = arith.constant dense<0xFF800000> : vector<2x8xf32>
    %23 = vector.multi_reduction <maximumf>, %22, %cst_20 [2] : vector<2x8x8xf32> to vector<2x8xf32>
    %24 = vector.shape_cast %23 : vector<2x8xf32> to vector<2x8x1xf32>
    %25 = vector.broadcast %24 : vector<2x8x1xf32> to vector<2x8x8xf32>
    %26 = arith.subf %22, %25 : vector<2x8x8xf32>
    %27 = math.exp %26 : vector<2x8x8xf32>
    %cst_21 = arith.constant dense<0.000000e+00> : vector<2x8xf32>
    %28 = vector.multi_reduction <add>, %27, %cst_21 [2] : vector<2x8x8xf32> to vector<2x8xf32>
    %29 = vector.shape_cast %28 : vector<2x8xf32> to vector<2x8x1xf32>
    %30 = tpu.reciprocal %29 {approx = true} : vector<2x8x1xf32> -> vector<2x8x1xf32>
    %31 = arith.mulf %29, %30 : vector<2x8x1xf32>
    %cst_22 = arith.constant 2.000000e+00 : f32
    %32 = vector.broadcast %cst_22 : f32 to vector<2x8x1xf32>
    %33 = arith.subf %32, %31 : vector<2x8x1xf32>
    %34 = arith.mulf %30, %33 : vector<2x8x1xf32>
    %35 = arith.mulf %29, %34 : vector<2x8x1xf32>
    %cst_23 = arith.constant 2.000000e+00 : f32
    %36 = vector.broadcast %cst_23 : f32 to vector<2x8x1xf32>
    %37 = arith.subf %36, %35 : vector<2x8x1xf32>
    %38 = arith.mulf %34, %37 : vector<2x8x1xf32>
    %39 = vector.broadcast %38 : vector<2x8x1xf32> to vector<2x8x8xf32>
    %40 = arith.mulf %27, %39 : vector<2x8x8xf32>
    "tpu.trace_start"() <{level = 10 : i32, message = "bqk,bkd->bqd"}> : () -> ()
    %cst_24 = arith.constant dense<0.000000e+00> : vector<2x8x32xf32>
    %41 = tpu.matmul %40, %21, %cst_24 {dimension_numbers = #tpu.dot_dimension_numbers<[2], [1], [1], [2], [0, 0, 0, 1, 1, 2], [0], [0]>} : vector<2x8x8xf32>, vector<2x8x32xf32>, vector<2x8x32xf32> -> vector<2x8x32xf32>
    "tpu.trace_stop"() : () -> ()
    %c0_25 = arith.constant 0 : index
    %c0_26 = arith.constant 0 : index
    %c0_27 = arith.constant 0 : index
    %42 = vector.load %arg9[%c0_25, %c0_26, %c0_27] : memref<2x8x32xf32, #tpu.memory_space<vmem>>, vector<2x8x32xf32>
    tpu.vector_store %arg9[%c0_25, %c0_26, %c0_27], %41 {strides = array<i32>} : memref<2x8x32xf32, #tpu.memory_space<vmem>>, vector<2x8x32xf32>,
    return
  }
  func.func @transform_0(%arg0: i32) -> (i32, i32, i32) {
    %c0_i32 = arith.constant 0 : i32
    %c0_i32_0 = arith.constant 0 : i32
    %c0_i32_1 = arith.constant 0 : i32
    return %arg0, %c0_i32, %c0_i32_0 : i32, i32, i32
  }
  func.func @transform_1(%arg0: i32) -> (i32, i32, i32) {
    %c0_i32 = arith.constant 0 : i32
    %c0_i32_0 = arith.constant 0 : i32
    %c0_i32_1 = arith.constant 0 : i32
    return %arg0, %c0_i32, %c0_i32_0 : i32, i32, i32
  }
  func.func @transform_2(%arg0: i32) -> (i32, i32) {
    %c0_i32 = arith.constant 0 : i32
    %c0_i32_0 = arith.constant 0 : i32
    %c0_i32_1 = arith.constant 0 : i32
    return %c0_i32, %c0_i32_0 : i32, i32
  }
  func.func @transform_3(%arg0: i32) -> (i32, i32) {
    %c0_i32 = arith.constant 0 : i32
    %c0_i32_0 = arith.constant 0 : i32
    %c0_i32_1 = arith.constant 0 : i32
    return %c0_i32, %c0_i32_0 : i32, i32
  }
  func.func @transform_4(%arg0: i32) -> (i32, i32) {
    %c0_i32 = arith.constant 0 : i32
    %c0_i32_0 = arith.constant 0 : i32
    %c0_i32_1 = arith.constant 0 : i32
    return %c0_i32, %c0_i32_0 : i32, i32
  }
  func.func @transform_5(%arg0: i32) -> (i32, i32) {
    %c0_i32 = arith.constant 0 : i32
    %c0_i32_0 = arith.constant 0 : i32
    %c0_i32_1 = arith.constant 0 : i32
    return %c0_i32, %c0_i32_0 : i32, i32
  }
  func.func @transform_6(%arg0: i32) -> (i32, i32) {
    %c0_i32 = arith.constant 0 : i32
    %c0_i32_0 = arith.constant 0 : i32
    %c0_i32_1 = arith.constant 0 : i32
    return %c0_i32, %c0_i32_0 : i32, i32
  }
  func.func @transform_7(%arg0: i32) -> (i32, i32) {
    %c0_i32 = arith.constant 0 : i32
    %c0_i32_0 = arith.constant 0 : i32
    %c0_i32_1 = arith.constant 0 : i32
    return %c0_i32, %c0_i32_0 : i32, i32
  }
  func.func @transform_8(%arg0: i32) -> (i32, i32, i32) {
    %c0_i32 = arith.constant 0 : i32
    %c0_i32_0 = arith.constant 0 : i32
    %c0_i32_1 = arith.constant 0 : i32
    return %arg0, %c0_i32, %c0_i32_0 : i32, i32, i32
  }
}

module attributes {stable_mosaic.version = 11 : i64} {
  func.func @cross_attention_kernel(%arg0: i32, %arg1: memref<2x8x32xf32, #tpu.memory_space<vmem>>, %arg2: memref<2x8x32xf32, #tpu.memory_space<vmem>>, %arg3: memref<32x32xf32, #tpu.memory_space<vmem>>, %arg4: memref<1x32xf32, #tpu.memory_space<vmem>>, %arg5: memref<32x32xf32, #tpu.memory_space<vmem>>, %arg6: memref<1x32xf32, #tpu.memory_space<vmem>>, %arg7: memref<32x32xf32, #tpu.memory_space<vmem>>, %arg8: memref<1x32xf32, #tpu.memory_space<vmem>>, %arg9: memref<2x8x32xf32, #tpu.memory_space<vmem>>) attributes {dimension_semantics = [#tpu.dimension_semantics<parallel>], iteration_bounds = array<i64: 1>, scalar_prefetch = 0 : i64, scratch_operands = 0 : i64, tpu.core_type = #tpu.core_type<tc>, window_params = [{transform_indices = @transform_0, window_bounds = array<i64: 2, 8, 32>}, {transform_indices = @transform_1, window_bounds = array<i64: 2, 8, 32>}, {pipeline_mode = #tpu.pipeline_mode<synchronous>, transform_indices = @transform_2, window_bounds = array<i64: 32, 32>}, {pipeline_mode = #tpu.pipeline_mode<synchronous>, transform_indices = @transform_3, window_bounds = array<i64: 1, 32>}, {pipeline_mode = #tpu.pipeline_mode<synchronous>, transform_indices = @transform_4, window_bounds = array<i64: 32, 32>}, {pipeline_mode = #tpu.pipeline_mode<synchronous>, transform_indices = @transform_5, window_bounds = array<i64: 1, 32>}, {pipeline_mode = #tpu.pipeline_mode<synchronous>, transform_indices = @transform_6, window_bounds = array<i64: 32, 32>}, {pipeline_mode = #tpu.pipeline_mode<synchronous>, transform_indices = @transform_7, window_bounds = array<i64: 1, 32>}, {transform_indices = @transform_8, window_bounds = array<i64: 2, 8, 32>}]} {
    %c0 = arith.constant 0 : index
    %c0_0 = arith.constant 0 : index
    %c0_1 = arith.constant 0 : index
    %0 = vector.load %arg1[%c0, %c0_0, %c0_1] : memref<2x8x32xf32, #tpu.memory_space<vmem>>, vector<2x8x32xf32>
    %1 = vector.shape_cast %0 : vector<2x8x32xf32> to vector<16x32xf32>
    %c0_2 = arith.constant 0 : index
    %c0_3 = arith.constant 0 : index
    %c0_4 = arith.constant 0 : index
    %2 = vector.load %arg2[%c0_2, %c0_3, %c0_4] : memref<2x8x32xf32, #tpu.memory_space<vmem>>, vector<2x8x32xf32>
    %3 = vector.shape_cast %2 : vector<2x8x32xf32> to vector<16x32xf32>
    %c0_5 = arith.constant 0 : index
    %c0_6 = arith.constant 0 : index
    %4 = vector.load %arg3[%c0_5, %c0_6] : memref<32x32xf32, #tpu.memory_space<vmem>>, vector<32x32xf32>
    %cst = arith.constant dense<0.000000e+00> : vector<16x32xf32>
    %5 = tpu.matmul %1, %4, %cst {dimension_numbers = #tpu.dot_dimension_numbers<[1], [0], [0], [1], [0, 0, 1, 1], [], []>} : vector<16x32xf32>, vector<32x32xf32>, vector<16x32xf32> -> vector<16x32xf32>
    %c0_7 = arith.constant 0 : index
    %c0_8 = arith.constant 0 : index
    %6 = vector.load %arg4[%c0_7, %c0_8] : memref<1x32xf32, #tpu.memory_space<vmem>>, vector<1x32xf32>
    %7 = vector.broadcast %6 : vector<1x32xf32> to vector<16x32xf32>
    %8 = arith.addf %5, %7 : vector<16x32xf32>
    %c0_9 = arith.constant 0 : index
    %c0_10 = arith.constant 0 : index
    %9 = vector.load %arg5[%c0_9, %c0_10] : memref<32x32xf32, #tpu.memory_space<vmem>>, vector<32x32xf32>
    %cst_11 = arith.constant dense<0.000000e+00> : vector<16x32xf32>
    %10 = tpu.matmul %3, %9, %cst_11 {dimension_numbers = #tpu.dot_dimension_numbers<[1], [0], [0], [1], [0, 0, 1, 1], [], []>} : vector<16x32xf32>, vector<32x32xf32>, vector<16x32xf32> -> vector<16x32xf32>
    %c0_12 = arith.constant 0 : index
    %c0_13 = arith.constant 0 : index
    %11 = vector.load %arg6[%c0_12, %c0_13] : memref<1x32xf32, #tpu.memory_space<vmem>>, vector<1x32xf32>
    %12 = vector.broadcast %11 : vector<1x32xf32> to vector<16x32xf32>
    %13 = arith.addf %10, %12 : vector<16x32xf32>
    %c0_14 = arith.constant 0 : index
    %c0_15 = arith.constant 0 : index
    %14 = vector.load %arg7[%c0_14, %c0_15] : memref<32x32xf32, #tpu.memory_space<vmem>>, vector<32x32xf32>
    %cst_16 = arith.constant dense<0.000000e+00> : vector<16x32xf32>
    %15 = tpu.matmul %3, %14, %cst_16 {dimension_numbers = #tpu.dot_dimension_numbers<[1], [0], [0], [1], [0, 0, 1, 1], [], []>} : vector<16x32xf32>, vector<32x32xf32>, vector<16x32xf32> -> vector<16x32xf32>
    %c0_17 = arith.constant 0 : index
    %c0_18 = arith.constant 0 : index
    %16 = vector.load %arg8[%c0_17, %c0_18] : memref<1x32xf32, #tpu.memory_space<vmem>>, vector<1x32xf32>
    %17 = vector.broadcast %16 : vector<1x32xf32> to vector<16x32xf32>
    %18 = arith.addf %15, %17 : vector<16x32xf32>
    %19 = vector.shape_cast %8 : vector<16x32xf32> to vector<2x8x32xf32>
    %20 = vector.shape_cast %13 : vector<16x32xf32> to vector<2x8x32xf32>
    %21 = vector.shape_cast %18 : vector<16x32xf32> to vector<2x8x32xf32>
    "tpu.trace_start"() <{level = 10 : i32, message = "bqd,bkd->bqk"}> : () -> ()
    %cst_19 = arith.constant dense<0.000000e+00> : vector<2x8x8xf32>
    %22 = tpu.matmul %19, %20, %cst_19 {dimension_numbers = #tpu.dot_dimension_numbers<[2], [2], [1], [1], [0, 0, 0, 1, 1, 1], [0], [0]>} : vector<2x8x32xf32>, vector<2x8x32xf32>, vector<2x8x8xf32> -> vector<2x8x8xf32>
    "tpu.trace_stop"() : () -> ()
    %cst_20 = arith.constant dense<0xFF800000> : vector<2x8xf32>
    %23 = vector.multi_reduction <maximumf>, %22, %cst_20 [2] : vector<2x8x8xf32> to vector<2x8xf32>
    %24 = vector.shape_cast %23 : vector<2x8xf32> to vector<2x8x1xf32>
    %25 = vector.broadcast %24 : vector<2x8x1xf32> to vector<2x8x8xf32>
    %26 = arith.subf %22, %25 : vector<2x8x8xf32>
    %27 = math.exp %26 : vector<2x8x8xf32>
    %cst_21 = arith.constant dense<0.000000e+00> : vector<2x8xf32>
    %28 = vector.multi_reduction <add>, %27, %cst_21 [2] : vector<2x8x8xf32> to vector<2x8xf32>
    %29 = vector.shape_cast %28 : vector<2x8xf32> to vector<2x8x1xf32>
    %30 = tpu.reciprocal %29 {approx = true} : vector<2x8x1xf32> -> vector<2x8x1xf32>
    %31 = arith.mulf %29, %30 : vector<2x8x1xf32>
    %cst_22 = arith.constant 2.000000e+00 : f32
    %32 = vector.broadcast %cst_22 : f32 to vector<2x8x1xf32>
    %33 = arith.subf %32, %31 : vector<2x8x1xf32>
    %34 = arith.mulf %30, %33 : vector<2x8x1xf32>
    %35 = arith.mulf %29, %34 : vector<2x8x1xf32>
    %cst_23 = arith.constant 2.000000e+00 : f32
    %36 = vector.broadcast %cst_23 : f32 to vector<2x8x1xf32>
    %37 = arith.subf %36, %35 : vector<2x8x1xf32>
    %38 = arith.mulf %34, %37 : vector<2x8x1xf32>
    %39 = vector.broadcast %38 : vector<2x8x1xf32> to vector<2x8x8xf32>
    %40 = arith.mulf %27, %39 : vector<2x8x8xf32>
    "tpu.trace_start"() <{level = 10 : i32, message = "bqk,bkd->bqd"}> : () -> ()
    %cst_24 = arith.constant dense<0.000000e+00> : vector<2x8x32xf32>
    %41 = tpu.matmul %40, %21, %cst_24 {dimension_numbers = #tpu.dot_dimension_numbers<[2], [1], [1], [2], [0, 0, 0, 1, 1, 2], [0], [0]>} : vector<2x8x8xf32>, vector<2x8x32xf32>, vector<2x8x32xf32> -> vector<2x8x32xf32>
    "tpu.trace_stop"() : () -> ()
    %c0_25 = arith.constant 0 : index
    %c0_26 = arith.constant 0 : index
    %c0_27 = arith.constant 0 : index
    %42 = vector.load %arg9[%c0_25, %c0_26, %c0_27] : memref<2x8x32xf32, #tpu.memory_space<vmem>>, vector<2x8x32xf32>
    tpu.vector_store %arg9[%c0_25, %c0_26, %c0_27], %41 {strides = array<i32>} : memref<2x8x32xf32, #tpu.memory_space<vmem>>, vector<2x8x32xf32>,
    return
  }
  func.func @transform_0(%arg0: i32) -> (i32, i32, i32) {
    %c0_i32 = arith.constant 0 : i32
    %c0_i32_0 = arith.constant 0 : i32
    %c0_i32_1 = arith.constant 0 : i32
    return %arg0, %c0_i32, %c0_i32_0 : i32, i32, i32
  }
  func.func @transform_1(%arg0: i32) -> (i32, i32, i32) {
    %c0_i32 = arith.constant 0 : i32
    %c0_i32_0 = arith.constant 0 : i32
    %c0_i32_1 = arith.constant 0 : i32
    return %arg0, %c0_i32, %c0_i32_0 : i32, i32, i32
  }
  func.func @transform_2(%arg0: i32) -> (i32, i32) {
    %c0_i32 = arith.constant 0 : i32
    %c0_i32_0 = arith.constant 0 : i32
    %c0_i32_1 = arith.constant 0 : i32
    return %c0_i32, %c0_i32_0 : i32, i32
  }
  func.func @transform_3(%arg0: i32) -> (i32, i32) {
    %c0_i32 = arith.constant 0 : i32
    %c0_i32_0 = arith.constant 0 : i32
    %c0_i32_1 = arith.constant 0 : i32
    return %c0_i32, %c0_i32_0 : i32, i32
  }
  func.func @transform_4(%arg0: i32) -> (i32, i32) {
    %c0_i32 = arith.constant 0 : i32
    %c0_i32_0 = arith.constant 0 : i32
    %c0_i32_1 = arith.constant 0 : i32
    return %c0_i32, %c0_i32_0 : i32, i32
  }
  func.func @transform_5(%arg0: i32) -> (i32, i32) {
    %c0_i32 = arith.constant 0 : i32
    %c0_i32_0 = arith.constant 0 : i32
    %c0_i32_1 = arith.constant 0 : i32
    return %c0_i32, %c0_i32_0 : i32, i32
  }
  func.func @transform_6(%arg0: i32) -> (i32, i32) {
    %c0_i32 = arith.constant 0 : i32
    %c0_i32_0 = arith.constant 0 : i32
    %c0_i32_1 = arith.constant 0 : i32
    return %c0_i32, %c0_i32_0 : i32, i32
  }
  func.func @transform_7(%arg0: i32) -> (i32, i32) {
    %c0_i32 = arith.constant 0 : i32
    %c0_i32_0 = arith.constant 0 : i32
    %c0_i32_1 = arith.constant 0 : i32
    return %c0_i32, %c0_i32_0 : i32, i32
  }
  func.func @transform_8(%arg0: i32) -> (i32, i32, i32) {
    %c0_i32 = arith.constant 0 : i32
    %c0_i32_0 = arith.constant 0 : i32
    %c0_i32_1 = arith.constant 0 : i32
    return %arg0, %c0_i32, %c0_i32_0 : i32, i32, i32
  }
}

</mosaic_0001>

<llo_original>
// kernel: tpu_custom_call.1
$region0: #{tpu_custom_call.1}
  #allocation0 [shape = 'u32[]', space=smem, size = 0x4, offset = 0x4, fixed_abs, tag = 'smem constant byte address 0x4 - core index']
  #allocation1 [shape = 'u32[144,128]{1,0:T(1,128)}', space=vmem, size = 0x12000, scoped, tag = 'internal scratch']
  %s0 = inlined_call_operand.hbm [shape: f32[2,8,32], index: 0, kind: input, shape index: {}]
  %s1 = inlined_call_operand.hbm [shape: f32[2,8,32], index: 1, kind: input, shape index: {}]
  %s2 = inlined_call_operand.hbm [shape: f32[32,32], index: 2, kind: input, shape index: {}]
  %s3 = inlined_call_operand.vmem [shape: f32[1,32], index: 3, kind: input, shape index: {}]
  %s4 = inlined_call_operand.hbm [shape: f32[32,32], index: 4, kind: input, shape index: {}]
  %s5 = inlined_call_operand.vmem [shape: f32[1,32], index: 5, kind: input, shape index: {}]
  %s6 = inlined_call_operand.hbm [shape: f32[32,32], index: 6, kind: input, shape index: {}]
  %s7 = inlined_call_operand.vmem [shape: f32[1,32], index: 7, kind: input, shape index: {}]
  %s8 = inlined_call_operand.hbm [shape: f32[2,256], index: 8, kind: output, shape index: {}]
  %s9 = sld [smem:[#allocation0]]
  $region62: #{tpu_custom_call.1} parent=0
    _
  %s11 = ssub.s32 1, %s9
  %s12 = scalar_select 0, %s11, %s9
  $region1: #{tpu_custom_call.1} parent=0
    #allocation2 [shape = 'u8[8192]{0}', space=vmem, size = 0x2000, scoped, tag = 'input window, operand 0, single buffered']
    #allocation3 [shape = 's32[1]{0}', space=sflag, size = 0x4, scoped, tag = 'scoped memory for tpu_custom_call.1']
    #allocation4 [shape = 's32[1]{0}', space=sflag, size = 0x4, scoped, tag = 'scoped memory for tpu_custom_call.1']
    #allocation5 [shape = 'u8[8192]{0}', space=vmem, size = 0x2000, scoped, tag = 'input window, operand 1, single buffered']
    #allocation6 [shape = 's32[1]{0}', space=sflag, size = 0x4, scoped, tag = 'scoped memory for tpu_custom_call.1']
    #allocation7 [shape = 'u8[16384]{0}', space=vmem, size = 0x4000, scoped, tag = 'input window, operand 2, single buffered']
    #allocation8 [shape = 'u8[16384]{0}', space=vmem, size = 0x4000, scoped, tag = 'input window, operand 4, single buffered']
    #allocation9 [shape = 's32[1]{0}', space=sflag, size = 0x4, scoped, tag = 'scoped memory for tpu_custom_call.1']
    #allocation10 [shape = 'u8[16384]{0}', space=vmem, size = 0x4000, scoped, tag = 'input window, operand 6, single buffered']
    #allocation11 [shape = 'u8[2048]{0}', space=vmem, size = 0x800, scoped, tag = 'output window, operand 0, single buffered']
    %13 = vsyncpa [#allocation3], 0
    %14 = vsyncpa [#allocation6], 0
    %15 = vsyncpa [#allocation9], 0
    %16 = vsyncpa [#allocation4], 0
    // Predicated region
    $region2: #{tpu_custom_call.1} parent=1 // pred_check
      _
    $region3: #{tpu_custom_call.1} parent=1 // pred_check_branch
      %18 = sbr.rel (0) target = $region5
    $region4: #{tpu_custom_call.1} parent=1 // pred_region
      %s20 = ssub.s32 256, 256
      %21 = vsyncadd [#allocation3], %s20
      %s22 = sshll.u32 [#allocation2], 4
      %s23 = int_to_ptr.vmem [resolvable:$true] %s22
      %28 = dma.hbm_to_vmem [thread:$0]  %s0, 256, %s23, [#allocation3], 128, 128, 8
    $region5: #{tpu_custom_call.1} parent=1 // pred_fallthru
      _
    // Predicated region
    $region6: #{tpu_custom_call.1} parent=1 // pred_check
      _
    $region7: #{tpu_custom_call.1} parent=1 // pred_check_branch
      %30 = sbr.rel (0) target = $region9
    $region8: #{tpu_custom_call.1} parent=1 // pred_region
      %s32 = ssub.s32 256, 256
      %33 = vsyncadd [#allocation6], %s32
      %s34 = sshll.u32 [#allocation5], 4
      %s35 = int_to_ptr.vmem [resolvable:$true] %s34
      %40 = dma.hbm_to_vmem [thread:$0]  %s1, 256, %s35, [#allocation6], 128, 128, 8
    $region9: #{tpu_custom_call.1} parent=1 // pred_fallthru
      _
    // Predicated region
    $region10: #{tpu_custom_call.1} parent=1 // pred_check
      _
    $region11: #{tpu_custom_call.1} parent=1 // pred_check_branch
      %42 = sbr.rel (0) target = $region13
    $region12: #{tpu_custom_call.1} parent=1 // pred_region
      %s44 = ssub.s32 512, 512
      %45 = vsyncadd [#allocation6], %s44
      %s46 = sshll.u32 [#allocation7], 4
      %s47 = int_to_ptr.vmem [resolvable:$true] %s46
      %52 = dma.hbm_to_vmem [thread:$0]  %s2, 512, %s47, [#allocation6], 128, 128, 8
    $region13: #{tpu_custom_call.1} parent=1 // pred_fallthru
      _
    // Predicated region
    $region14: #{tpu_custom_call.1} parent=1 // pred_check
      _
    $region15: #{tpu_custom_call.1} parent=1 // pred_check_branch
      %54 = sbr.rel (0) target = $region17
    $region16: #{tpu_custom_call.1} parent=1 // pred_region
      _
    $region17: #{tpu_custom_call.1} parent=1 // pred_fallthru
      _
    // Predicated region
    $region18: #{tpu_custom_call.1} parent=1 // pred_check
      _
    $region19: #{tpu_custom_call.1} parent=1 // pred_check_branch
      %56 = sbr.rel (0) target = $region21
    $region20: #{tpu_custom_call.1} parent=1 // pred_region
      %s58 = ssub.s32 512, 512
      %59 = vsyncadd [#allocation9], %s58
      %s60 = sshll.u32 [#allocation8], 4
      %s61 = int_to_ptr.vmem [resolvable:$true] %s60
      %66 = dma.hbm_to_vmem [thread:$0]  %s4, 512, %s61, [#allocation9], 128, 128, 8
    $region21: #{tpu_custom_call.1} parent=1 // pred_fallthru
      _
    // Predicated region
    $region22: #{tpu_custom_call.1} parent=1 // pred_check
      _
    $region23: #{tpu_custom_call.1} parent=1 // pred_check_branch
      %68 = sbr.rel (0) target = $region25
    $region24: #{tpu_custom_call.1} parent=1 // pred_region
      _
    $region25: #{tpu_custom_call.1} parent=1 // pred_fallthru
      _
    // Predicated region
    $region26: #{tpu_custom_call.1} parent=1 // pred_check
      _
    $region27: #{tpu_custom_call.1} parent=1 // pred_check_branch
      %70 = sbr.rel (0) target = $region29
    $region28: #{tpu_custom_call.1} parent=1 // pred_region
      %s72 = ssub.s32 512, 512
      %73 = vsyncadd [#allocation9], %s72
      %s74 = sshll.u32 [#allocation10], 4
      %s75 = int_to_ptr.vmem [resolvable:$true] %s74
      %80 = dma.hbm_to_vmem [thread:$0]  %s6, 512, %s75, [#allocation9], 128, 128, 8
    $region29: #{tpu_custom_call.1} parent=1 // pred_fallthru
      _
    // Predicated region
    $region30: #{tpu_custom_call.1} parent=1 // pred_check
      _
    $region31: #{tpu_custom_call.1} parent=1 // pred_check_branch
      %82 = sbr.rel (0) target = $region33
    $region32: #{tpu_custom_call.1} parent=1 // pred_region
      _
    $region33: #{tpu_custom_call.1} parent=1 // pred_fallthru
      _
    // Predicated region
    $region34: #{tpu_custom_call.1} parent=1 // pred_check
      _
    $region35: #{tpu_custom_call.1} parent=1 // pred_check_branch
      %84 = sbr.rel (0) target = $region37
    $region36: #{tpu_custom_call.1} parent=1 // pred_region
      %85 = dma.done [#allocation3], 256
    $region37: #{tpu_custom_call.1} parent=1 // pred_fallthru
      _
    // Predicated region
    $region38: #{tpu_custom_call.1} parent=1 // pred_check
      _
    $region39: #{tpu_custom_call.1} parent=1 // pred_check_branch
      %87 = sbr.rel (0) target = $region41
    $region40: #{tpu_custom_call.1} parent=1 // pred_region
      %88 = dma.done [#allocation6], 256
    $region41: #{tpu_custom_call.1} parent=1 // pred_fallthru
      _
    // Predicated region
    $region42: #{tpu_custom_call.1} parent=1 // pred_check
      _
    $region43: #{tpu_custom_call.1} parent=1 // pred_check_branch
      %90 = sbr.rel (0) target = $region45
    $region44: #{tpu_custom_call.1} parent=1 // pred_region
      %91 = dma.done [#allocation6], 512
    $region45: #{tpu_custom_call.1} parent=1 // pred_fallthru
      _
    // Predicated region
    $region46: #{tpu_custom_call.1} parent=1 // pred_check
      _
    $region47: #{tpu_custom_call.1} parent=1 // pred_check_branch
      %93 = sbr.rel (0) target = $region49
    $region48: #{tpu_custom_call.1} parent=1 // pred_region
      %94 = dma.done [#allocation9], 512
    $region49: #{tpu_custom_call.1} parent=1 // pred_fallthru
      _
    // Predicated region
    $region50: #{tpu_custom_call.1} parent=1 // pred_check
      _
    $region51: #{tpu_custom_call.1} parent=1 // pred_check_branch
      %96 = sbr.rel (0) target = $region53
    $region52: #{tpu_custom_call.1} parent=1 // pred_region
      %97 = dma.done [#allocation9], 512
    $region53: #{tpu_custom_call.1} parent=1 // pred_fallthru
      _
    %v98 = vld [vmem:[#allocation2] sm:$0xff]
    %v99 = vld [vmem:[#allocation2 + $0x8] sm:$0xff]
    %v100 = vld [vmem:[#allocation5] sm:$0xff]
    %v101 = vld [vmem:[#allocation5 + $0x8] sm:$0xff]
    %v102 = vld [vmem:[#allocation7] sm:$0xff]
    %v103 = vld [vmem:[#allocation7 + $0x8] sm:$0xff]
    %v104 = vld [vmem:[#allocation7 + $0x10] sm:$0xff]
    %v105 = vld [vmem:[#allocation7 + $0x18] sm:$0xff]
    %v106 = vld [vmem:[%s3] sm:$0x1]
    %v108 = vlaneseq
    %v109 = vshrl.u32 %v108, 7
    %v110 = vsub.s32 0, %v109
    %v111 = vrot.slane %v106, %v110
    %vm113 = vcmask 261120
    %v115 = vsel %vm113, %v98, 0
    %v118 = vsel %vm113, %v99, 0
    %120 = vmatprep.subr.mxu0 0.0
    %121 = vmatpush1.msra.mxu0 %v102
    %122 = vmatprep.subr.mxu0 0.0
    %123 = vmatpush1.msra.mxu0 %v103
    %124 = vmatprep.subr.mxu0 0.0
    %125 = vmatpush1.msra.mxu0 %v104
    %126 = vmatprep.subr.mxu0 0.0
    %127 = vmatpush1.msra.mxu0 %v105
    %128 = vmatprep.subr.mxu0 0.0
    %129 = vmatpush1.msra.mxu0 0.0
    %130 = vmatprep.subr.mxu0 0.0
    %131 = vmatpush1.msra.mxu0 0.0
    %132 = vmatprep.subr.mxu0 0.0
    %133 = vmatpush1.msra.mxu0 0.0
    %134 = vmatprep.subr.mxu0 0.0
    %135 = vmatpush1.msra.mxu0 0.0
    %136 = vmatprep.subr.mxu0 0.0
    %137 = vmatpush1.msra.mxu0 0.0
    %138 = vmatprep.subr.mxu0 0.0
    %139 = vmatpush1.msra.mxu0 0.0
    %140 = vmatprep.subr.mxu0 0.0
    %141 = vmatpush1.msra.mxu0 0.0
    %142 = vmatprep.subr.mxu0 0.0
    %143 = vmatpush1.msra.mxu0 0.0
    %144 = vmatprep.subr.mxu0 0.0
    %145 = vmatpush1.msra.mxu0 0.0
    %146 = vmatprep.subr.mxu0 0.0
    %147 = vmatpush1.msra.mxu0 0.0
    %148 = vmatprep.subr.mxu0 0.0
    %149 = vmatpush1.msra.mxu0 0.0
    %150 = vmatprep.subr.mxu0 0.0
    %151 = vmatpush1.msra.mxu0 0.0
    %152 = vmatprep.subr.mxu0 0.0
    %153 = vmatpush1.msra.mxu0 0.0
    %154 = vmatprep.subr.mxu0 0.0
    %155 = vmatpush1.msra.mxu0 0.0
    %156 = vmatprep.subr.mxu0 0.0
    %157 = vmatpush1.msra.mxu0 0.0
    %158 = vmatprep.subr.mxu0 0.0
    %159 = vmatpush1.msra.mxu0 0.0
    %160 = vmatprep.subr.mxu0 0.0
    %161 = vmatpush1.msra.mxu0 0.0
    %162 = vmatprep.subr.mxu0 0.0
    %163 = vmatpush1.msra.mxu0 0.0
    %164 = vmatprep.subr.mxu0 0.0
    %165 = vmatpush1.msra.mxu0 0.0
    %166 = vmatprep.subr.mxu0 0.0
    %167 = vmatpush1.msra.mxu0 0.0
    %168 = vmatprep.subr.mxu0 0.0
    %169 = vmatpush1.msra.mxu0 0.0
    %170 = vmatprep.subr.mxu0 0.0
    %171 = vmatpush1.msra.mxu0 0.0
    %172 = vmatprep.subr.mxu0 0.0
    %173 = vmatpush1.msra.mxu0 0.0
    %174 = vmatprep.subr.mxu0 0.0
    %175 = vmatpush1.msra.mxu0 0.0
    %176 = vmatprep.subr.mxu0 0.0
    %177 = vmatpush1.msra.mxu0 0.0
    %178 = vmatprep.subr.mxu0 0.0
    %179 = vmatpush1.msra.mxu0 0.0
    %180 = vmatprep.subr.mxu0 0.0
    %181 = vmatpush1.msra.mxu0 0.0
    %182 = vmatprep.subr.mxu0 0.0
    %183 = vmatpush1.msra.mxu0 0.0
    %184 = vmatprep.mubr.f32.mxu0 0.0
    %185 = vmatmul.mubr.f32.gmra.mrb[0].mxu0 %v115
    %v186 = vpop.f32.mrb[0].mxu0
    %v187 = vadd.f32 %v111, %v186
    %v188 = vpop.f32.mrb[0].mxu0
    %189 = vmatprep.mubr.f32.mxu0 0.0
    %190 = vmatmul.mubr.f32.gmra.mrb[0].mxu0 %v118
    %v191 = vpop.f32.mrb[0].mxu0
    %v192 = vadd.f32 %v111, %v191
    %v193 = vpop.f32.mrb[0].mxu0
    %194 = vdwg.mxu0
    %v195 = vld [vmem:[#allocation8] sm:$0xff]
    %v196 = vld [vmem:[#allocation8 + $0x8] sm:$0xff]
    %v197 = vld [vmem:[#allocation8 + $0x10] sm:$0xff]
    %v198 = vld [vmem:[#allocation8 + $0x18] sm:$0xff]
    %v199 = vld [vmem:[%s5] sm:$0x1]
    %v201 = vlaneseq
    %v202 = vshrl.u32 %v201, 7
    %v203 = vsub.s32 0, %v202
    %v204 = vrot.slane %v199, %v203
    %v207 = vsel %vm113, %v100, 0
    %v210 = vsel %vm113, %v101, 0
    %212 = vmatprep.subr.mxu0 0.0
    %213 = vmatpush1.msra.mxu0 %v195
    %214 = vmatprep.subr.mxu0 0.0
    %215 = vmatpush1.msra.mxu0 %v196
    %216 = vmatprep.subr.mxu0 0.0
    %217 = vmatpush1.msra.mxu0 %v197
    %218 = vmatprep.subr.mxu0 0.0
    %219 = vmatpush1.msra.mxu0 %v198
    %220 = vmatprep.subr.mxu0 0.0
    %221 = vmatpush1.msra.mxu0 0.0
    %222 = vmatprep.subr.mxu0 0.0
    %223 = vmatpush1.msra.mxu0 0.0
    %224 = vmatprep.subr.mxu0 0.0
    %225 = vmatpush1.msra.mxu0 0.0
    %226 = vmatprep.subr.mxu0 0.0
    %227 = vmatpush1.msra.mxu0 0.0
    %228 = vmatprep.subr.mxu0 0.0
    %229 = vmatpush1.msra.mxu0 0.0
    %230 = vmatprep.subr.mxu0 0.0
    %231 = vmatpush1.msra.mxu0 0.0
    %232 = vmatprep.subr.mxu0 0.0
    %233 = vmatpush1.msra.mxu0 0.0
    %234 = vmatprep.subr.mxu0 0.0
    %235 = vmatpush1.msra.mxu0 0.0
    %236 = vmatprep.subr.mxu0 0.0
    %237 = vmatpush1.msra.mxu0 0.0
    %238 = vmatprep.subr.mxu0 0.0
    %239 = vmatpush1.msra.mxu0 0.0
    %240 = vmatprep.subr.mxu0 0.0
    %241 = vmatpush1.msra.mxu0 0.0
    %242 = vmatprep.subr.mxu0 0.0
    %243 = vmatpush1.msra.mxu0 0.0
    %244 = vmatprep.subr.mxu0 0.0
    %245 = vmatpush1.msra.mxu0 0.0
    %246 = vmatprep.subr.mxu0 0.0
    %247 = vmatpush1.msra.mxu0 0.0
    %248 = vmatprep.subr.mxu0 0.0
    %249 = vmatpush1.msra.mxu0 0.0
    %250 = vmatprep.subr.mxu0 0.0
    %251 = vmatpush1.msra.mxu0 0.0
    %252 = vmatprep.subr.mxu0 0.0
    %253 = vmatpush1.msra.mxu0 0.0
    %254 = vmatprep.subr.mxu0 0.0
    %255 = vmatpush1.msra.mxu0 0.0
    %256 = vmatprep.subr.mxu0 0.0
    %257 = vmatpush1.msra.mxu0 0.0
    %258 = vmatprep.subr.mxu0 0.0
    %259 = vmatpush1.msra.mxu0 0.0
    %260 = vmatprep.subr.mxu0 0.0
    %261 = vmatpush1.msra.mxu0 0.0
    %262 = vmatprep.subr.mxu0 0.0
    %263 = vmatpush1.msra.mxu0 0.0
    %264 = vmatprep.subr.mxu0 0.0
    %265 = vmatpush1.msra.mxu0 0.0
    %266 = vmatprep.subr.mxu0 0.0
    %267 = vmatpush1.msra.mxu0 0.0
    %268 = vmatprep.subr.mxu0 0.0
    %269 = vmatpush1.msra.mxu0 0.0
    %270 = vmatprep.subr.mxu0 0.0
    %271 = vmatpush1.msra.mxu0 0.0
    %272 = vmatprep.subr.mxu0 0.0
    %273 = vmatpush1.msra.mxu0 0.0
    %274 = vmatprep.subr.mxu0 0.0
    %275 = vmatpush1.msra.mxu0 0.0
    %276 = vmatprep.mubr.f32.mxu0 0.0
    %277 = vmatmul.mubr.f32.gmra.mrb[0].mxu0 %v207
    %v278 = vpop.f32.mrb[0].mxu0
    %v279 = vadd.f32 %v204, %v278
    %v280 = vpop.f32.mrb[0].mxu0
    %281 = vmatprep.mubr.f32.mxu0 0.0
    %282 = vmatmul.mubr.f32.gmra.mrb[0].mxu0 %v210
    %v283 = vpop.f32.mrb[0].mxu0
    %v284 = vadd.f32 %v204, %v283
    %v285 = vpop.f32.mrb[0].mxu0
    %286 = vdwg.mxu0
    %v287 = vld [vmem:[#allocation10] sm:$0xff]
    %v288 = vld [vmem:[#allocation10 + $0x8] sm:$0xff]
    %v289 = vld [vmem:[#allocation10 + $0x10] sm:$0xff]
    %v290 = vld [vmem:[#allocation10 + $0x18] sm:$0xff]
    %v291 = vld [vmem:[%s7] sm:$0x1]
    %v293 = vlaneseq
    %v294 = vshrl.u32 %v293, 7
    %v295 = vsub.s32 0, %v294
    %v296 = vrot.slane %v291, %v295
    %298 = vmatprep.subr.mxu0 0.0
    %299 = vmatpush1.msra.mxu0 %v287
    %300 = vmatprep.subr.mxu0 0.0
    %301 = vmatpush1.msra.mxu0 %v288
    %302 = vmatprep.subr.mxu0 0.0
    %303 = vmatpush1.msra.mxu0 %v289
    %304 = vmatprep.subr.mxu0 0.0
    %305 = vmatpush1.msra.mxu0 %v290
    %306 = vmatprep.subr.mxu0 0.0
    %307 = vmatpush1.msra.mxu0 0.0
    %308 = vmatprep.subr.mxu0 0.0
    %309 = vmatpush1.msra.mxu0 0.0
    %310 = vmatprep.subr.mxu0 0.0
    %311 = vmatpush1.msra.mxu0 0.0
    %312 = vmatprep.subr.mxu0 0.0
    %313 = vmatpush1.msra.mxu0 0.0
    %314 = vmatprep.subr.mxu0 0.0
    %315 = vmatpush1.msra.mxu0 0.0
    %316 = vmatprep.subr.mxu0 0.0
    %317 = vmatpush1.msra.mxu0 0.0
    %318 = vmatprep.subr.mxu0 0.0
    %319 = vmatpush1.msra.mxu0 0.0
    %320 = vmatprep.subr.mxu0 0.0
    %321 = vmatpush1.msra.mxu0 0.0
    %322 = vmatprep.subr.mxu0 0.0
    %323 = vmatpush1.msra.mxu0 0.0
    %324 = vmatprep.subr.mxu0 0.0
    %325 = vmatpush1.msra.mxu0 0.0
    %326 = vmatprep.subr.mxu0 0.0
    %327 = vmatpush1.msra.mxu0 0.0
    %328 = vmatprep.subr.mxu0 0.0
    %329 = vmatpush1.msra.mxu0 0.0
    %330 = vmatprep.subr.mxu0 0.0
    %331 = vmatpush1.msra.mxu0 0.0
    %332 = vmatprep.subr.mxu0 0.0
    %333 = vmatpush1.msra.mxu0 0.0
    %334 = vmatprep.subr.mxu0 0.0
    %335 = vmatpush1.msra.mxu0 0.0
    %336 = vmatprep.subr.mxu0 0.0
    %337 = vmatpush1.msra.mxu0 0.0
    %338 = vmatprep.subr.mxu0 0.0
    %339 = vmatpush1.msra.mxu0 0.0
    %340 = vmatprep.subr.mxu0 0.0
    %341 = vmatpush1.msra.mxu0 0.0
    %342 = vmatprep.subr.mxu0 0.0
    %343 = vmatpush1.msra.mxu0 0.0
    %344 = vmatprep.subr.mxu0 0.0
    %345 = vmatpush1.msra.mxu0 0.0
    %346 = vmatprep.subr.mxu0 0.0
    %347 = vmatpush1.msra.mxu0 0.0
    %348 = vmatprep.subr.mxu0 0.0
    %349 = vmatpush1.msra.mxu0 0.0
    %350 = vmatprep.subr.mxu0 0.0
    %351 = vmatpush1.msra.mxu0 0.0
    %352 = vmatprep.subr.mxu0 0.0
    %353 = vmatpush1.msra.mxu0 0.0
    %354 = vmatprep.subr.mxu0 0.0
    %355 = vmatpush1.msra.mxu0 0.0
    %356 = vmatprep.subr.mxu0 0.0
    %357 = vmatpush1.msra.mxu0 0.0
    %358 = vmatprep.subr.mxu0 0.0
    %359 = vmatpush1.msra.mxu0 0.0
    %360 = vmatprep.subr.mxu0 0.0
    %361 = vmatpush1.msra.mxu0 0.0
    %362 = vmatprep.mubr.f32.mxu0 0.0
    %363 = vmatmul.mubr.f32.gmra.mrb[0].mxu0 %v207
    %v364 = vpop.f32.mrb[0].mxu0
    %v365 = vadd.f32 %v296, %v364
    %v366 = vpop.f32.mrb[0].mxu0
    %367 = vmatprep.mubr.f32.mxu0 0.0
    %368 = vmatmul.mubr.f32.gmra.mrb[0].mxu0 %v210
    %v369 = vpop.f32.mrb[0].mxu0
    %v370 = vadd.f32 %v296, %v369
    %v371 = vpop.f32.mrb[0].mxu0
    %372 = vdwg.mxu0
    %v374 = vsel %vm113, %v187, 0
    %v377 = vsel %vm113, %v279, 0
    %379 = vmatprep.subr.mxu0 0.0
    %380 = vmatpush1.xpose.msra.mxu0 %v377
    %381 = vmatprep.subr.mxu0 0.0
    %382 = vmatpush1.xpose.msra.mxu0 0.0
    %383 = vmatprep.subr.mxu0 0.0
    %384 = vmatpush1.xpose.msra.mxu0 0.0
    %385 = vmatprep.subr.mxu0 0.0
    %386 = vmatpush1.xpose.msra.mxu0 0.0
    %387 = vmatprep.subr.mxu0 0.0
    %388 = vmatpush1.xpose.msra.mxu0 0.0
    %389 = vmatprep.subr.mxu0 0.0
    %390 = vmatpush1.xpose.msra.mxu0 0.0
    %391 = vmatprep.subr.mxu0 0.0
    %392 = vmatpush1.xpose.msra.mxu0 0.0
    %393 = vmatprep.subr.mxu0 0.0
    %394 = vmatpush1.xpose.msra.mxu0 0.0
    %395 = vmatprep.subr.mxu0 0.0
    %396 = vmatpush1.xpose.msra.mxu0 0.0
    %397 = vmatprep.subr.mxu0 0.0
    %398 = vmatpush1.xpose.msra.mxu0 0.0
    %399 = vmatprep.subr.mxu0 0.0
    %400 = vmatpush1.xpose.msra.mxu0 0.0
    %401 = vmatprep.subr.mxu0 0.0
    %402 = vmatpush1.xpose.msra.mxu0 0.0
    %403 = vmatprep.subr.mxu0 0.0
    %404 = vmatpush1.xpose.msra.mxu0 0.0
    %405 = vmatprep.subr.mxu0 0.0
    %406 = vmatpush1.xpose.msra.mxu0 0.0
    %407 = vmatprep.subr.mxu0 0.0
    %408 = vmatpush1.xpose.msra.mxu0 0.0
    %409 = vmatprep.subr.mxu0 0.0
    %410 = vmatpush1.xpose.msra.mxu0 0.0
    %411 = vmatprep.subr.mxu0 0.0
    %412 = vmatpush1.xpose.msra.mxu0 0.0
    %413 = vmatprep.subr.mxu0 0.0
    %414 = vmatpush1.xpose.msra.mxu0 0.0
    %415 = vmatprep.subr.mxu0 0.0
    %416 = vmatpush1.xpose.msra.mxu0 0.0
    %417 = vmatprep.subr.mxu0 0.0
    %418 = vmatpush1.xpose.msra.mxu0 0.0
    %419 = vmatprep.subr.mxu0 0.0
    %420 = vmatpush1.xpose.msra.mxu0 0.0
    %421 = vmatprep.subr.mxu0 0.0
    %422 = vmatpush1.xpose.msra.mxu0 0.0
    %423 = vmatprep.subr.mxu0 0.0
    %424 = vmatpush1.xpose.msra.mxu0 0.0
    %425 = vmatprep.subr.mxu0 0.0
    %426 = vmatpush1.xpose.msra.mxu0 0.0
    %427 = vmatprep.subr.mxu0 0.0
    %428 = vmatpush1.xpose.msra.mxu0 0.0
    %429 = vmatprep.subr.mxu0 0.0
    %430 = vmatpush1.xpose.msra.mxu0 0.0
    %431 = vmatprep.subr.mxu0 0.0
    %432 = vmatpush1.xpose.msra.mxu0 0.0
    %433 = vmatprep.subr.mxu0 0.0
    %434 = vmatpush1.xpose.msra.mxu0 0.0
    %435 = vmatprep.subr.mxu0 0.0
    %436 = vmatpush1.xpose.msra.mxu0 0.0
    %437 = vmatprep.subr.mxu0 0.0
    %438 = vmatpush1.xpose.msra.mxu0 0.0
    %439 = vmatprep.subr.mxu0 0.0
    %440 = vmatpush1.xpose.msra.mxu0 0.0
    %441 = vmatprep.subr.mxu0 0.0
    %442 = vmatpush1.xpose.msra.mxu0 0.0
    %443 = vmatprep.mubr.f32.mxu0 0.0
    %444 = vmatmul.mubr.f32.gmra.mrb[0].mxu0 %v374
    %v445 = vpop.f32.mrb[0].mxu0
    %v446 = vadd.f32 0.0, %v445
    %v447 = vpop.f32.mrb[0].mxu0
    %448 = vdwg.mxu0
    %v450 = vsel %vm113, %v192, 0
    %v453 = vsel %vm113, %v284, 0
    %455 = vmatprep.subr.mxu0 0.0
    %456 = vmatpush1.xpose.msra.mxu0 %v453
    %457 = vmatprep.subr.mxu0 0.0
    %458 = vmatpush1.xpose.msra.mxu0 0.0
    %459 = vmatprep.subr.mxu0 0.0
    %460 = vmatpush1.xpose.msra.mxu0 0.0
    %461 = vmatprep.subr.mxu0 0.0
    %462 = vmatpush1.xpose.msra.mxu0 0.0
    %463 = vmatprep.subr.mxu0 0.0
    %464 = vmatpush1.xpose.msra.mxu0 0.0
    %465 = vmatprep.subr.mxu0 0.0
    %466 = vmatpush1.xpose.msra.mxu0 0.0
    %467 = vmatprep.subr.mxu0 0.0
    %468 = vmatpush1.xpose.msra.mxu0 0.0
    %469 = vmatprep.subr.mxu0 0.0
    %470 = vmatpush1.xpose.msra.mxu0 0.0
    %471 = vmatprep.subr.mxu0 0.0
    %472 = vmatpush1.xpose.msra.mxu0 0.0
    %473 = vmatprep.subr.mxu0 0.0
    %474 = vmatpush1.xpose.msra.mxu0 0.0
    %475 = vmatprep.subr.mxu0 0.0
    %476 = vmatpush1.xpose.msra.mxu0 0.0
    %477 = vmatprep.subr.mxu0 0.0
    %478 = vmatpush1.xpose.msra.mxu0 0.0
    %479 = vmatprep.subr.mxu0 0.0
    %480 = vmatpush1.xpose.msra.mxu0 0.0
    %481 = vmatprep.subr.mxu0 0.0
    %482 = vmatpush1.xpose.msra.mxu0 0.0
    %483 = vmatprep.subr.mxu0 0.0
    %484 = vmatpush1.xpose.msra.mxu0 0.0
    %485 = vmatprep.subr.mxu0 0.0
    %486 = vmatpush1.xpose.msra.mxu0 0.0
    %487 = vmatprep.subr.mxu0 0.0
    %488 = vmatpush1.xpose.msra.mxu0 0.0
    %489 = vmatprep.subr.mxu0 0.0
    %490 = vmatpush1.xpose.msra.mxu0 0.0
    %491 = vmatprep.subr.mxu0 0.0
    %492 = vmatpush1.xpose.msra.mxu0 0.0
    %493 = vmatprep.subr.mxu0 0.0
    %494 = vmatpush1.xpose.msra.mxu0 0.0
    %495 = vmatprep.subr.mxu0 0.0
    %496 = vmatpush1.xpose.msra.mxu0 0.0
    %497 = vmatprep.subr.mxu0 0.0
    %498 = vmatpush1.xpose.msra.mxu0 0.0
    %499 = vmatprep.subr.mxu0 0.0
    %500 = vmatpush1.xpose.msra.mxu0 0.0
    %501 = vmatprep.subr.mxu0 0.0
    %502 = vmatpush1.xpose.msra.mxu0 0.0
    %503 = vmatprep.subr.mxu0 0.0
    %504 = vmatpush1.xpose.msra.mxu0 0.0
    %505 = vmatprep.subr.mxu0 0.0
    %506 = vmatpush1.xpose.msra.mxu0 0.0
    %507 = vmatprep.subr.mxu0 0.0
    %508 = vmatpush1.xpose.msra.mxu0 0.0
    %509 = vmatprep.subr.mxu0 0.0
    %510 = vmatpush1.xpose.msra.mxu0 0.0
    %511 = vmatprep.subr.mxu0 0.0
    %512 = vmatpush1.xpose.msra.mxu0 0.0
    %513 = vmatprep.subr.mxu0 0.0
    %514 = vmatpush1.xpose.msra.mxu0 0.0
    %515 = vmatprep.subr.mxu0 0.0
    %516 = vmatpush1.xpose.msra.mxu0 0.0
    %517 = vmatprep.subr.mxu0 0.0
    %518 = vmatpush1.xpose.msra.mxu0 0.0
    %519 = vmatprep.mubr.f32.mxu0 0.0
    %520 = vmatmul.mubr.f32.gmra.mrb[0].mxu0 %v450
    %v521 = vpop.f32.mrb[0].mxu0
    %v522 = vadd.f32 0.0, %v521
    %v523 = vpop.f32.mrb[0].mxu0
    %524 = vdwg.mxu0
    %vm525 = vcmask 64512
    %v526 = vsel %vm525, %v446, -inf
    %527 = vmax.xlane.f32.xlu0 %v526
    %v528 = vpop.xlane.xlu0 %527
    %v529 = vsel %vm525, %v522, -inf
    %530 = vmax.xlane.f32.xlu0 %v529
    %v531 = vpop.xlane.xlu0 %530
    %v532 = vsub.f32 %v446, %v528
    %v533 = vsub.f32 %v522, %v531
    %v534 = vmul.f32 %v532, 1.442695
    %v535 = vpow.pop %v534
    %v536 = vmul.f32 %v533, 1.442695
    %v537 = vpow.pop %v536
    %v538 = vsel %vm525, %v535, 0.0
    %539 = vadd.xlane.f32.xlu0 %v538
    %v540 = vpop.xlane.xlu0 %539
    %v541 = vsel %vm525, %v537, 0.0
    %542 = vadd.xlane.f32.xlu0 %v541
    %v543 = vpop.xlane.xlu0 %542
    %v544 = vrcp.pop %v540
    %v545 = vrcp.pop %v543
    %v546 = vmul.f32 %v540, %v544
    %v547 = vmul.f32 %v543, %v545
    %v548 = vsub.f32 2.0, %v546
    %v549 = vsub.f32 2.0, %v547
    %v550 = vmul.f32 %v544, %v548
    %v551 = vmul.f32 %v545, %v549
    %v552 = vmul.f32 %v540, %v550
    %v553 = vmul.f32 %v543, %v551
    %v554 = vsub.f32 2.0, %v552
    %v555 = vsub.f32 2.0, %v553
    %v556 = vmul.f32 %v550, %v554
    %v557 = vmul.f32 %v551, %v555
    %v558 = vmul.f32 %v535, %v556
    %v559 = vmul.f32 %v537, %v557
    %v561 = vsel %vm525, %v558, 0
    %563 = vmatprep.subr.mxu0 0.0
    %564 = vmatpush1.msra.mxu0 %v365
    %565 = vmatprep.subr.mxu0 0.0
    %566 = vmatpush1.msra.mxu0 0.0
    %567 = vmatprep.subr.mxu0 0.0
    %568 = vmatpush1.msra.mxu0 0.0
    %569 = vmatprep.subr.mxu0 0.0
    %570 = vmatpush1.msra.mxu0 0.0
    %571 = vmatprep.subr.mxu0 0.0
    %572 = vmatpush1.msra.mxu0 0.0
    %573 = vmatprep.subr.mxu0 0.0
    %574 = vmatpush1.msra.mxu0 0.0
    %575 = vmatprep.subr.mxu0 0.0
    %576 = vmatpush1.msra.mxu0 0.0
    %577 = vmatprep.subr.mxu0 0.0
    %578 = vmatpush1.msra.mxu0 0.0
    %579 = vmatprep.subr.mxu0 0.0
    %580 = vmatpush1.msra.mxu0 0.0
    %581 = vmatprep.subr.mxu0 0.0
    %582 = vmatpush1.msra.mxu0 0.0
    %583 = vmatprep.subr.mxu0 0.0
    %584 = vmatpush1.msra.mxu0 0.0
    %585 = vmatprep.subr.mxu0 0.0
    %586 = vmatpush1.msra.mxu0 0.0
    %587 = vmatprep.subr.mxu0 0.0
    %588 = vmatpush1.msra.mxu0 0.0
    %589 = vmatprep.subr.mxu0 0.0
    %590 = vmatpush1.msra.mxu0 0.0
    %591 = vmatprep.subr.mxu0 0.0
    %592 = vmatpush1.msra.mxu0 0.0
    %593 = vmatprep.subr.mxu0 0.0
    %594 = vmatpush1.msra.mxu0 0.0
    %595 = vmatprep.subr.mxu0 0.0
    %596 = vmatpush1.msra.mxu0 0.0
    %597 = vmatprep.subr.mxu0 0.0
    %598 = vmatpush1.msra.mxu0 0.0
    %599 = vmatprep.subr.mxu0 0.0
    %600 = vmatpush1.msra.mxu0 0.0
    %601 = vmatprep.subr.mxu0 0.0
    %602 = vmatpush1.msra.mxu0 0.0
    %603 = vmatprep.subr.mxu0 0.0
    %604 = vmatpush1.msra.mxu0 0.0
    %605 = vmatprep.subr.mxu0 0.0
    %606 = vmatpush1.msra.mxu0 0.0
    %607 = vmatprep.subr.mxu0 0.0
    %608 = vmatpush1.msra.mxu0 0.0
    %609 = vmatprep.subr.mxu0 0.0
    %610 = vmatpush1.msra.mxu0 0.0
    %611 = vmatprep.subr.mxu0 0.0
    %612 = vmatpush1.msra.mxu0 0.0
    %613 = vmatprep.subr.mxu0 0.0
    %614 = vmatpush1.msra.mxu0 0.0
    %615 = vmatprep.subr.mxu0 0.0
    %616 = vmatpush1.msra.mxu0 0.0
    %617 = vmatprep.subr.mxu0 0.0
    %618 = vmatpush1.msra.mxu0 0.0
    %619 = vmatprep.subr.mxu0 0.0
    %620 = vmatpush1.msra.mxu0 0.0
    %621 = vmatprep.subr.mxu0 0.0
    %622 = vmatpush1.msra.mxu0 0.0
    %623 = vmatprep.subr.mxu0 0.0
    %624 = vmatpush1.msra.mxu0 0.0
    %625 = vmatprep.subr.mxu0 0.0
    %626 = vmatpush1.msra.mxu0 0.0
    %627 = vmatprep.mubr.f32.mxu0 0.0
    %628 = vmatmul.mubr.f32.gmra.mrb[0].mxu0 %v561
    %v629 = vpop.f32.mrb[0].mxu0
    %v630 = vadd.f32 0.0, %v629
    %v631 = vpop.f32.mrb[0].mxu0
    %632 = vdwg.mxu0
    %v634 = vsel %vm525, %v559, 0
    %636 = vmatprep.subr.mxu0 0.0
    %637 = vmatpush1.msra.mxu0 %v370
    %638 = vmatprep.subr.mxu0 0.0
    %639 = vmatpush1.msra.mxu0 0.0
    %640 = vmatprep.subr.mxu0 0.0
    %641 = vmatpush1.msra.mxu0 0.0
    %642 = vmatprep.subr.mxu0 0.0
    %643 = vmatpush1.msra.mxu0 0.0
    %644 = vmatprep.subr.mxu0 0.0
    %645 = vmatpush1.msra.mxu0 0.0
    %646 = vmatprep.subr.mxu0 0.0
    %647 = vmatpush1.msra.mxu0 0.0
    %648 = vmatprep.subr.mxu0 0.0
    %649 = vmatpush1.msra.mxu0 0.0
    %650 = vmatprep.subr.mxu0 0.0
    %651 = vmatpush1.msra.mxu0 0.0
    %652 = vmatprep.subr.mxu0 0.0
    %653 = vmatpush1.msra.mxu0 0.0
    %654 = vmatprep.subr.mxu0 0.0
    %655 = vmatpush1.msra.mxu0 0.0
    %656 = vmatprep.subr.mxu0 0.0
    %657 = vmatpush1.msra.mxu0 0.0
    %658 = vmatprep.subr.mxu0 0.0
    %659 = vmatpush1.msra.mxu0 0.0
    %660 = vmatprep.subr.mxu0 0.0
    %661 = vmatpush1.msra.mxu0 0.0
    %662 = vmatprep.subr.mxu0 0.0
    %663 = vmatpush1.msra.mxu0 0.0
    %664 = vmatprep.subr.mxu0 0.0
    %665 = vmatpush1.msra.mxu0 0.0
    %666 = vmatprep.subr.mxu0 0.0
    %667 = vmatpush1.msra.mxu0 0.0
    %668 = vmatprep.subr.mxu0 0.0
    %669 = vmatpush1.msra.mxu0 0.0
    %670 = vmatprep.subr.mxu0 0.0
    %671 = vmatpush1.msra.mxu0 0.0
    %672 = vmatprep.subr.mxu0 0.0
    %673 = vmatpush1.msra.mxu0 0.0
    %674 = vmatprep.subr.mxu0 0.0
    %675 = vmatpush1.msra.mxu0 0.0
    %676 = vmatprep.subr.mxu0 0.0
    %677 = vmatpush1.msra.mxu0 0.0
    %678 = vmatprep.subr.mxu0 0.0
    %679 = vmatpush1.msra.mxu0 0.0
    %680 = vmatprep.subr.mxu0 0.0
    %681 = vmatpush1.msra.mxu0 0.0
    %682 = vmatprep.subr.mxu0 0.0
    %683 = vmatpush1.msra.mxu0 0.0
    %684 = vmatprep.subr.mxu0 0.0
    %685 = vmatpush1.msra.mxu0 0.0
    %686 = vmatprep.subr.mxu0 0.0
    %687 = vmatpush1.msra.mxu0 0.0
    %688 = vmatprep.subr.mxu0 0.0
    %689 = vmatpush1.msra.mxu0 0.0
    %690 = vmatprep.subr.mxu0 0.0
    %691 = vmatpush1.msra.mxu0 0.0
    %692 = vmatprep.subr.mxu0 0.0
    %693 = vmatpush1.msra.mxu0 0.0
    %694 = vmatprep.subr.mxu0 0.0
    %695 = vmatpush1.msra.mxu0 0.0
    %696 = vmatprep.subr.mxu0 0.0
    %697 = vmatpush1.msra.mxu0 0.0
    %698 = vmatprep.subr.mxu0 0.0
    %699 = vmatpush1.msra.mxu0 0.0
    %700 = vmatprep.mubr.f32.mxu0 0.0
    %701 = vmatmul.mubr.f32.gmra.mrb[0].mxu0 %v634
    %v702 = vpop.f32.mrb[0].mxu0
    %v703 = vadd.f32 0.0, %v702
    %v704 = vpop.f32.mrb[0].mxu0
    %705 = vdwg.mxu0
    %v706 = vcombine.high %v630, 0.0
    %v708 = vunpack.c.l.s4 1983009808
    %v709 = vunpack.c.0.s8 %v708
    %v710 = vlaneseq
    %v711 = vshrl.u32 %v710, 7
    %v712 = vsub.s32 %v709, %v711
    %v713 = vrot.slane %v630, %v712
    %v715 = vunpack.c.l.s4 1983009808
    %v716 = vunpack.c.0.s8 %v715
    %v717 = vlaneseq
    %v718 = vshrl.u32 %v717, 7
    %v719 = vsub.s32 %v716, %v718
    %v720 = vrot.slane %v706, %v719
    %v721 = vcombine.high %v703, 0.0
    %v723 = vunpack.c.l.s4 1983009808
    %v724 = vunpack.c.0.s8 %v723
    %v725 = vlaneseq
    %v726 = vshrl.u32 %v725, 7
    %v727 = vsub.s32 %v724, %v726
    %v728 = vrot.slane %v703, %v727
    %v730 = vunpack.c.l.s4 1983009808
    %v731 = vunpack.c.0.s8 %v730
    %v732 = vlaneseq
    %v733 = vshrl.u32 %v732, 7
    %v734 = vsub.s32 %v731, %v733
    %v735 = vrot.slane %v721, %v734
    %v736 = vcombine.low %v713, %v728
    %v737 = vcombine.high %v713, %v728
    %v739 = vunpack.c.l.s4 1934713408
    %v740 = vunpack.c.0.s8 %v739
    %v741 = vlaneseq
    %v742 = vshrl.u32 %v741, 7
    %v743 = vsub.s32 %v740, %v742
    %v744 = vrot.slane %v736, %v743
    %v746 = vunpack.c.l.s4 1934713408
    %v747 = vunpack.c.0.s8 %v746
    %v748 = vlaneseq
    %v749 = vshrl.u32 %v748, 7
    %v750 = vsub.s32 %v747, %v749
    %v751 = vrot.slane %v737, %v750
    %v752 = vcombine.low %v720, %v735
    %v753 = vcombine.high %v720, %v735
    %v755 = vunpack.c.l.s4 1934713408
    %v756 = vunpack.c.0.s8 %v755
    %v757 = vlaneseq
    %v758 = vshrl.u32 %v757, 7
    %v759 = vsub.s32 %v756, %v758
    %v760 = vrot.slane %v752, %v759
    %v762 = vunpack.c.l.s4 1934713408
    %v763 = vunpack.c.0.s8 %v762
    %v764 = vlaneseq
    %v765 = vshrl.u32 %v764, 7
    %v766 = vsub.s32 %v763, %v765
    %v767 = vrot.slane %v753, %v766
    %v768 = vcombine.high %v744, 0.0
    %v769 = vcombine.high %v751, 0.0
    %v770 = vcombine.high %v760, 0.0
    %v771 = vcombine.high %v767, 0.0
    %773 = vrot.lane.b32.xlu0 %v768, 32
    %v774 = vpop.permute.xlu0 %773
    %777 = vrot.lane.b32.xlu0 %v751, 64
    %v778 = vpop.permute.xlu0 %777
    %781 = vrot.lane.b32.xlu0 %v769, 96
    %v782 = vpop.permute.xlu0 %781
    %785 = vrot.lane.b32.xlu0 %v770, 32
    %v786 = vpop.permute.xlu0 %785
    %789 = vrot.lane.b32.xlu0 %v767, 64
    %v790 = vpop.permute.xlu0 %789
    %793 = vrot.lane.b32.xlu0 %v771, 96
    %v794 = vpop.permute.xlu0 %793
    %v796 = vsel %vm113, %v744, %v774
    %vm797 = vcmask 523264
    %v798 = vsel %vm797, %v796, %v778
    %vm799 = vcmask 785408
    %v800 = vsel %vm799, %v798, %v782
    %v801 = vsel %vm113, %v760, %v786
    %v802 = vsel %vm797, %v801, %v790
    %v803 = vsel %vm799, %v802, %v794
    %v806 = vcombine.low %v800, %v803
    %v808 = vunpack.c.l.s4 1983009808
    %v809 = vunpack.c.0.s8 %v808
    %v810 = vlaneseq
    %v811 = vshrl.u32 %v810, 7
    %v812 = vsub.s32 %v809, %v811
    %v813 = vrot.slane %v806, %v812
    %815 = vst [vmem:[#allocation11] sm:$0xf] %v813
    // Predicated region
    $region54: #{tpu_custom_call.1} parent=1 // pred_check
      _
    $region55: #{tpu_custom_call.1} parent=1 // pred_check_branch
      %817 = sbr.rel (0) target = $region57
    $region56: #{tpu_custom_call.1} parent=1 // pred_region
      %s819 = ssub.s32 64, 64
      %820 = vsyncadd [#allocation4], %s819
      %s822 = sshll.u32 [#allocation11], 4
      %s823 = int_to_ptr.vmem [resolvable:$true] %s822
      %825 = dma.vmem_to_hbm [thread:$0]  %s823, 64, %s8, [#allocation4]
    $region57: #{tpu_custom_call.1} parent=1 // pred_fallthru
      _
    // Predicated region
    $region58: #{tpu_custom_call.1} parent=1 // pred_check
      _
    $region59: #{tpu_custom_call.1} parent=1 // pred_check_branch
      %827 = sbr.rel (0) target = $region61
    $region60: #{tpu_custom_call.1} parent=1 // pred_region
      %828 = dma.done [#allocation4], 64
    $region61: #{tpu_custom_call.1} parent=1 // pred_fallthru
      _
    %829 = vsyncpa [#allocation3], 1
    %830 = vsyncpa [#allocation6], 1
    %831 = vsyncpa [#allocation9], 1
    %832 = vsyncpa [#allocation4], 1

// kernel: tpu_custom_call.1
$region0: #{tpu_custom_call.1}
  #allocation0 [shape = 'u32[]', space=smem, size = 0x4, offset = 0x4, fixed_abs, tag = 'smem constant byte address 0x4 - core index']
  #allocation1 [shape = 'u32[144,128]{1,0:T(1,128)}', space=vmem, size = 0x12000, scoped, tag = 'internal scratch']
  %s0 = inlined_call_operand.hbm [shape: f32[2,8,32], index: 0, kind: input, shape index: {}]
  %s1 = inlined_call_operand.hbm [shape: f32[2,8,32], index: 1, kind: input, shape index: {}]
  %s2 = inlined_call_operand.hbm [shape: f32[32,32], index: 2, kind: input, shape index: {}]
  %s3 = inlined_call_operand.vmem [shape: f32[1,32], index: 3, kind: input, shape index: {}]
  %s4 = inlined_call_operand.hbm [shape: f32[32,32], index: 4, kind: input, shape index: {}]
  %s5 = inlined_call_operand.vmem [shape: f32[1,32], index: 5, kind: input, shape index: {}]
  %s6 = inlined_call_operand.hbm [shape: f32[32,32], index: 6, kind: input, shape index: {}]
  %s7 = inlined_call_operand.vmem [shape: f32[1,32], index: 7, kind: input, shape index: {}]
  %s8 = inlined_call_operand.hbm [shape: f32[2,256], index: 8, kind: output, shape index: {}]
  %s9 = sld [smem:[#allocation0]]
  $region62: #{tpu_custom_call.1} parent=0
    _
  %s11 = ssub.s32 1, %s9
  %s12 = scalar_select 0, %s11, %s9
  $region1: #{tpu_custom_call.1} parent=0
    #allocation2 [shape = 'u8[8192]{0}', space=vmem, size = 0x2000, scoped, tag = 'input window, operand 0, single buffered']
    #allocation3 [shape = 's32[1]{0}', space=sflag, size = 0x4, scoped, tag = 'scoped memory for tpu_custom_call.1']
    #allocation4 [shape = 's32[1]{0}', space=sflag, size = 0x4, scoped, tag = 'scoped memory for tpu_custom_call.1']
    #allocation5 [shape = 'u8[8192]{0}', space=vmem, size = 0x2000, scoped, tag = 'input window, operand 1, single buffered']
    #allocation6 [shape = 's32[1]{0}', space=sflag, size = 0x4, scoped, tag = 'scoped memory for tpu_custom_call.1']
    #allocation7 [shape = 'u8[16384]{0}', space=vmem, size = 0x4000, scoped, tag = 'input window, operand 2, single buffered']
    #allocation8 [shape = 'u8[16384]{0}', space=vmem, size = 0x4000, scoped, tag = 'input window, operand 4, single buffered']
    #allocation9 [shape = 's32[1]{0}', space=sflag, size = 0x4, scoped, tag = 'scoped memory for tpu_custom_call.1']
    #allocation10 [shape = 'u8[16384]{0}', space=vmem, size = 0x4000, scoped, tag = 'input window, operand 6, single buffered']
    #allocation11 [shape = 'u8[2048]{0}', space=vmem, size = 0x800, scoped, tag = 'output window, operand 0, single buffered']
    %13 = vsyncpa [#allocation3], 0
    %14 = vsyncpa [#allocation6], 0
    %15 = vsyncpa [#allocation9], 0
    %16 = vsyncpa [#allocation4], 0
    // Predicated region
    $region2: #{tpu_custom_call.1} parent=1 // pred_check
      _
    $region3: #{tpu_custom_call.1} parent=1 // pred_check_branch
      %18 = sbr.rel (0) target = $region5
    $region4: #{tpu_custom_call.1} parent=1 // pred_region
      %s20 = ssub.s32 256, 256
      %21 = vsyncadd [#allocation3], %s20
      %s22 = sshll.u32 [#allocation2], 4
      %s23 = int_to_ptr.vmem [resolvable:$true] %s22
      %28 = dma.hbm_to_vmem [thread:$0]  %s0, 256, %s23, [#allocation3], 128, 128, 8
    $region5: #{tpu_custom_call.1} parent=1 // pred_fallthru
      _
    // Predicated region
    $region6: #{tpu_custom_call.1} parent=1 // pred_check
      _
    $region7: #{tpu_custom_call.1} parent=1 // pred_check_branch
      %30 = sbr.rel (0) target = $region9
    $region8: #{tpu_custom_call.1} parent=1 // pred_region
      %s32 = ssub.s32 256, 256
      %33 = vsyncadd [#allocation6], %s32
      %s34 = sshll.u32 [#allocation5], 4
      %s35 = int_to_ptr.vmem [resolvable:$true] %s34
      %40 = dma.hbm_to_vmem [thread:$0]  %s1, 256, %s35, [#allocation6], 128, 128, 8
    $region9: #{tpu_custom_call.1} parent=1 // pred_fallthru
      _
    // Predicated region
    $region10: #{tpu_custom_call.1} parent=1 // pred_check
      _
    $region11: #{tpu_custom_call.1} parent=1 // pred_check_branch
      %42 = sbr.rel (0) target = $region13
    $region12: #{tpu_custom_call.1} parent=1 // pred_region
      %s44 = ssub.s32 512, 512
      %45 = vsyncadd [#allocation6], %s44
      %s46 = sshll.u32 [#allocation7], 4
      %s47 = int_to_ptr.vmem [resolvable:$true] %s46
      %52 = dma.hbm_to_vmem [thread:$0]  %s2, 512, %s47, [#allocation6], 128, 128, 8
    $region13: #{tpu_custom_call.1} parent=1 // pred_fallthru
      _
    // Predicated region
    $region14: #{tpu_custom_call.1} parent=1 // pred_check
      _
    $region15: #{tpu_custom_call.1} parent=1 // pred_check_branch
      %54 = sbr.rel (0) target = $region17
    $region16: #{tpu_custom_call.1} parent=1 // pred_region
      _
    $region17: #{tpu_custom_call.1} parent=1 // pred_fallthru
      _
    // Predicated region
    $region18: #{tpu_custom_call.1} parent=1 // pred_check
      _
    $region19: #{tpu_custom_call.1} parent=1 // pred_check_branch
      %56 = sbr.rel (0) target = $region21
    $region20: #{tpu_custom_call.1} parent=1 // pred_region
      %s58 = ssub.s32 512, 512
      %59 = vsyncadd [#allocation9], %s58
      %s60 = sshll.u32 [#allocation8], 4
      %s61 = int_to_ptr.vmem [resolvable:$true] %s60
      %66 = dma.hbm_to_vmem [thread:$0]  %s4, 512, %s61, [#allocation9], 128, 128, 8
    $region21: #{tpu_custom_call.1} parent=1 // pred_fallthru
      _
    // Predicated region
    $region22: #{tpu_custom_call.1} parent=1 // pred_check
      _
    $region23: #{tpu_custom_call.1} parent=1 // pred_check_branch
      %68 = sbr.rel (0) target = $region25
    $region24: #{tpu_custom_call.1} parent=1 // pred_region
      _
    $region25: #{tpu_custom_call.1} parent=1 // pred_fallthru
      _
    // Predicated region
    $region26: #{tpu_custom_call.1} parent=1 // pred_check
      _
    $region27: #{tpu_custom_call.1} parent=1 // pred_check_branch
      %70 = sbr.rel (0) target = $region29
    $region28: #{tpu_custom_call.1} parent=1 // pred_region
      %s72 = ssub.s32 512, 512
      %73 = vsyncadd [#allocation9], %s72
      %s74 = sshll.u32 [#allocation10], 4
      %s75 = int_to_ptr.vmem [resolvable:$true] %s74
      %80 = dma.hbm_to_vmem [thread:$0]  %s6, 512, %s75, [#allocation9], 128, 128, 8
    $region29: #{tpu_custom_call.1} parent=1 // pred_fallthru
      _
    // Predicated region
    $region30: #{tpu_custom_call.1} parent=1 // pred_check
      _
    $region31: #{tpu_custom_call.1} parent=1 // pred_check_branch
      %82 = sbr.rel (0) target = $region33
    $region32: #{tpu_custom_call.1} parent=1 // pred_region
      _
    $region33: #{tpu_custom_call.1} parent=1 // pred_fallthru
      _
    // Predicated region
    $region34: #{tpu_custom_call.1} parent=1 // pred_check
      _
    $region35: #{tpu_custom_call.1} parent=1 // pred_check_branch
      %84 = sbr.rel (0) target = $region37
    $region36: #{tpu_custom_call.1} parent=1 // pred_region
      %85 = dma.done [#allocation3], 256
    $region37: #{tpu_custom_call.1} parent=1 // pred_fallthru
      _
    // Predicated region
    $region38: #{tpu_custom_call.1} parent=1 // pred_check
      _
    $region39: #{tpu_custom_call.1} parent=1 // pred_check_branch
      %87 = sbr.rel (0) target = $region41
    $region40: #{tpu_custom_call.1} parent=1 // pred_region
      %88 = dma.done [#allocation6], 256
    $region41: #{tpu_custom_call.1} parent=1 // pred_fallthru
      _
    // Predicated region
    $region42: #{tpu_custom_call.1} parent=1 // pred_check
      _
    $region43: #{tpu_custom_call.1} parent=1 // pred_check_branch
      %90 = sbr.rel (0) target = $region45
    $region44: #{tpu_custom_call.1} parent=1 // pred_region
      %91 = dma.done [#allocation6], 512
    $region45: #{tpu_custom_call.1} parent=1 // pred_fallthru
      _
    // Predicated region
    $region46: #{tpu_custom_call.1} parent=1 // pred_check
      _
    $region47: #{tpu_custom_call.1} parent=1 // pred_check_branch
      %93 = sbr.rel (0) target = $region49
    $region48: #{tpu_custom_call.1} parent=1 // pred_region
      %94 = dma.done [#allocation9], 512
    $region49: #{tpu_custom_call.1} parent=1 // pred_fallthru
      _
    // Predicated region
    $region50: #{tpu_custom_call.1} parent=1 // pred_check
      _
    $region51: #{tpu_custom_call.1} parent=1 // pred_check_branch
      %96 = sbr.rel (0) target = $region53
    $region52: #{tpu_custom_call.1} parent=1 // pred_region
      %97 = dma.done [#allocation9], 512
    $region53: #{tpu_custom_call.1} parent=1 // pred_fallthru
      _
    %v98 = vld [vmem:[#allocation2] sm:$0xff]
    %v99 = vld [vmem:[#allocation2 + $0x8] sm:$0xff]
    %v100 = vld [vmem:[#allocation5] sm:$0xff]
    %v101 = vld [vmem:[#allocation5 + $0x8] sm:$0xff]
    %v102 = vld [vmem:[#allocation7] sm:$0xff]
    %v103 = vld [vmem:[#allocation7 + $0x8] sm:$0xff]
    %v104 = vld [vmem:[#allocation7 + $0x10] sm:$0xff]
    %v105 = vld [vmem:[#allocation7 + $0x18] sm:$0xff]
    %v106 = vld [vmem:[%s3] sm:$0x1]
    %v108 = vlaneseq
    %v109 = vshrl.u32 %v108, 7
    %v110 = vsub.s32 0, %v109
    %v111 = vrot.slane %v106, %v110
    %vm113 = vcmask 261120
    %v115 = vsel %vm113, %v98, 0
    %v118 = vsel %vm113, %v99, 0
    %120 = vmatprep.subr.mxu0 0.0
    %121 = vmatpush1.msra.mxu0 %v102
    %122 = vmatprep.subr.mxu0 0.0
    %123 = vmatpush1.msra.mxu0 %v103
    %124 = vmatprep.subr.mxu0 0.0
    %125 = vmatpush1.msra.mxu0 %v104
    %126 = vmatprep.subr.mxu0 0.0
    %127 = vmatpush1.msra.mxu0 %v105
    %128 = vmatprep.subr.mxu0 0.0
    %129 = vmatpush1.msra.mxu0 0.0
    %130 = vmatprep.subr.mxu0 0.0
    %131 = vmatpush1.msra.mxu0 0.0
    %132 = vmatprep.subr.mxu0 0.0
    %133 = vmatpush1.msra.mxu0 0.0
    %134 = vmatprep.subr.mxu0 0.0
    %135 = vmatpush1.msra.mxu0 0.0
    %136 = vmatprep.subr.mxu0 0.0
    %137 = vmatpush1.msra.mxu0 0.0
    %138 = vmatprep.subr.mxu0 0.0
    %139 = vmatpush1.msra.mxu0 0.0
    %140 = vmatprep.subr.mxu0 0.0
    %141 = vmatpush1.msra.mxu0 0.0
    %142 = vmatprep.subr.mxu0 0.0
    %143 = vmatpush1.msra.mxu0 0.0
    %144 = vmatprep.subr.mxu0 0.0
    %145 = vmatpush1.msra.mxu0 0.0
    %146 = vmatprep.subr.mxu0 0.0
    %147 = vmatpush1.msra.mxu0 0.0
    %148 = vmatprep.subr.mxu0 0.0
    %149 = vmatpush1.msra.mxu0 0.0
    %150 = vmatprep.subr.mxu0 0.0
    %151 = vmatpush1.msra.mxu0 0.0
    %152 = vmatprep.subr.mxu0 0.0
    %153 = vmatpush1.msra.mxu0 0.0
    %154 = vmatprep.subr.mxu0 0.0
    %155 = vmatpush1.msra.mxu0 0.0
    %156 = vmatprep.subr.mxu0 0.0
    %157 = vmatpush1.msra.mxu0 0.0
    %158 = vmatprep.subr.mxu0 0.0
    %159 = vmatpush1.msra.mxu0 0.0
    %160 = vmatprep.subr.mxu0 0.0
    %161 = vmatpush1.msra.mxu0 0.0
    %162 = vmatprep.subr.mxu0 0.0
    %163 = vmatpush1.msra.mxu0 0.0
    %164 = vmatprep.subr.mxu0 0.0
    %165 = vmatpush1.msra.mxu0 0.0
    %166 = vmatprep.subr.mxu0 0.0
    %167 = vmatpush1.msra.mxu0 0.0
    %168 = vmatprep.subr.mxu0 0.0
    %169 = vmatpush1.msra.mxu0 0.0
    %170 = vmatprep.subr.mxu0 0.0
    %171 = vmatpush1.msra.mxu0 0.0
    %172 = vmatprep.subr.mxu0 0.0
    %173 = vmatpush1.msra.mxu0 0.0
    %174 = vmatprep.subr.mxu0 0.0
    %175 = vmatpush1.msra.mxu0 0.0
    %176 = vmatprep.subr.mxu0 0.0
    %177 = vmatpush1.msra.mxu0 0.0
    %178 = vmatprep.subr.mxu0 0.0
    %179 = vmatpush1.msra.mxu0 0.0
    %180 = vmatprep.subr.mxu0 0.0
    %181 = vmatpush1.msra.mxu0 0.0
    %182 = vmatprep.subr.mxu0 0.0
    %183 = vmatpush1.msra.mxu0 0.0
    %184 = vmatprep.mubr.f32.mxu0 0.0
    %185 = vmatmul.mubr.f32.gmra.mrb[0].mxu0 %v115
    %v186 = vpop.f32.mrb[0].mxu0
    %v187 = vadd.f32 %v111, %v186
    %v188 = vpop.f32.mrb[0].mxu0
    %189 = vmatprep.mubr.f32.mxu0 0.0
    %190 = vmatmul.mubr.f32.gmra.mrb[0].mxu0 %v118
    %v191 = vpop.f32.mrb[0].mxu0
    %v192 = vadd.f32 %v111, %v191
    %v193 = vpop.f32.mrb[0].mxu0
    %194 = vdwg.mxu0
    %v195 = vld [vmem:[#allocation8] sm:$0xff]
    %v196 = vld [vmem:[#allocation8 + $0x8] sm:$0xff]
    %v197 = vld [vmem:[#allocation8 + $0x10] sm:$0xff]
    %v198 = vld [vmem:[#allocation8 + $0x18] sm:$0xff]
    %v199 = vld [vmem:[%s5] sm:$0x1]
    %v201 = vlaneseq
    %v202 = vshrl.u32 %v201, 7
    %v203 = vsub.s32 0, %v202
    %v204 = vrot.slane %v199, %v203
    %v207 = vsel %vm113, %v100, 0
    %v210 = vsel %vm113, %v101, 0
    %212 = vmatprep.subr.mxu0 0.0
    %213 = vmatpush1.msra.mxu0 %v195
    %214 = vmatprep.subr.mxu0 0.0
    %215 = vmatpush1.msra.mxu0 %v196
    %216 = vmatprep.subr.mxu0 0.0
    %217 = vmatpush1.msra.mxu0 %v197
    %218 = vmatprep.subr.mxu0 0.0
    %219 = vmatpush1.msra.mxu0 %v198
    %220 = vmatprep.subr.mxu0 0.0
    %221 = vmatpush1.msra.mxu0 0.0
    %222 = vmatprep.subr.mxu0 0.0
    %223 = vmatpush1.msra.mxu0 0.0
    %224 = vmatprep.subr.mxu0 0.0
    %225 = vmatpush1.msra.mxu0 0.0
    %226 = vmatprep.subr.mxu0 0.0
    %227 = vmatpush1.msra.mxu0 0.0
    %228 = vmatprep.subr.mxu0 0.0
    %229 = vmatpush1.msra.mxu0 0.0
    %230 = vmatprep.subr.mxu0 0.0
    %231 = vmatpush1.msra.mxu0 0.0
    %232 = vmatprep.subr.mxu0 0.0
    %233 = vmatpush1.msra.mxu0 0.0
    %234 = vmatprep.subr.mxu0 0.0
    %235 = vmatpush1.msra.mxu0 0.0
    %236 = vmatprep.subr.mxu0 0.0
    %237 = vmatpush1.msra.mxu0 0.0
    %238 = vmatprep.subr.mxu0 0.0
    %239 = vmatpush1.msra.mxu0 0.0
    %240 = vmatprep.subr.mxu0 0.0
    %241 = vmatpush1.msra.mxu0 0.0
    %242 = vmatprep.subr.mxu0 0.0
    %243 = vmatpush1.msra.mxu0 0.0
    %244 = vmatprep.subr.mxu0 0.0
    %245 = vmatpush1.msra.mxu0 0.0
    %246 = vmatprep.subr.mxu0 0.0
    %247 = vmatpush1.msra.mxu0 0.0
    %248 = vmatprep.subr.mxu0 0.0
    %249 = vmatpush1.msra.mxu0 0.0
    %250 = vmatprep.subr.mxu0 0.0
    %251 = vmatpush1.msra.mxu0 0.0
    %252 = vmatprep.subr.mxu0 0.0
    %253 = vmatpush1.msra.mxu0 0.0
    %254 = vmatprep.subr.mxu0 0.0
    %255 = vmatpush1.msra.mxu0 0.0
    %256 = vmatprep.subr.mxu0 0.0
    %257 = vmatpush1.msra.mxu0 0.0
    %258 = vmatprep.subr.mxu0 0.0
    %259 = vmatpush1.msra.mxu0 0.0
    %260 = vmatprep.subr.mxu0 0.0
    %261 = vmatpush1.msra.mxu0 0.0
    %262 = vmatprep.subr.mxu0 0.0
    %263 = vmatpush1.msra.mxu0 0.0
    %264 = vmatprep.subr.mxu0 0.0
    %265 = vmatpush1.msra.mxu0 0.0
    %266 = vmatprep.subr.mxu0 0.0
    %267 = vmatpush1.msra.mxu0 0.0
    %268 = vmatprep.subr.mxu0 0.0
    %269 = vmatpush1.msra.mxu0 0.0
    %270 = vmatprep.subr.mxu0 0.0
    %271 = vmatpush1.msra.mxu0 0.0
    %272 = vmatprep.subr.mxu0 0.0
    %273 = vmatpush1.msra.mxu0 0.0
    %274 = vmatprep.subr.mxu0 0.0
    %275 = vmatpush1.msra.mxu0 0.0
    %276 = vmatprep.mubr.f32.mxu0 0.0
    %277 = vmatmul.mubr.f32.gmra.mrb[0].mxu0 %v207
    %v278 = vpop.f32.mrb[0].mxu0
    %v279 = vadd.f32 %v204, %v278
    %v280 = vpop.f32.mrb[0].mxu0
    %281 = vmatprep.mubr.f32.mxu0 0.0
    %282 = vmatmul.mubr.f32.gmra.mrb[0].mxu0 %v210
    %v283 = vpop.f32.mrb[0].mxu0
    %v284 = vadd.f32 %v204, %v283
    %v285 = vpop.f32.mrb[0].mxu0
    %286 = vdwg.mxu0
    %v287 = vld [vmem:[#allocation10] sm:$0xff]
    %v288 = vld [vmem:[#allocation10 + $0x8] sm:$0xff]
    %v289 = vld [vmem:[#allocation10 + $0x10] sm:$0xff]
    %v290 = vld [vmem:[#allocation10 + $0x18] sm:$0xff]
    %v291 = vld [vmem:[%s7] sm:$0x1]
    %v293 = vlaneseq
    %v294 = vshrl.u32 %v293, 7
    %v295 = vsub.s32 0, %v294
    %v296 = vrot.slane %v291, %v295
    %298 = vmatprep.subr.mxu0 0.0
    %299 = vmatpush1.msra.mxu0 %v287
    %300 = vmatprep.subr.mxu0 0.0
    %301 = vmatpush1.msra.mxu0 %v288
    %302 = vmatprep.subr.mxu0 0.0
    %303 = vmatpush1.msra.mxu0 %v289
    %304 = vmatprep.subr.mxu0 0.0
    %305 = vmatpush1.msra.mxu0 %v290
    %306 = vmatprep.subr.mxu0 0.0
    %307 = vmatpush1.msra.mxu0 0.0
    %308 = vmatprep.subr.mxu0 0.0
    %309 = vmatpush1.msra.mxu0 0.0
    %310 = vmatprep.subr.mxu0 0.0
    %311 = vmatpush1.msra.mxu0 0.0
    %312 = vmatprep.subr.mxu0 0.0
    %313 = vmatpush1.msra.mxu0 0.0
    %314 = vmatprep.subr.mxu0 0.0
    %315 = vmatpush1.msra.mxu0 0.0
    %316 = vmatprep.subr.mxu0 0.0
    %317 = vmatpush1.msra.mxu0 0.0
    %318 = vmatprep.subr.mxu0 0.0
    %319 = vmatpush1.msra.mxu0 0.0
    %320 = vmatprep.subr.mxu0 0.0
    %321 = vmatpush1.msra.mxu0 0.0
    %322 = vmatprep.subr.mxu0 0.0
    %323 = vmatpush1.msra.mxu0 0.0
    %324 = vmatprep.subr.mxu0 0.0
    %325 = vmatpush1.msra.mxu0 0.0
    %326 = vmatprep.subr.mxu0 0.0
    %327 = vmatpush1.msra.mxu0 0.0
    %328 = vmatprep.subr.mxu0 0.0
    %329 = vmatpush1.msra.mxu0 0.0
    %330 = vmatprep.subr.mxu0 0.0
    %331 = vmatpush1.msra.mxu0 0.0
    %332 = vmatprep.subr.mxu0 0.0
    %333 = vmatpush1.msra.mxu0 0.0
    %334 = vmatprep.subr.mxu0 0.0
    %335 = vmatpush1.msra.mxu0 0.0
    %336 = vmatprep.subr.mxu0 0.0
    %337 = vmatpush1.msra.mxu0 0.0
    %338 = vmatprep.subr.mxu0 0.0
    %339 = vmatpush1.msra.mxu0 0.0
    %340 = vmatprep.subr.mxu0 0.0
    %341 = vmatpush1.msra.mxu0 0.0
    %342 = vmatprep.subr.mxu0 0.0
    %343 = vmatpush1.msra.mxu0 0.0
    %344 = vmatprep.subr.mxu0 0.0
    %345 = vmatpush1.msra.mxu0 0.0
    %346 = vmatprep.subr.mxu0 0.0
    %347 = vmatpush1.msra.mxu0 0.0
    %348 = vmatprep.subr.mxu0 0.0
    %349 = vmatpush1.msra.mxu0 0.0
    %350 = vmatprep.subr.mxu0 0.0
    %351 = vmatpush1.msra.mxu0 0.0
    %352 = vmatprep.subr.mxu0 0.0
    %353 = vmatpush1.msra.mxu0 0.0
    %354 = vmatprep.subr.mxu0 0.0
    %355 = vmatpush1.msra.mxu0 0.0
    %356 = vmatprep.subr.mxu0 0.0
    %357 = vmatpush1.msra.mxu0 0.0
    %358 = vmatprep.subr.mxu0 0.0
    %359 = vmatpush1.msra.mxu0 0.0
    %360 = vmatprep.subr.mxu0 0.0
    %361 = vmatpush1.msra.mxu0 0.0
    %362 = vmatprep.mubr.f32.mxu0 0.0
    %363 = vmatmul.mubr.f32.gmra.mrb[0].mxu0 %v207
    %v364 = vpop.f32.mrb[0].mxu0
    %v365 = vadd.f32 %v296, %v364
    %v366 = vpop.f32.mrb[0].mxu0
    %367 = vmatprep.mubr.f32.mxu0 0.0
    %368 = vmatmul.mubr.f32.gmra.mrb[0].mxu0 %v210
    %v369 = vpop.f32.mrb[0].mxu0
    %v370 = vadd.f32 %v296, %v369
    %v371 = vpop.f32.mrb[0].mxu0
    %372 = vdwg.mxu0
    %v374 = vsel %vm113, %v187, 0
    %v377 = vsel %vm113, %v279, 0
    %379 = vmatprep.subr.mxu0 0.0
    %380 = vmatpush1.xpose.msra.mxu0 %v377
    %381 = vmatprep.subr.mxu0 0.0
    %382 = vmatpush1.xpose.msra.mxu0 0.0
    %383 = vmatprep.subr.mxu0 0.0
    %384 = vmatpush1.xpose.msra.mxu0 0.0
    %385 = vmatprep.subr.mxu0 0.0
    %386 = vmatpush1.xpose.msra.mxu0 0.0
    %387 = vmatprep.subr.mxu0 0.0
    %388 = vmatpush1.xpose.msra.mxu0 0.0
    %389 = vmatprep.subr.mxu0 0.0
    %390 = vmatpush1.xpose.msra.mxu0 0.0
    %391 = vmatprep.subr.mxu0 0.0
    %392 = vmatpush1.xpose.msra.mxu0 0.0
    %393 = vmatprep.subr.mxu0 0.0
    %394 = vmatpush1.xpose.msra.mxu0 0.0
    %395 = vmatprep.subr.mxu0 0.0
    %396 = vmatpush1.xpose.msra.mxu0 0.0
    %397 = vmatprep.subr.mxu0 0.0
    %398 = vmatpush1.xpose.msra.mxu0 0.0
    %399 = vmatprep.subr.mxu0 0.0
    %400 = vmatpush1.xpose.msra.mxu0 0.0
    %401 = vmatprep.subr.mxu0 0.0
    %402 = vmatpush1.xpose.msra.mxu0 0.0
    %403 = vmatprep.subr.mxu0 0.0
    %404 = vmatpush1.xpose.msra.mxu0 0.0
    %405 = vmatprep.subr.mxu0 0.0
    %406 = vmatpush1.xpose.msra.mxu0 0.0
    %407 = vmatprep.subr.mxu0 0.0
    %408 = vmatpush1.xpose.msra.mxu0 0.0
    %409 = vmatprep.subr.mxu0 0.0
    %410 = vmatpush1.xpose.msra.mxu0 0.0
    %411 = vmatprep.subr.mxu0 0.0
    %412 = vmatpush1.xpose.msra.mxu0 0.0
    %413 = vmatprep.subr.mxu0 0.0
    %414 = vmatpush1.xpose.msra.mxu0 0.0
    %415 = vmatprep.subr.mxu0 0.0
    %416 = vmatpush1.xpose.msra.mxu0 0.0
    %417 = vmatprep.subr.mxu0 0.0
    %418 = vmatpush1.xpose.msra.mxu0 0.0
    %419 = vmatprep.subr.mxu0 0.0
    %420 = vmatpush1.xpose.msra.mxu0 0.0
    %421 = vmatprep.subr.mxu0 0.0
    %422 = vmatpush1.xpose.msra.mxu0 0.0
    %423 = vmatprep.subr.mxu0 0.0
    %424 = vmatpush1.xpose.msra.mxu0 0.0
    %425 = vmatprep.subr.mxu0 0.0
    %426 = vmatpush1.xpose.msra.mxu0 0.0
    %427 = vmatprep.subr.mxu0 0.0
    %428 = vmatpush1.xpose.msra.mxu0 0.0
    %429 = vmatprep.subr.mxu0 0.0
    %430 = vmatpush1.xpose.msra.mxu0 0.0
    %431 = vmatprep.subr.mxu0 0.0
    %432 = vmatpush1.xpose.msra.mxu0 0.0
    %433 = vmatprep.subr.mxu0 0.0
    %434 = vmatpush1.xpose.msra.mxu0 0.0
    %435 = vmatprep.subr.mxu0 0.0
    %436 = vmatpush1.xpose.msra.mxu0 0.0
    %437 = vmatprep.subr.mxu0 0.0
    %438 = vmatpush1.xpose.msra.mxu0 0.0
    %439 = vmatprep.subr.mxu0 0.0
    %440 = vmatpush1.xpose.msra.mxu0 0.0
    %441 = vmatprep.subr.mxu0 0.0
    %442 = vmatpush1.xpose.msra.mxu0 0.0
    %443 = vmatprep.mubr.f32.mxu0 0.0
    %444 = vmatmul.mubr.f32.gmra.mrb[0].mxu0 %v374
    %v445 = vpop.f32.mrb[0].mxu0
    %v446 = vadd.f32 0.0, %v445
    %v447 = vpop.f32.mrb[0].mxu0
    %448 = vdwg.mxu0
    %v450 = vsel %vm113, %v192, 0
    %v453 = vsel %vm113, %v284, 0
    %455 = vmatprep.subr.mxu0 0.0
    %456 = vmatpush1.xpose.msra.mxu0 %v453
    %457 = vmatprep.subr.mxu0 0.0
    %458 = vmatpush1.xpose.msra.mxu0 0.0
    %459 = vmatprep.subr.mxu0 0.0
    %460 = vmatpush1.xpose.msra.mxu0 0.0
    %461 = vmatprep.subr.mxu0 0.0
    %462 = vmatpush1.xpose.msra.mxu0 0.0
    %463 = vmatprep.subr.mxu0 0.0
    %464 = vmatpush1.xpose.msra.mxu0 0.0
    %465 = vmatprep.subr.mxu0 0.0
    %466 = vmatpush1.xpose.msra.mxu0 0.0
    %467 = vmatprep.subr.mxu0 0.0
    %468 = vmatpush1.xpose.msra.mxu0 0.0
    %469 = vmatprep.subr.mxu0 0.0
    %470 = vmatpush1.xpose.msra.mxu0 0.0
    %471 = vmatprep.subr.mxu0 0.0
    %472 = vmatpush1.xpose.msra.mxu0 0.0
    %473 = vmatprep.subr.mxu0 0.0
    %474 = vmatpush1.xpose.msra.mxu0 0.0
    %475 = vmatprep.subr.mxu0 0.0
    %476 = vmatpush1.xpose.msra.mxu0 0.0
    %477 = vmatprep.subr.mxu0 0.0
    %478 = vmatpush1.xpose.msra.mxu0 0.0
    %479 = vmatprep.subr.mxu0 0.0
    %480 = vmatpush1.xpose.msra.mxu0 0.0
    %481 = vmatprep.subr.mxu0 0.0
    %482 = vmatpush1.xpose.msra.mxu0 0.0
    %483 = vmatprep.subr.mxu0 0.0
    %484 = vmatpush1.xpose.msra.mxu0 0.0
    %485 = vmatprep.subr.mxu0 0.0
    %486 = vmatpush1.xpose.msra.mxu0 0.0
    %487 = vmatprep.subr.mxu0 0.0
    %488 = vmatpush1.xpose.msra.mxu0 0.0
    %489 = vmatprep.subr.mxu0 0.0
    %490 = vmatpush1.xpose.msra.mxu0 0.0
    %491 = vmatprep.subr.mxu0 0.0
    %492 = vmatpush1.xpose.msra.mxu0 0.0
    %493 = vmatprep.subr.mxu0 0.0
    %494 = vmatpush1.xpose.msra.mxu0 0.0
    %495 = vmatprep.subr.mxu0 0.0
    %496 = vmatpush1.xpose.msra.mxu0 0.0
    %497 = vmatprep.subr.mxu0 0.0
    %498 = vmatpush1.xpose.msra.mxu0 0.0
    %499 = vmatprep.subr.mxu0 0.0
    %500 = vmatpush1.xpose.msra.mxu0 0.0
    %501 = vmatprep.subr.mxu0 0.0
    %502 = vmatpush1.xpose.msra.mxu0 0.0
    %503 = vmatprep.subr.mxu0 0.0
    %504 = vmatpush1.xpose.msra.mxu0 0.0
    %505 = vmatprep.subr.mxu0 0.0
    %506 = vmatpush1.xpose.msra.mxu0 0.0
    %507 = vmatprep.subr.mxu0 0.0
    %508 = vmatpush1.xpose.msra.mxu0 0.0
    %509 = vmatprep.subr.mxu0 0.0
    %510 = vmatpush1.xpose.msra.mxu0 0.0
    %511 = vmatprep.subr.mxu0 0.0
    %512 = vmatpush1.xpose.msra.mxu0 0.0
    %513 = vmatprep.subr.mxu0 0.0
    %514 = vmatpush1.xpose.msra.mxu0 0.0
    %515 = vmatprep.subr.mxu0 0.0
    %516 = vmatpush1.xpose.msra.mxu0 0.0
    %517 = vmatprep.subr.mxu0 0.0
    %518 = vmatpush1.xpose.msra.mxu0 0.0
    %519 = vmatprep.mubr.f32.mxu0 0.0
    %520 = vmatmul.mubr.f32.gmra.mrb[0].mxu0 %v450
    %v521 = vpop.f32.mrb[0].mxu0
    %v522 = vadd.f32 0.0, %v521
    %v523 = vpop.f32.mrb[0].mxu0
    %524 = vdwg.mxu0
    %vm525 = vcmask 64512
    %v526 = vsel %vm525, %v446, -inf
    %527 = vmax.xlane.f32.xlu0 %v526
    %v528 = vpop.xlane.xlu0 %527
    %v529 = vsel %vm525, %v522, -inf
    %530 = vmax.xlane.f32.xlu0 %v529
    %v531 = vpop.xlane.xlu0 %530
    %v532 = vsub.f32 %v446, %v528
    %v533 = vsub.f32 %v522, %v531
    %v534 = vmul.f32 %v532, 1.442695
    %v535 = vpow.pop %v534
    %v536 = vmul.f32 %v533, 1.442695
    %v537 = vpow.pop %v536
    %v538 = vsel %vm525, %v535, 0.0
    %539 = vadd.xlane.f32.xlu0 %v538
    %v540 = vpop.xlane.xlu0 %539
    %v541 = vsel %vm525, %v537, 0.0
    %542 = vadd.xlane.f32.xlu0 %v541
    %v543 = vpop.xlane.xlu0 %542
    %v544 = vrcp.pop %v540
    %v545 = vrcp.pop %v543
    %v546 = vmul.f32 %v540, %v544
    %v547 = vmul.f32 %v543, %v545
    %v548 = vsub.f32 2.0, %v546
    %v549 = vsub.f32 2.0, %v547
    %v550 = vmul.f32 %v544, %v548
    %v551 = vmul.f32 %v545, %v549
    %v552 = vmul.f32 %v540, %v550
    %v553 = vmul.f32 %v543, %v551
    %v554 = vsub.f32 2.0, %v552
    %v555 = vsub.f32 2.0, %v553
    %v556 = vmul.f32 %v550, %v554
    %v557 = vmul.f32 %v551, %v555
    %v558 = vmul.f32 %v535, %v556
    %v559 = vmul.f32 %v537, %v557
    %v561 = vsel %vm525, %v558, 0
    %563 = vmatprep.subr.mxu0 0.0
    %564 = vmatpush1.msra.mxu0 %v365
    %565 = vmatprep.subr.mxu0 0.0
    %566 = vmatpush1.msra.mxu0 0.0
    %567 = vmatprep.subr.mxu0 0.0
    %568 = vmatpush1.msra.mxu0 0.0
    %569 = vmatprep.subr.mxu0 0.0
    %570 = vmatpush1.msra.mxu0 0.0
    %571 = vmatprep.subr.mxu0 0.0
    %572 = vmatpush1.msra.mxu0 0.0
    %573 = vmatprep.subr.mxu0 0.0
    %574 = vmatpush1.msra.mxu0 0.0
    %575 = vmatprep.subr.mxu0 0.0
    %576 = vmatpush1.msra.mxu0 0.0
    %577 = vmatprep.subr.mxu0 0.0
    %578 = vmatpush1.msra.mxu0 0.0
    %579 = vmatprep.subr.mxu0 0.0
    %580 = vmatpush1.msra.mxu0 0.0
    %581 = vmatprep.subr.mxu0 0.0
    %582 = vmatpush1.msra.mxu0 0.0
    %583 = vmatprep.subr.mxu0 0.0
    %584 = vmatpush1.msra.mxu0 0.0
    %585 = vmatprep.subr.mxu0 0.0
    %586 = vmatpush1.msra.mxu0 0.0
    %587 = vmatprep.subr.mxu0 0.0
    %588 = vmatpush1.msra.mxu0 0.0
    %589 = vmatprep.subr.mxu0 0.0
    %590 = vmatpush1.msra.mxu0 0.0
    %591 = vmatprep.subr.mxu0 0.0
    %592 = vmatpush1.msra.mxu0 0.0
    %593 = vmatprep.subr.mxu0 0.0
    %594 = vmatpush1.msra.mxu0 0.0
    %595 = vmatprep.subr.mxu0 0.0
    %596 = vmatpush1.msra.mxu0 0.0
    %597 = vmatprep.subr.mxu0 0.0
    %598 = vmatpush1.msra.mxu0 0.0
    %599 = vmatprep.subr.mxu0 0.0
    %600 = vmatpush1.msra.mxu0 0.0
    %601 = vmatprep.subr.mxu0 0.0
    %602 = vmatpush1.msra.mxu0 0.0
    %603 = vmatprep.subr.mxu0 0.0
    %604 = vmatpush1.msra.mxu0 0.0
    %605 = vmatprep.subr.mxu0 0.0
    %606 = vmatpush1.msra.mxu0 0.0
    %607 = vmatprep.subr.mxu0 0.0
    %608 = vmatpush1.msra.mxu0 0.0
    %609 = vmatprep.subr.mxu0 0.0
    %610 = vmatpush1.msra.mxu0 0.0
    %611 = vmatprep.subr.mxu0 0.0
    %612 = vmatpush1.msra.mxu0 0.0
    %613 = vmatprep.subr.mxu0 0.0
    %614 = vmatpush1.msra.mxu0 0.0
    %615 = vmatprep.subr.mxu0 0.0
    %616 = vmatpush1.msra.mxu0 0.0
    %617 = vmatprep.subr.mxu0 0.0
    %618 = vmatpush1.msra.mxu0 0.0
    %619 = vmatprep.subr.mxu0 0.0
    %620 = vmatpush1.msra.mxu0 0.0
    %621 = vmatprep.subr.mxu0 0.0
    %622 = vmatpush1.msra.mxu0 0.0
    %623 = vmatprep.subr.mxu0 0.0
    %624 = vmatpush1.msra.mxu0 0.0
    %625 = vmatprep.subr.mxu0 0.0
    %626 = vmatpush1.msra.mxu0 0.0
    %627 = vmatprep.mubr.f32.mxu0 0.0
    %628 = vmatmul.mubr.f32.gmra.mrb[0].mxu0 %v561
    %v629 = vpop.f32.mrb[0].mxu0
    %v630 = vadd.f32 0.0, %v629
    %v631 = vpop.f32.mrb[0].mxu0
    %632 = vdwg.mxu0
    %v634 = vsel %vm525, %v559, 0
    %636 = vmatprep.subr.mxu0 0.0
    %637 = vmatpush1.msra.mxu0 %v370
    %638 = vmatprep.subr.mxu0 0.0
    %639 = vmatpush1.msra.mxu0 0.0
    %640 = vmatprep.subr.mxu0 0.0
    %641 = vmatpush1.msra.mxu0 0.0
    %642 = vmatprep.subr.mxu0 0.0
    %643 = vmatpush1.msra.mxu0 0.0
    %644 = vmatprep.subr.mxu0 0.0
    %645 = vmatpush1.msra.mxu0 0.0
    %646 = vmatprep.subr.mxu0 0.0
    %647 = vmatpush1.msra.mxu0 0.0
    %648 = vmatprep.subr.mxu0 0.0
    %649 = vmatpush1.msra.mxu0 0.0
    %650 = vmatprep.subr.mxu0 0.0
    %651 = vmatpush1.msra.mxu0 0.0
    %652 = vmatprep.subr.mxu0 0.0
    %653 = vmatpush1.msra.mxu0 0.0
    %654 = vmatprep.subr.mxu0 0.0
    %655 = vmatpush1.msra.mxu0 0.0
    %656 = vmatprep.subr.mxu0 0.0
    %657 = vmatpush1.msra.mxu0 0.0
    %658 = vmatprep.subr.mxu0 0.0
    %659 = vmatpush1.msra.mxu0 0.0
    %660 = vmatprep.subr.mxu0 0.0
    %661 = vmatpush1.msra.mxu0 0.0
    %662 = vmatprep.subr.mxu0 0.0
    %663 = vmatpush1.msra.mxu0 0.0
    %664 = vmatprep.subr.mxu0 0.0
    %665 = vmatpush1.msra.mxu0 0.0
    %666 = vmatprep.subr.mxu0 0.0
    %667 = vmatpush1.msra.mxu0 0.0
    %668 = vmatprep.subr.mxu0 0.0
    %669 = vmatpush1.msra.mxu0 0.0
    %670 = vmatprep.subr.mxu0 0.0
    %671 = vmatpush1.msra.mxu0 0.0
    %672 = vmatprep.subr.mxu0 0.0
    %673 = vmatpush1.msra.mxu0 0.0
    %674 = vmatprep.subr.mxu0 0.0
    %675 = vmatpush1.msra.mxu0 0.0
    %676 = vmatprep.subr.mxu0 0.0
    %677 = vmatpush1.msra.mxu0 0.0
    %678 = vmatprep.subr.mxu0 0.0
    %679 = vmatpush1.msra.mxu0 0.0
    %680 = vmatprep.subr.mxu0 0.0
    %681 = vmatpush1.msra.mxu0 0.0
    %682 = vmatprep.subr.mxu0 0.0
    %683 = vmatpush1.msra.mxu0 0.0
    %684 = vmatprep.subr.mxu0 0.0
    %685 = vmatpush1.msra.mxu0 0.0
    %686 = vmatprep.subr.mxu0 0.0
    %687 = vmatpush1.msra.mxu0 0.0
    %688 = vmatprep.subr.mxu0 0.0
    %689 = vmatpush1.msra.mxu0 0.0
    %690 = vmatprep.subr.mxu0 0.0
    %691 = vmatpush1.msra.mxu0 0.0
    %692 = vmatprep.subr.mxu0 0.0
    %693 = vmatpush1.msra.mxu0 0.0
    %694 = vmatprep.subr.mxu0 0.0
    %695 = vmatpush1.msra.mxu0 0.0
    %696 = vmatprep.subr.mxu0 0.0
    %697 = vmatpush1.msra.mxu0 0.0
    %698 = vmatprep.subr.mxu0 0.0
    %699 = vmatpush1.msra.mxu0 0.0
    %700 = vmatprep.mubr.f32.mxu0 0.0
    %701 = vmatmul.mubr.f32.gmra.mrb[0].mxu0 %v634
    %v702 = vpop.f32.mrb[0].mxu0
    %v703 = vadd.f32 0.0, %v702
    %v704 = vpop.f32.mrb[0].mxu0
    %705 = vdwg.mxu0
    %v706 = vcombine.high %v630, 0.0
    %v708 = vunpack.c.l.s4 1983009808
    %v709 = vunpack.c.0.s8 %v708
    %v710 = vlaneseq
    %v711 = vshrl.u32 %v710, 7
    %v712 = vsub.s32 %v709, %v711
    %v713 = vrot.slane %v630, %v712
    %v715 = vunpack.c.l.s4 1983009808
    %v716 = vunpack.c.0.s8 %v715
    %v717 = vlaneseq
    %v718 = vshrl.u32 %v717, 7
    %v719 = vsub.s32 %v716, %v718
    %v720 = vrot.slane %v706, %v719
    %v721 = vcombine.high %v703, 0.0
    %v723 = vunpack.c.l.s4 1983009808
    %v724 = vunpack.c.0.s8 %v723
    %v725 = vlaneseq
    %v726 = vshrl.u32 %v725, 7
    %v727 = vsub.s32 %v724, %v726
    %v728 = vrot.slane %v703, %v727
    %v730 = vunpack.c.l.s4 1983009808
    %v731 = vunpack.c.0.s8 %v730
    %v732 = vlaneseq
    %v733 = vshrl.u32 %v732, 7
    %v734 = vsub.s32 %v731, %v733
    %v735 = vrot.slane %v721, %v734
    %v736 = vcombine.low %v713, %v728
    %v737 = vcombine.high %v713, %v728
    %v739 = vunpack.c.l.s4 1934713408
    %v740 = vunpack.c.0.s8 %v739
    %v741 = vlaneseq
    %v742 = vshrl.u32 %v741, 7
    %v743 = vsub.s32 %v740, %v742
    %v744 = vrot.slane %v736, %v743
    %v746 = vunpack.c.l.s4 1934713408
    %v747 = vunpack.c.0.s8 %v746
    %v748 = vlaneseq
    %v749 = vshrl.u32 %v748, 7
    %v750 = vsub.s32 %v747, %v749
    %v751 = vrot.slane %v737, %v750
    %v752 = vcombine.low %v720, %v735
    %v753 = vcombine.high %v720, %v735
    %v755 = vunpack.c.l.s4 1934713408
    %v756 = vunpack.c.0.s8 %v755
    %v757 = vlaneseq
    %v758 = vshrl.u32 %v757, 7
    %v759 = vsub.s32 %v756, %v758
    %v760 = vrot.slane %v752, %v759
    %v762 = vunpack.c.l.s4 1934713408
    %v763 = vunpack.c.0.s8 %v762
    %v764 = vlaneseq
    %v765 = vshrl.u32 %v764, 7
    %v766 = vsub.s32 %v763, %v765
    %v767 = vrot.slane %v753, %v766
    %v768 = vcombine.high %v744, 0.0
    %v769 = vcombine.high %v751, 0.0
    %v770 = vcombine.high %v760, 0.0
    %v771 = vcombine.high %v767, 0.0
    %773 = vrot.lane.b32.xlu0 %v768, 32
    %v774 = vpop.permute.xlu0 %773
    %777 = vrot.lane.b32.xlu0 %v751, 64
    %v778 = vpop.permute.xlu0 %777
    %781 = vrot.lane.b32.xlu0 %v769, 96
    %v782 = vpop.permute.xlu0 %781
    %785 = vrot.lane.b32.xlu0 %v770, 32
    %v786 = vpop.permute.xlu0 %785
    %789 = vrot.lane.b32.xlu0 %v767, 64
    %v790 = vpop.permute.xlu0 %789
    %793 = vrot.lane.b32.xlu0 %v771, 96
    %v794 = vpop.permute.xlu0 %793
    %v796 = vsel %vm113, %v744, %v774
    %vm797 = vcmask 523264
    %v798 = vsel %vm797, %v796, %v778
    %vm799 = vcmask 785408
    %v800 = vsel %vm799, %v798, %v782
    %v801 = vsel %vm113, %v760, %v786
    %v802 = vsel %vm797, %v801, %v790
    %v803 = vsel %vm799, %v802, %v794
    %v806 = vcombine.low %v800, %v803
    %v808 = vunpack.c.l.s4 1983009808
    %v809 = vunpack.c.0.s8 %v808
    %v810 = vlaneseq
    %v811 = vshrl.u32 %v810, 7
    %v812 = vsub.s32 %v809, %v811
    %v813 = vrot.slane %v806, %v812
    %815 = vst [vmem:[#allocation11] sm:$0xf] %v813
    // Predicated region
    $region54: #{tpu_custom_call.1} parent=1 // pred_check
      _
    $region55: #{tpu_custom_call.1} parent=1 // pred_check_branch
      %817 = sbr.rel (0) target = $region57
    $region56: #{tpu_custom_call.1} parent=1 // pred_region
      %s819 = ssub.s32 64, 64
      %820 = vsyncadd [#allocation4], %s819
      %s822 = sshll.u32 [#allocation11], 4
      %s823 = int_to_ptr.vmem [resolvable:$true] %s822
      %825 = dma.vmem_to_hbm [thread:$0]  %s823, 64, %s8, [#allocation4]
    $region57: #{tpu_custom_call.1} parent=1 // pred_fallthru
      _
    // Predicated region
    $region58: #{tpu_custom_call.1} parent=1 // pred_check
      _
    $region59: #{tpu_custom_call.1} parent=1 // pred_check_branch
      %827 = sbr.rel (0) target = $region61
    $region60: #{tpu_custom_call.1} parent=1 // pred_region
      %828 = dma.done [#allocation4], 64
    $region61: #{tpu_custom_call.1} parent=1 // pred_fallthru
      _
    %829 = vsyncpa [#allocation3], 1
    %830 = vsyncpa [#allocation6], 1
    %831 = vsyncpa [#allocation9], 1
    %832 = vsyncpa [#allocation4], 1

// kernel: tpu_custom_call.1
$region0: #{tpu_custom_call.1}
  #allocation0 [shape = 'u32[]', space=smem, size = 0x4, offset = 0x4, fixed_abs, tag = 'smem constant byte address 0x4 - core index']
  #allocation1 [shape = 'u32[144,128]{1,0:T(1,128)}', space=vmem, size = 0x12000, scoped, tag = 'internal scratch']
  %s0 = inlined_call_operand.hbm [shape: f32[2,8,32], index: 0, kind: input, shape index: {}]
  %s1 = inlined_call_operand.hbm [shape: f32[2,8,32], index: 1, kind: input, shape index: {}]
  %s2 = inlined_call_operand.hbm [shape: f32[32,32], index: 2, kind: input, shape index: {}]
  %s3 = inlined_call_operand.vmem [shape: f32[1,32], index: 3, kind: input, shape index: {}]
  %s4 = inlined_call_operand.hbm [shape: f32[32,32], index: 4, kind: input, shape index: {}]
  %s5 = inlined_call_operand.vmem [shape: f32[1,32], index: 5, kind: input, shape index: {}]
  %s6 = inlined_call_operand.hbm [shape: f32[32,32], index: 6, kind: input, shape index: {}]
  %s7 = inlined_call_operand.vmem [shape: f32[1,32], index: 7, kind: input, shape index: {}]
  %s8 = inlined_call_operand.hbm [shape: f32[2,8,32], index: 8, kind: output, shape index: {}]
  %s9 = sld [smem:[#allocation0]]
  $region62: #{tpu_custom_call.1} parent=0
    _
  %s11 = ssub.s32 1, %s9
  %s12 = scalar_select 0, %s11, %s9
  $region1: #{tpu_custom_call.1} parent=0
    #allocation2 [shape = 'u8[8192]{0}', space=vmem, size = 0x2000, scoped, tag = 'input window, operand 0, single buffered']
    #allocation3 [shape = 's32[1]{0}', space=sflag, size = 0x4, scoped, tag = 'scoped memory for tpu_custom_call.1']
    #allocation4 [shape = 's32[1]{0}', space=sflag, size = 0x4, scoped, tag = 'scoped memory for tpu_custom_call.1']
    #allocation5 [shape = 'u8[8192]{0}', space=vmem, size = 0x2000, scoped, tag = 'input window, operand 1, single buffered']
    #allocation6 [shape = 's32[1]{0}', space=sflag, size = 0x4, scoped, tag = 'scoped memory for tpu_custom_call.1']
    #allocation7 [shape = 'u8[16384]{0}', space=vmem, size = 0x4000, scoped, tag = 'input window, operand 2, single buffered']
    #allocation8 [shape = 'u8[16384]{0}', space=vmem, size = 0x4000, scoped, tag = 'input window, operand 4, single buffered']
    #allocation9 [shape = 's32[1]{0}', space=sflag, size = 0x4, scoped, tag = 'scoped memory for tpu_custom_call.1']
    #allocation10 [shape = 'u8[16384]{0}', space=vmem, size = 0x4000, scoped, tag = 'input window, operand 6, single buffered']
    #allocation11 [shape = 'u8[8192]{0}', space=vmem, size = 0x2000, scoped, tag = 'output window, operand 0, single buffered']
    %13 = vsyncpa [#allocation3], 0
    %14 = vsyncpa [#allocation6], 0
    %15 = vsyncpa [#allocation9], 0
    %16 = vsyncpa [#allocation4], 0
    // Predicated region
    $region2: #{tpu_custom_call.1} parent=1 // pred_check
      _
    $region3: #{tpu_custom_call.1} parent=1 // pred_check_branch
      %18 = sbr.rel (0) target = $region5
    $region4: #{tpu_custom_call.1} parent=1 // pred_region
      %s20 = ssub.s32 256, 256
      %21 = vsyncadd [#allocation3], %s20
      %s22 = sshll.u32 [#allocation2], 4
      %s23 = int_to_ptr.vmem [resolvable:$true] %s22
      %28 = dma.hbm_to_vmem [thread:$0]  %s0, 256, %s23, [#allocation3], 128, 128, 8
    $region5: #{tpu_custom_call.1} parent=1 // pred_fallthru
      _
    // Predicated region
    $region6: #{tpu_custom_call.1} parent=1 // pred_check
      _
    $region7: #{tpu_custom_call.1} parent=1 // pred_check_branch
      %30 = sbr.rel (0) target = $region9
    $region8: #{tpu_custom_call.1} parent=1 // pred_region
      %s32 = ssub.s32 256, 256
      %33 = vsyncadd [#allocation6], %s32
      %s34 = sshll.u32 [#allocation5], 4
      %s35 = int_to_ptr.vmem [resolvable:$true] %s34
      %40 = dma.hbm_to_vmem [thread:$0]  %s1, 256, %s35, [#allocation6], 128, 128, 8
    $region9: #{tpu_custom_call.1} parent=1 // pred_fallthru
      _
    // Predicated region
    $region10: #{tpu_custom_call.1} parent=1 // pred_check
      _
    $region11: #{tpu_custom_call.1} parent=1 // pred_check_branch
      %42 = sbr.rel (0) target = $region13
    $region12: #{tpu_custom_call.1} parent=1 // pred_region
      %s44 = ssub.s32 512, 512
      %45 = vsyncadd [#allocation6], %s44
      %s46 = sshll.u32 [#allocation7], 4
      %s47 = int_to_ptr.vmem [resolvable:$true] %s46
      %52 = dma.hbm_to_vmem [thread:$0]  %s2, 512, %s47, [#allocation6], 128, 128, 8
    $region13: #{tpu_custom_call.1} parent=1 // pred_fallthru
      _
    // Predicated region
    $region14: #{tpu_custom_call.1} parent=1 // pred_check
      _
    $region15: #{tpu_custom_call.1} parent=1 // pred_check_branch
      %54 = sbr.rel (0) target = $region17
    $region16: #{tpu_custom_call.1} parent=1 // pred_region
      _
    $region17: #{tpu_custom_call.1} parent=1 // pred_fallthru
      _
    // Predicated region
    $region18: #{tpu_custom_call.1} parent=1 // pred_check
      _
    $region19: #{tpu_custom_call.1} parent=1 // pred_check_branch
      %56 = sbr.rel (0) target = $region21
    $region20: #{tpu_custom_call.1} parent=1 // pred_region
      %s58 = ssub.s32 512, 512
      %59 = vsyncadd [#allocation9], %s58
      %s60 = sshll.u32 [#allocation8], 4
      %s61 = int_to_ptr.vmem [resolvable:$true] %s60
      %66 = dma.hbm_to_vmem [thread:$0]  %s4, 512, %s61, [#allocation9], 128, 128, 8
    $region21: #{tpu_custom_call.1} parent=1 // pred_fallthru
      _
    // Predicated region
    $region22: #{tpu_custom_call.1} parent=1 // pred_check
      _
    $region23: #{tpu_custom_call.1} parent=1 // pred_check_branch
      %68 = sbr.rel (0) target = $region25
    $region24: #{tpu_custom_call.1} parent=1 // pred_region
      _
    $region25: #{tpu_custom_call.1} parent=1 // pred_fallthru
      _
    // Predicated region
    $region26: #{tpu_custom_call.1} parent=1 // pred_check
      _
    $region27: #{tpu_custom_call.1} parent=1 // pred_check_branch
      %70 = sbr.rel (0) target = $region29
    $region28: #{tpu_custom_call.1} parent=1 // pred_region
      %s72 = ssub.s32 512, 512
      %73 = vsyncadd [#allocation9], %s72
      %s74 = sshll.u32 [#allocation10], 4
      %s75 = int_to_ptr.vmem [resolvable:$true] %s74
      %80 = dma.hbm_to_vmem [thread:$0]  %s6, 512, %s75, [#allocation9], 128, 128, 8
    $region29: #{tpu_custom_call.1} parent=1 // pred_fallthru
      _
    // Predicated region
    $region30: #{tpu_custom_call.1} parent=1 // pred_check
      _
    $region31: #{tpu_custom_call.1} parent=1 // pred_check_branch
      %82 = sbr.rel (0) target = $region33
    $region32: #{tpu_custom_call.1} parent=1 // pred_region
      _
    $region33: #{tpu_custom_call.1} parent=1 // pred_fallthru
      _
    // Predicated region
    $region34: #{tpu_custom_call.1} parent=1 // pred_check
      _
    $region35: #{tpu_custom_call.1} parent=1 // pred_check_branch
      %84 = sbr.rel (0) target = $region37
    $region36: #{tpu_custom_call.1} parent=1 // pred_region
      %85 = dma.done [#allocation3], 256
    $region37: #{tpu_custom_call.1} parent=1 // pred_fallthru
      _
    // Predicated region
    $region38: #{tpu_custom_call.1} parent=1 // pred_check
      _
    $region39: #{tpu_custom_call.1} parent=1 // pred_check_branch
      %87 = sbr.rel (0) target = $region41
    $region40: #{tpu_custom_call.1} parent=1 // pred_region
      %88 = dma.done [#allocation6], 256
    $region41: #{tpu_custom_call.1} parent=1 // pred_fallthru
      _
    // Predicated region
    $region42: #{tpu_custom_call.1} parent=1 // pred_check
      _
    $region43: #{tpu_custom_call.1} parent=1 // pred_check_branch
      %90 = sbr.rel (0) target = $region45
    $region44: #{tpu_custom_call.1} parent=1 // pred_region
      %91 = dma.done [#allocation6], 512
    $region45: #{tpu_custom_call.1} parent=1 // pred_fallthru
      _
    // Predicated region
    $region46: #{tpu_custom_call.1} parent=1 // pred_check
      _
    $region47: #{tpu_custom_call.1} parent=1 // pred_check_branch
      %93 = sbr.rel (0) target = $region49
    $region48: #{tpu_custom_call.1} parent=1 // pred_region
      %94 = dma.done [#allocation9], 512
    $region49: #{tpu_custom_call.1} parent=1 // pred_fallthru
      _
    // Predicated region
    $region50: #{tpu_custom_call.1} parent=1 // pred_check
      _
    $region51: #{tpu_custom_call.1} parent=1 // pred_check_branch
      %96 = sbr.rel (0) target = $region53
    $region52: #{tpu_custom_call.1} parent=1 // pred_region
      %97 = dma.done [#allocation9], 512
    $region53: #{tpu_custom_call.1} parent=1 // pred_fallthru
      _
    %v98 = vld [vmem:[#allocation2] sm:$0xff]
    %v99 = vld [vmem:[#allocation2 + $0x8] sm:$0xff]
    %v100 = vld [vmem:[#allocation5] sm:$0xff]
    %v101 = vld [vmem:[#allocation5 + $0x8] sm:$0xff]
    %v102 = vld [vmem:[#allocation7] sm:$0xff]
    %v103 = vld [vmem:[#allocation7 + $0x8] sm:$0xff]
    %v104 = vld [vmem:[#allocation7 + $0x10] sm:$0xff]
    %v105 = vld [vmem:[#allocation7 + $0x18] sm:$0xff]
    %v106 = vld [vmem:[%s3] sm:$0x1]
    %v108 = vlaneseq
    %v109 = vshrl.u32 %v108, 7
    %v110 = vsub.s32 0, %v109
    %v111 = vrot.slane %v106, %v110
    %vm113 = vcmask 261120
    %v115 = vsel %vm113, %v98, 0
    %v118 = vsel %vm113, %v99, 0
    %120 = vmatprep.subr.mxu0 0.0
    %121 = vmatpush1.msra.mxu0 %v102
    %122 = vmatprep.subr.mxu0 0.0
    %123 = vmatpush1.msra.mxu0 %v103
    %124 = vmatprep.subr.mxu0 0.0
    %125 = vmatpush1.msra.mxu0 %v104
    %126 = vmatprep.subr.mxu0 0.0
    %127 = vmatpush1.msra.mxu0 %v105
    %128 = vmatprep.subr.mxu0 0.0
    %129 = vmatpush1.msra.mxu0 0.0
    %130 = vmatprep.subr.mxu0 0.0
    %131 = vmatpush1.msra.mxu0 0.0
    %132 = vmatprep.subr.mxu0 0.0
    %133 = vmatpush1.msra.mxu0 0.0
    %134 = vmatprep.subr.mxu0 0.0
    %135 = vmatpush1.msra.mxu0 0.0
    %136 = vmatprep.subr.mxu0 0.0
    %137 = vmatpush1.msra.mxu0 0.0
    %138 = vmatprep.subr.mxu0 0.0
    %139 = vmatpush1.msra.mxu0 0.0
    %140 = vmatprep.subr.mxu0 0.0
    %141 = vmatpush1.msra.mxu0 0.0
    %142 = vmatprep.subr.mxu0 0.0
    %143 = vmatpush1.msra.mxu0 0.0
    %144 = vmatprep.subr.mxu0 0.0
    %145 = vmatpush1.msra.mxu0 0.0
    %146 = vmatprep.subr.mxu0 0.0
    %147 = vmatpush1.msra.mxu0 0.0
    %148 = vmatprep.subr.mxu0 0.0
    %149 = vmatpush1.msra.mxu0 0.0
    %150 = vmatprep.subr.mxu0 0.0
    %151 = vmatpush1.msra.mxu0 0.0
    %152 = vmatprep.subr.mxu0 0.0
    %153 = vmatpush1.msra.mxu0 0.0
    %154 = vmatprep.subr.mxu0 0.0
    %155 = vmatpush1.msra.mxu0 0.0
    %156 = vmatprep.subr.mxu0 0.0
    %157 = vmatpush1.msra.mxu0 0.0
    %158 = vmatprep.subr.mxu0 0.0
    %159 = vmatpush1.msra.mxu0 0.0
    %160 = vmatprep.subr.mxu0 0.0
    %161 = vmatpush1.msra.mxu0 0.0
    %162 = vmatprep.subr.mxu0 0.0
    %163 = vmatpush1.msra.mxu0 0.0
    %164 = vmatprep.subr.mxu0 0.0
    %165 = vmatpush1.msra.mxu0 0.0
    %166 = vmatprep.subr.mxu0 0.0
    %167 = vmatpush1.msra.mxu0 0.0
    %168 = vmatprep.subr.mxu0 0.0
    %169 = vmatpush1.msra.mxu0 0.0
    %170 = vmatprep.subr.mxu0 0.0
    %171 = vmatpush1.msra.mxu0 0.0
    %172 = vmatprep.subr.mxu0 0.0
    %173 = vmatpush1.msra.mxu0 0.0
    %174 = vmatprep.subr.mxu0 0.0
    %175 = vmatpush1.msra.mxu0 0.0
    %176 = vmatprep.subr.mxu0 0.0
    %177 = vmatpush1.msra.mxu0 0.0
    %178 = vmatprep.subr.mxu0 0.0
    %179 = vmatpush1.msra.mxu0 0.0
    %180 = vmatprep.subr.mxu0 0.0
    %181 = vmatpush1.msra.mxu0 0.0
    %182 = vmatprep.subr.mxu0 0.0
    %183 = vmatpush1.msra.mxu0 0.0
    %184 = vmatprep.mubr.f32.mxu0 0.0
    %185 = vmatmul.mubr.f32.gmra.mrb[0].mxu0 %v115
    %v186 = vpop.f32.mrb[0].mxu0
    %v187 = vadd.f32 %v111, %v186
    %v188 = vpop.f32.mrb[0].mxu0
    %189 = vmatprep.mubr.f32.mxu0 0.0
    %190 = vmatmul.mubr.f32.gmra.mrb[0].mxu0 %v118
    %v191 = vpop.f32.mrb[0].mxu0
    %v192 = vadd.f32 %v111, %v191
    %v193 = vpop.f32.mrb[0].mxu0
    %194 = vdwg.mxu0
    %v195 = vld [vmem:[#allocation8] sm:$0xff]
    %v196 = vld [vmem:[#allocation8 + $0x8] sm:$0xff]
    %v197 = vld [vmem:[#allocation8 + $0x10] sm:$0xff]
    %v198 = vld [vmem:[#allocation8 + $0x18] sm:$0xff]
    %v199 = vld [vmem:[%s5] sm:$0x1]
    %v201 = vlaneseq
    %v202 = vshrl.u32 %v201, 7
    %v203 = vsub.s32 0, %v202
    %v204 = vrot.slane %v199, %v203
    %v207 = vsel %vm113, %v100, 0
    %v210 = vsel %vm113, %v101, 0
    %212 = vmatprep.subr.mxu0 0.0
    %213 = vmatpush1.msra.mxu0 %v195
    %214 = vmatprep.subr.mxu0 0.0
    %215 = vmatpush1.msra.mxu0 %v196
    %216 = vmatprep.subr.mxu0 0.0
    %217 = vmatpush1.msra.mxu0 %v197
    %218 = vmatprep.subr.mxu0 0.0
    %219 = vmatpush1.msra.mxu0 %v198
    %220 = vmatprep.subr.mxu0 0.0
    %221 = vmatpush1.msra.mxu0 0.0
    %222 = vmatprep.subr.mxu0 0.0
    %223 = vmatpush1.msra.mxu0 0.0
    %224 = vmatprep.subr.mxu0 0.0
    %225 = vmatpush1.msra.mxu0 0.0
    %226 = vmatprep.subr.mxu0 0.0
    %227 = vmatpush1.msra.mxu0 0.0
    %228 = vmatprep.subr.mxu0 0.0
    %229 = vmatpush1.msra.mxu0 0.0
    %230 = vmatprep.subr.mxu0 0.0
    %231 = vmatpush1.msra.mxu0 0.0
    %232 = vmatprep.subr.mxu0 0.0
    %233 = vmatpush1.msra.mxu0 0.0
    %234 = vmatprep.subr.mxu0 0.0
    %235 = vmatpush1.msra.mxu0 0.0
    %236 = vmatprep.subr.mxu0 0.0
    %237 = vmatpush1.msra.mxu0 0.0
    %238 = vmatprep.subr.mxu0 0.0
    %239 = vmatpush1.msra.mxu0 0.0
    %240 = vmatprep.subr.mxu0 0.0
    %241 = vmatpush1.msra.mxu0 0.0
    %242 = vmatprep.subr.mxu0 0.0
    %243 = vmatpush1.msra.mxu0 0.0
    %244 = vmatprep.subr.mxu0 0.0
    %245 = vmatpush1.msra.mxu0 0.0
    %246 = vmatprep.subr.mxu0 0.0
    %247 = vmatpush1.msra.mxu0 0.0
    %248 = vmatprep.subr.mxu0 0.0
    %249 = vmatpush1.msra.mxu0 0.0
    %250 = vmatprep.subr.mxu0 0.0
    %251 = vmatpush1.msra.mxu0 0.0
    %252 = vmatprep.subr.mxu0 0.0
    %253 = vmatpush1.msra.mxu0 0.0
    %254 = vmatprep.subr.mxu0 0.0
    %255 = vmatpush1.msra.mxu0 0.0
    %256 = vmatprep.subr.mxu0 0.0
    %257 = vmatpush1.msra.mxu0 0.0
    %258 = vmatprep.subr.mxu0 0.0
    %259 = vmatpush1.msra.mxu0 0.0
    %260 = vmatprep.subr.mxu0 0.0
    %261 = vmatpush1.msra.mxu0 0.0
    %262 = vmatprep.subr.mxu0 0.0
    %263 = vmatpush1.msra.mxu0 0.0
    %264 = vmatprep.subr.mxu0 0.0
    %265 = vmatpush1.msra.mxu0 0.0
    %266 = vmatprep.subr.mxu0 0.0
    %267 = vmatpush1.msra.mxu0 0.0
    %268 = vmatprep.subr.mxu0 0.0
    %269 = vmatpush1.msra.mxu0 0.0
    %270 = vmatprep.subr.mxu0 0.0
    %271 = vmatpush1.msra.mxu0 0.0
    %272 = vmatprep.subr.mxu0 0.0
    %273 = vmatpush1.msra.mxu0 0.0
    %274 = vmatprep.subr.mxu0 0.0
    %275 = vmatpush1.msra.mxu0 0.0
    %276 = vmatprep.mubr.f32.mxu0 0.0
    %277 = vmatmul.mubr.f32.gmra.mrb[0].mxu0 %v207
    %v278 = vpop.f32.mrb[0].mxu0
    %v279 = vadd.f32 %v204, %v278
    %v280 = vpop.f32.mrb[0].mxu0
    %281 = vmatprep.mubr.f32.mxu0 0.0
    %282 = vmatmul.mubr.f32.gmra.mrb[0].mxu0 %v210
    %v283 = vpop.f32.mrb[0].mxu0
    %v284 = vadd.f32 %v204, %v283
    %v285 = vpop.f32.mrb[0].mxu0
    %286 = vdwg.mxu0
    %v287 = vld [vmem:[#allocation10] sm:$0xff]
    %v288 = vld [vmem:[#allocation10 + $0x8] sm:$0xff]
    %v289 = vld [vmem:[#allocation10 + $0x10] sm:$0xff]
    %v290 = vld [vmem:[#allocation10 + $0x18] sm:$0xff]
    %v291 = vld [vmem:[%s7] sm:$0x1]
    %v293 = vlaneseq
    %v294 = vshrl.u32 %v293, 7
    %v295 = vsub.s32 0, %v294
    %v296 = vrot.slane %v291, %v295
    %298 = vmatprep.subr.mxu0 0.0
    %299 = vmatpush1.msra.mxu0 %v287
    %300 = vmatprep.subr.mxu0 0.0
    %301 = vmatpush1.msra.mxu0 %v288
    %302 = vmatprep.subr.mxu0 0.0
    %303 = vmatpush1.msra.mxu0 %v289
    %304 = vmatprep.subr.mxu0 0.0
    %305 = vmatpush1.msra.mxu0 %v290
    %306 = vmatprep.subr.mxu0 0.0
    %307 = vmatpush1.msra.mxu0 0.0
    %308 = vmatprep.subr.mxu0 0.0
    %309 = vmatpush1.msra.mxu0 0.0
    %310 = vmatprep.subr.mxu0 0.0
    %311 = vmatpush1.msra.mxu0 0.0
    %312 = vmatprep.subr.mxu0 0.0
    %313 = vmatpush1.msra.mxu0 0.0
    %314 = vmatprep.subr.mxu0 0.0
    %315 = vmatpush1.msra.mxu0 0.0
    %316 = vmatprep.subr.mxu0 0.0
    %317 = vmatpush1.msra.mxu0 0.0
    %318 = vmatprep.subr.mxu0 0.0
    %319 = vmatpush1.msra.mxu0 0.0
    %320 = vmatprep.subr.mxu0 0.0
    %321 = vmatpush1.msra.mxu0 0.0
    %322 = vmatprep.subr.mxu0 0.0
    %323 = vmatpush1.msra.mxu0 0.0
    %324 = vmatprep.subr.mxu0 0.0
    %325 = vmatpush1.msra.mxu0 0.0
    %326 = vmatprep.subr.mxu0 0.0
    %327 = vmatpush1.msra.mxu0 0.0
    %328 = vmatprep.subr.mxu0 0.0
    %329 = vmatpush1.msra.mxu0 0.0
    %330 = vmatprep.subr.mxu0 0.0
    %331 = vmatpush1.msra.mxu0 0.0
    %332 = vmatprep.subr.mxu0 0.0
    %333 = vmatpush1.msra.mxu0 0.0
    %334 = vmatprep.subr.mxu0 0.0
    %335 = vmatpush1.msra.mxu0 0.0
    %336 = vmatprep.subr.mxu0 0.0
    %337 = vmatpush1.msra.mxu0 0.0
    %338 = vmatprep.subr.mxu0 0.0
    %339 = vmatpush1.msra.mxu0 0.0
    %340 = vmatprep.subr.mxu0 0.0
    %341 = vmatpush1.msra.mxu0 0.0
    %342 = vmatprep.subr.mxu0 0.0
    %343 = vmatpush1.msra.mxu0 0.0
    %344 = vmatprep.subr.mxu0 0.0
    %345 = vmatpush1.msra.mxu0 0.0
    %346 = vmatprep.subr.mxu0 0.0
    %347 = vmatpush1.msra.mxu0 0.0
    %348 = vmatprep.subr.mxu0 0.0
    %349 = vmatpush1.msra.mxu0 0.0
    %350 = vmatprep.subr.mxu0 0.0
    %351 = vmatpush1.msra.mxu0 0.0
    %352 = vmatprep.subr.mxu0 0.0
    %353 = vmatpush1.msra.mxu0 0.0
    %354 = vmatprep.subr.mxu0 0.0
    %355 = vmatpush1.msra.mxu0 0.0
    %356 = vmatprep.subr.mxu0 0.0
    %357 = vmatpush1.msra.mxu0 0.0
    %358 = vmatprep.subr.mxu0 0.0
    %359 = vmatpush1.msra.mxu0 0.0
    %360 = vmatprep.subr.mxu0 0.0
    %361 = vmatpush1.msra.mxu0 0.0
    %362 = vmatprep.mubr.f32.mxu0 0.0
    %363 = vmatmul.mubr.f32.gmra.mrb[0].mxu0 %v207
    %v364 = vpop.f32.mrb[0].mxu0
    %v365 = vadd.f32 %v296, %v364
    %v366 = vpop.f32.mrb[0].mxu0
    %367 = vmatprep.mubr.f32.mxu0 0.0
    %368 = vmatmul.mubr.f32.gmra.mrb[0].mxu0 %v210
    %v369 = vpop.f32.mrb[0].mxu0
    %v370 = vadd.f32 %v296, %v369
    %v371 = vpop.f32.mrb[0].mxu0
    %372 = vdwg.mxu0
    %v374 = vsel %vm113, %v187, 0
    %v377 = vsel %vm113, %v279, 0
    %379 = vmatprep.subr.mxu0 0.0
    %380 = vmatpush1.xpose.msra.mxu0 %v377
    %381 = vmatprep.subr.mxu0 0.0
    %382 = vmatpush1.xpose.msra.mxu0 0.0
    %383 = vmatprep.subr.mxu0 0.0
    %384 = vmatpush1.xpose.msra.mxu0 0.0
    %385 = vmatprep.subr.mxu0 0.0
    %386 = vmatpush1.xpose.msra.mxu0 0.0
    %387 = vmatprep.subr.mxu0 0.0
    %388 = vmatpush1.xpose.msra.mxu0 0.0
    %389 = vmatprep.subr.mxu0 0.0
    %390 = vmatpush1.xpose.msra.mxu0 0.0
    %391 = vmatprep.subr.mxu0 0.0
    %392 = vmatpush1.xpose.msra.mxu0 0.0
    %393 = vmatprep.subr.mxu0 0.0
    %394 = vmatpush1.xpose.msra.mxu0 0.0
    %395 = vmatprep.subr.mxu0 0.0
    %396 = vmatpush1.xpose.msra.mxu0 0.0
    %397 = vmatprep.subr.mxu0 0.0
    %398 = vmatpush1.xpose.msra.mxu0 0.0
    %399 = vmatprep.subr.mxu0 0.0
    %400 = vmatpush1.xpose.msra.mxu0 0.0
    %401 = vmatprep.subr.mxu0 0.0
    %402 = vmatpush1.xpose.msra.mxu0 0.0
    %403 = vmatprep.subr.mxu0 0.0
    %404 = vmatpush1.xpose.msra.mxu0 0.0
    %405 = vmatprep.subr.mxu0 0.0
    %406 = vmatpush1.xpose.msra.mxu0 0.0
    %407 = vmatprep.subr.mxu0 0.0
    %408 = vmatpush1.xpose.msra.mxu0 0.0
    %409 = vmatprep.subr.mxu0 0.0
    %410 = vmatpush1.xpose.msra.mxu0 0.0
    %411 = vmatprep.subr.mxu0 0.0
    %412 = vmatpush1.xpose.msra.mxu0 0.0
    %413 = vmatprep.subr.mxu0 0.0
    %414 = vmatpush1.xpose.msra.mxu0 0.0
    %415 = vmatprep.subr.mxu0 0.0
    %416 = vmatpush1.xpose.msra.mxu0 0.0
    %417 = vmatprep.subr.mxu0 0.0
    %418 = vmatpush1.xpose.msra.mxu0 0.0
    %419 = vmatprep.subr.mxu0 0.0
    %420 = vmatpush1.xpose.msra.mxu0 0.0
    %421 = vmatprep.subr.mxu0 0.0
    %422 = vmatpush1.xpose.msra.mxu0 0.0
    %423 = vmatprep.subr.mxu0 0.0
    %424 = vmatpush1.xpose.msra.mxu0 0.0
    %425 = vmatprep.subr.mxu0 0.0
    %426 = vmatpush1.xpose.msra.mxu0 0.0
    %427 = vmatprep.subr.mxu0 0.0
    %428 = vmatpush1.xpose.msra.mxu0 0.0
    %429 = vmatprep.subr.mxu0 0.0
    %430 = vmatpush1.xpose.msra.mxu0 0.0
    %431 = vmatprep.subr.mxu0 0.0
    %432 = vmatpush1.xpose.msra.mxu0 0.0
    %433 = vmatprep.subr.mxu0 0.0
    %434 = vmatpush1.xpose.msra.mxu0 0.0
    %435 = vmatprep.subr.mxu0 0.0
    %436 = vmatpush1.xpose.msra.mxu0 0.0
    %437 = vmatprep.subr.mxu0 0.0
    %438 = vmatpush1.xpose.msra.mxu0 0.0
    %439 = vmatprep.subr.mxu0 0.0
    %440 = vmatpush1.xpose.msra.mxu0 0.0
    %441 = vmatprep.subr.mxu0 0.0
    %442 = vmatpush1.xpose.msra.mxu0 0.0
    %443 = vmatprep.mubr.f32.mxu0 0.0
    %444 = vmatmul.mubr.f32.gmra.mrb[0].mxu0 %v374
    %v445 = vpop.f32.mrb[0].mxu0
    %v446 = vadd.f32 0.0, %v445
    %v447 = vpop.f32.mrb[0].mxu0
    %448 = vdwg.mxu0
    %v450 = vsel %vm113, %v192, 0
    %v453 = vsel %vm113, %v284, 0
    %455 = vmatprep.subr.mxu0 0.0
    %456 = vmatpush1.xpose.msra.mxu0 %v453
    %457 = vmatprep.subr.mxu0 0.0
    %458 = vmatpush1.xpose.msra.mxu0 0.0
    %459 = vmatprep.subr.mxu0 0.0
    %460 = vmatpush1.xpose.msra.mxu0 0.0
    %461 = vmatprep.subr.mxu0 0.0
    %462 = vmatpush1.xpose.msra.mxu0 0.0
    %463 = vmatprep.subr.mxu0 0.0
    %464 = vmatpush1.xpose.msra.mxu0 0.0
    %465 = vmatprep.subr.mxu0 0.0
    %466 = vmatpush1.xpose.msra.mxu0 0.0
    %467 = vmatprep.subr.mxu0 0.0
    %468 = vmatpush1.xpose.msra.mxu0 0.0
    %469 = vmatprep.subr.mxu0 0.0
    %470 = vmatpush1.xpose.msra.mxu0 0.0
    %471 = vmatprep.subr.mxu0 0.0
    %472 = vmatpush1.xpose.msra.mxu0 0.0
    %473 = vmatprep.subr.mxu0 0.0
    %474 = vmatpush1.xpose.msra.mxu0 0.0
    %475 = vmatprep.subr.mxu0 0.0
    %476 = vmatpush1.xpose.msra.mxu0 0.0
    %477 = vmatprep.subr.mxu0 0.0
    %478 = vmatpush1.xpose.msra.mxu0 0.0
    %479 = vmatprep.subr.mxu0 0.0
    %480 = vmatpush1.xpose.msra.mxu0 0.0
    %481 = vmatprep.subr.mxu0 0.0
    %482 = vmatpush1.xpose.msra.mxu0 0.0
    %483 = vmatprep.subr.mxu0 0.0
    %484 = vmatpush1.xpose.msra.mxu0 0.0
    %485 = vmatprep.subr.mxu0 0.0
    %486 = vmatpush1.xpose.msra.mxu0 0.0
    %487 = vmatprep.subr.mxu0 0.0
    %488 = vmatpush1.xpose.msra.mxu0 0.0
    %489 = vmatprep.subr.mxu0 0.0
    %490 = vmatpush1.xpose.msra.mxu0 0.0
    %491 = vmatprep.subr.mxu0 0.0
    %492 = vmatpush1.xpose.msra.mxu0 0.0
    %493 = vmatprep.subr.mxu0 0.0
    %494 = vmatpush1.xpose.msra.mxu0 0.0
    %495 = vmatprep.subr.mxu0 0.0
    %496 = vmatpush1.xpose.msra.mxu0 0.0
    %497 = vmatprep.subr.mxu0 0.0
    %498 = vmatpush1.xpose.msra.mxu0 0.0
    %499 = vmatprep.subr.mxu0 0.0
    %500 = vmatpush1.xpose.msra.mxu0 0.0
    %501 = vmatprep.subr.mxu0 0.0
    %502 = vmatpush1.xpose.msra.mxu0 0.0
    %503 = vmatprep.subr.mxu0 0.0
    %504 = vmatpush1.xpose.msra.mxu0 0.0
    %505 = vmatprep.subr.mxu0 0.0
    %506 = vmatpush1.xpose.msra.mxu0 0.0
    %507 = vmatprep.subr.mxu0 0.0
    %508 = vmatpush1.xpose.msra.mxu0 0.0
    %509 = vmatprep.subr.mxu0 0.0
    %510 = vmatpush1.xpose.msra.mxu0 0.0
    %511 = vmatprep.subr.mxu0 0.0
    %512 = vmatpush1.xpose.msra.mxu0 0.0
    %513 = vmatprep.subr.mxu0 0.0
    %514 = vmatpush1.xpose.msra.mxu0 0.0
    %515 = vmatprep.subr.mxu0 0.0
    %516 = vmatpush1.xpose.msra.mxu0 0.0
    %517 = vmatprep.subr.mxu0 0.0
    %518 = vmatpush1.xpose.msra.mxu0 0.0
    %519 = vmatprep.mubr.f32.mxu0 0.0
    %520 = vmatmul.mubr.f32.gmra.mrb[0].mxu0 %v450
    %v521 = vpop.f32.mrb[0].mxu0
    %v522 = vadd.f32 0.0, %v521
    %v523 = vpop.f32.mrb[0].mxu0
    %524 = vdwg.mxu0
    %vm525 = vcmask 64512
    %v526 = vsel %vm525, %v446, -inf
    %527 = vmax.xlane.f32.xlu0 %v526
    %v528 = vpop.xlane.xlu0 %527
    %v529 = vsel %vm525, %v522, -inf
    %530 = vmax.xlane.f32.xlu0 %v529
    %v531 = vpop.xlane.xlu0 %530
    %v532 = vsub.f32 %v446, %v528
    %v533 = vsub.f32 %v522, %v531
    %v534 = vmul.f32 %v532, 1.442695
    %v535 = vpow.pop %v534
    %v536 = vmul.f32 %v533, 1.442695
    %v537 = vpow.pop %v536
    %v538 = vsel %vm525, %v535, 0.0
    %539 = vadd.xlane.f32.xlu0 %v538
    %v540 = vpop.xlane.xlu0 %539
    %v541 = vsel %vm525, %v537, 0.0
    %542 = vadd.xlane.f32.xlu0 %v541
    %v543 = vpop.xlane.xlu0 %542
    %v544 = vrcp.pop %v540
    %v545 = vrcp.pop %v543
    %v546 = vmul.f32 %v540, %v544
    %v547 = vmul.f32 %v543, %v545
    %v548 = vsub.f32 2.0, %v546
    %v549 = vsub.f32 2.0, %v547
    %v550 = vmul.f32 %v544, %v548
    %v551 = vmul.f32 %v545, %v549
    %v552 = vmul.f32 %v540, %v550
    %v553 = vmul.f32 %v543, %v551
    %v554 = vsub.f32 2.0, %v552
    %v555 = vsub.f32 2.0, %v553
    %v556 = vmul.f32 %v550, %v554
    %v557 = vmul.f32 %v551, %v555
    %v558 = vmul.f32 %v535, %v556
    %v559 = vmul.f32 %v537, %v557
    %v561 = vsel %vm525, %v558, 0
    %563 = vmatprep.subr.mxu0 0.0
    %564 = vmatpush1.msra.mxu0 %v365
    %565 = vmatprep.subr.mxu0 0.0
    %566 = vmatpush1.msra.mxu0 0.0
    %567 = vmatprep.subr.mxu0 0.0
    %568 = vmatpush1.msra.mxu0 0.0
    %569 = vmatprep.subr.mxu0 0.0
    %570 = vmatpush1.msra.mxu0 0.0
    %571 = vmatprep.subr.mxu0 0.0
    %572 = vmatpush1.msra.mxu0 0.0
    %573 = vmatprep.subr.mxu0 0.0
    %574 = vmatpush1.msra.mxu0 0.0
    %575 = vmatprep.subr.mxu0 0.0
    %576 = vmatpush1.msra.mxu0 0.0
    %577 = vmatprep.subr.mxu0 0.0
    %578 = vmatpush1.msra.mxu0 0.0
    %579 = vmatprep.subr.mxu0 0.0
    %580 = vmatpush1.msra.mxu0 0.0
    %581 = vmatprep.subr.mxu0 0.0
    %582 = vmatpush1.msra.mxu0 0.0
    %583 = vmatprep.subr.mxu0 0.0
    %584 = vmatpush1.msra.mxu0 0.0
    %585 = vmatprep.subr.mxu0 0.0
    %586 = vmatpush1.msra.mxu0 0.0
    %587 = vmatprep.subr.mxu0 0.0
    %588 = vmatpush1.msra.mxu0 0.0
    %589 = vmatprep.subr.mxu0 0.0
    %590 = vmatpush1.msra.mxu0 0.0
    %591 = vmatprep.subr.mxu0 0.0
    %592 = vmatpush1.msra.mxu0 0.0
    %593 = vmatprep.subr.mxu0 0.0
    %594 = vmatpush1.msra.mxu0 0.0
    %595 = vmatprep.subr.mxu0 0.0
    %596 = vmatpush1.msra.mxu0 0.0
    %597 = vmatprep.subr.mxu0 0.0
    %598 = vmatpush1.msra.mxu0 0.0
    %599 = vmatprep.subr.mxu0 0.0
    %600 = vmatpush1.msra.mxu0 0.0
    %601 = vmatprep.subr.mxu0 0.0
    %602 = vmatpush1.msra.mxu0 0.0
    %603 = vmatprep.subr.mxu0 0.0
    %604 = vmatpush1.msra.mxu0 0.0
    %605 = vmatprep.subr.mxu0 0.0
    %606 = vmatpush1.msra.mxu0 0.0
    %607 = vmatprep.subr.mxu0 0.0
    %608 = vmatpush1.msra.mxu0 0.0
    %609 = vmatprep.subr.mxu0 0.0
    %610 = vmatpush1.msra.mxu0 0.0
    %611 = vmatprep.subr.mxu0 0.0
    %612 = vmatpush1.msra.mxu0 0.0
    %613 = vmatprep.subr.mxu0 0.0
    %614 = vmatpush1.msra.mxu0 0.0
    %615 = vmatprep.subr.mxu0 0.0
    %616 = vmatpush1.msra.mxu0 0.0
    %617 = vmatprep.subr.mxu0 0.0
    %618 = vmatpush1.msra.mxu0 0.0
    %619 = vmatprep.subr.mxu0 0.0
    %620 = vmatpush1.msra.mxu0 0.0
    %621 = vmatprep.subr.mxu0 0.0
    %622 = vmatpush1.msra.mxu0 0.0
    %623 = vmatprep.subr.mxu0 0.0
    %624 = vmatpush1.msra.mxu0 0.0
    %625 = vmatprep.subr.mxu0 0.0
    %626 = vmatpush1.msra.mxu0 0.0
    %627 = vmatprep.mubr.f32.mxu0 0.0
    %628 = vmatmul.mubr.f32.gmra.mrb[0].mxu0 %v561
    %v629 = vpop.f32.mrb[0].mxu0
    %v630 = vadd.f32 0.0, %v629
    %v631 = vpop.f32.mrb[0].mxu0
    %632 = vdwg.mxu0
    %v634 = vsel %vm525, %v559, 0
    %636 = vmatprep.subr.mxu0 0.0
    %637 = vmatpush1.msra.mxu0 %v370
    %638 = vmatprep.subr.mxu0 0.0
    %639 = vmatpush1.msra.mxu0 0.0
    %640 = vmatprep.subr.mxu0 0.0
    %641 = vmatpush1.msra.mxu0 0.0
    %642 = vmatprep.subr.mxu0 0.0
    %643 = vmatpush1.msra.mxu0 0.0
    %644 = vmatprep.subr.mxu0 0.0
    %645 = vmatpush1.msra.mxu0 0.0
    %646 = vmatprep.subr.mxu0 0.0
    %647 = vmatpush1.msra.mxu0 0.0
    %648 = vmatprep.subr.mxu0 0.0
    %649 = vmatpush1.msra.mxu0 0.0
    %650 = vmatprep.subr.mxu0 0.0
    %651 = vmatpush1.msra.mxu0 0.0
    %652 = vmatprep.subr.mxu0 0.0
    %653 = vmatpush1.msra.mxu0 0.0
    %654 = vmatprep.subr.mxu0 0.0
    %655 = vmatpush1.msra.mxu0 0.0
    %656 = vmatprep.subr.mxu0 0.0
    %657 = vmatpush1.msra.mxu0 0.0
    %658 = vmatprep.subr.mxu0 0.0
    %659 = vmatpush1.msra.mxu0 0.0
    %660 = vmatprep.subr.mxu0 0.0
    %661 = vmatpush1.msra.mxu0 0.0
    %662 = vmatprep.subr.mxu0 0.0
    %663 = vmatpush1.msra.mxu0 0.0
    %664 = vmatprep.subr.mxu0 0.0
    %665 = vmatpush1.msra.mxu0 0.0
    %666 = vmatprep.subr.mxu0 0.0
    %667 = vmatpush1.msra.mxu0 0.0
    %668 = vmatprep.subr.mxu0 0.0
    %669 = vmatpush1.msra.mxu0 0.0
    %670 = vmatprep.subr.mxu0 0.0
    %671 = vmatpush1.msra.mxu0 0.0
    %672 = vmatprep.subr.mxu0 0.0
    %673 = vmatpush1.msra.mxu0 0.0
    %674 = vmatprep.subr.mxu0 0.0
    %675 = vmatpush1.msra.mxu0 0.0
    %676 = vmatprep.subr.mxu0 0.0
    %677 = vmatpush1.msra.mxu0 0.0
    %678 = vmatprep.subr.mxu0 0.0
    %679 = vmatpush1.msra.mxu0 0.0
    %680 = vmatprep.subr.mxu0 0.0
    %681 = vmatpush1.msra.mxu0 0.0
    %682 = vmatprep.subr.mxu0 0.0
    %683 = vmatpush1.msra.mxu0 0.0
    %684 = vmatprep.subr.mxu0 0.0
    %685 = vmatpush1.msra.mxu0 0.0
    %686 = vmatprep.subr.mxu0 0.0
    %687 = vmatpush1.msra.mxu0 0.0
    %688 = vmatprep.subr.mxu0 0.0
    %689 = vmatpush1.msra.mxu0 0.0
    %690 = vmatprep.subr.mxu0 0.0
    %691 = vmatpush1.msra.mxu0 0.0
    %692 = vmatprep.subr.mxu0 0.0
    %693 = vmatpush1.msra.mxu0 0.0
    %694 = vmatprep.subr.mxu0 0.0
    %695 = vmatpush1.msra.mxu0 0.0
    %696 = vmatprep.subr.mxu0 0.0
    %697 = vmatpush1.msra.mxu0 0.0
    %698 = vmatprep.subr.mxu0 0.0
    %699 = vmatpush1.msra.mxu0 0.0
    %700 = vmatprep.mubr.f32.mxu0 0.0
    %701 = vmatmul.mubr.f32.gmra.mrb[0].mxu0 %v634
    %v702 = vpop.f32.mrb[0].mxu0
    %v703 = vadd.f32 0.0, %v702
    %v704 = vpop.f32.mrb[0].mxu0
    %705 = vdwg.mxu0
    %706 = vst.msk [vmem:[#allocation11] sm:$0xff] %vm113, %v630
    %707 = vst.msk [vmem:[#allocation11 + $0x8] sm:$0xff] %vm113, %v703
    // Predicated region
    $region54: #{tpu_custom_call.1} parent=1 // pred_check
      _
    $region55: #{tpu_custom_call.1} parent=1 // pred_check_branch
      %709 = sbr.rel (0) target = $region57
    $region56: #{tpu_custom_call.1} parent=1 // pred_region
      %s711 = ssub.s32 256, 256
      %712 = vsyncadd [#allocation4], %s711
      %s713 = sshll.u32 [#allocation11], 4
      %s714 = int_to_ptr.vmem [resolvable:$true] %s713
      %719 = dma.vmem_to_hbm [thread:$0]  %s714, 256, %s8, [#allocation4], 128, 128, 8
    $region57: #{tpu_custom_call.1} parent=1 // pred_fallthru
      _
    // Predicated region
    $region58: #{tpu_custom_call.1} parent=1 // pred_check
      _
    $region59: #{tpu_custom_call.1} parent=1 // pred_check_branch
      %721 = sbr.rel (0) target = $region61
    $region60: #{tpu_custom_call.1} parent=1 // pred_region
      %722 = dma.done [#allocation4], 256
    $region61: #{tpu_custom_call.1} parent=1 // pred_fallthru
      _
    %723 = vsyncpa [#allocation3], 1
    %724 = vsyncpa [#allocation6], 1
    %725 = vsyncpa [#allocation9], 1
    %726 = vsyncpa [#allocation4], 1

// kernel: tpu_custom_call.1
$region0: #{tpu_custom_call.1}
  #allocation0 [shape = 'u32[]', space=smem, size = 0x4, offset = 0x4, fixed_abs, tag = 'smem constant byte address 0x4 - core index']
  #allocation1 [shape = 'u32[144,128]{1,0:T(1,128)}', space=vmem, size = 0x12000, scoped, tag = 'internal scratch']
  %s0 = inlined_call_operand.hbm [shape: f32[2,8,32], index: 0, kind: input, shape index: {}]
  %s1 = inlined_call_operand.hbm [shape: f32[2,8,32], index: 1, kind: input, shape index: {}]
  %s2 = inlined_call_operand.hbm [shape: f32[32,32], index: 2, kind: input, shape index: {}]
  %s3 = inlined_call_operand.vmem [shape: f32[1,32], index: 3, kind: input, shape index: {}]
  %s4 = inlined_call_operand.hbm [shape: f32[32,32], index: 4, kind: input, shape index: {}]
  %s5 = inlined_call_operand.vmem [shape: f32[1,32], index: 5, kind: input, shape index: {}]
  %s6 = inlined_call_operand.hbm [shape: f32[32,32], index: 6, kind: input, shape index: {}]
  %s7 = inlined_call_operand.vmem [shape: f32[1,32], index: 7, kind: input, shape index: {}]
  %s8 = inlined_call_operand.hbm [shape: f32[2,8,32], index: 8, kind: output, shape index: {}]
  %s9 = sld [smem:[#allocation0]]
  $region62: #{tpu_custom_call.1} parent=0
    _
  %s11 = ssub.s32 1, %s9
  %s12 = scalar_select 0, %s11, %s9
  $region1: #{tpu_custom_call.1} parent=0
    #allocation2 [shape = 'u8[8192]{0}', space=vmem, size = 0x2000, scoped, tag = 'input window, operand 0, single buffered']
    #allocation3 [shape = 's32[1]{0}', space=sflag, size = 0x4, scoped, tag = 'scoped memory for tpu_custom_call.1']
    #allocation4 [shape = 's32[1]{0}', space=sflag, size = 0x4, scoped, tag = 'scoped memory for tpu_custom_call.1']
    #allocation5 [shape = 'u8[8192]{0}', space=vmem, size = 0x2000, scoped, tag = 'input window, operand 1, single buffered']
    #allocation6 [shape = 's32[1]{0}', space=sflag, size = 0x4, scoped, tag = 'scoped memory for tpu_custom_call.1']
    #allocation7 [shape = 'u8[16384]{0}', space=vmem, size = 0x4000, scoped, tag = 'input window, operand 2, single buffered']
    #allocation8 [shape = 'u8[16384]{0}', space=vmem, size = 0x4000, scoped, tag = 'input window, operand 4, single buffered']
    #allocation9 [shape = 's32[1]{0}', space=sflag, size = 0x4, scoped, tag = 'scoped memory for tpu_custom_call.1']
    #allocation10 [shape = 'u8[16384]{0}', space=vmem, size = 0x4000, scoped, tag = 'input window, operand 6, single buffered']
    #allocation11 [shape = 'u8[8192]{0}', space=vmem, size = 0x2000, scoped, tag = 'output window, operand 0, single buffered']
    %13 = vsyncpa [#allocation3], 0
    %14 = vsyncpa [#allocation6], 0
    %15 = vsyncpa [#allocation9], 0
    %16 = vsyncpa [#allocation4], 0
    // Predicated region
    $region2: #{tpu_custom_call.1} parent=1 // pred_check
      _
    $region3: #{tpu_custom_call.1} parent=1 // pred_check_branch
      %18 = sbr.rel (0) target = $region5
    $region4: #{tpu_custom_call.1} parent=1 // pred_region
      %s20 = ssub.s32 256, 256
      %21 = vsyncadd [#allocation3], %s20
      %s22 = sshll.u32 [#allocation2], 4
      %s23 = int_to_ptr.vmem [resolvable:$true] %s22
      %28 = dma.hbm_to_vmem [thread:$0]  %s0, 256, %s23, [#allocation3], 128, 128, 8
    $region5: #{tpu_custom_call.1} parent=1 // pred_fallthru
      _
    // Predicated region
    $region6: #{tpu_custom_call.1} parent=1 // pred_check
      _
    $region7: #{tpu_custom_call.1} parent=1 // pred_check_branch
      %30 = sbr.rel (0) target = $region9
    $region8: #{tpu_custom_call.1} parent=1 // pred_region
      %s32 = ssub.s32 256, 256
      %33 = vsyncadd [#allocation6], %s32
      %s34 = sshll.u32 [#allocation5], 4
      %s35 = int_to_ptr.vmem [resolvable:$true] %s34
      %40 = dma.hbm_to_vmem [thread:$0]  %s1, 256, %s35, [#allocation6], 128, 128, 8
    $region9: #{tpu_custom_call.1} parent=1 // pred_fallthru
      _
    // Predicated region
    $region10: #{tpu_custom_call.1} parent=1 // pred_check
      _
    $region11: #{tpu_custom_call.1} parent=1 // pred_check_branch
      %42 = sbr.rel (0) target = $region13
    $region12: #{tpu_custom_call.1} parent=1 // pred_region
      %s44 = ssub.s32 512, 512
      %45 = vsyncadd [#allocation6], %s44
      %s46 = sshll.u32 [#allocation7], 4
      %s47 = int_to_ptr.vmem [resolvable:$true] %s46
      %52 = dma.hbm_to_vmem [thread:$0]  %s2, 512, %s47, [#allocation6], 128, 128, 8
    $region13: #{tpu_custom_call.1} parent=1 // pred_fallthru
      _
    // Predicated region
    $region14: #{tpu_custom_call.1} parent=1 // pred_check
      _
    $region15: #{tpu_custom_call.1} parent=1 // pred_check_branch
      %54 = sbr.rel (0) target = $region17
    $region16: #{tpu_custom_call.1} parent=1 // pred_region
      _
    $region17: #{tpu_custom_call.1} parent=1 // pred_fallthru
      _
    // Predicated region
    $region18: #{tpu_custom_call.1} parent=1 // pred_check
      _
    $region19: #{tpu_custom_call.1} parent=1 // pred_check_branch
      %56 = sbr.rel (0) target = $region21
    $region20: #{tpu_custom_call.1} parent=1 // pred_region
      %s58 = ssub.s32 512, 512
      %59 = vsyncadd [#allocation9], %s58
      %s60 = sshll.u32 [#allocation8], 4
      %s61 = int_to_ptr.vmem [resolvable:$true] %s60
      %66 = dma.hbm_to_vmem [thread:$0]  %s4, 512, %s61, [#allocation9], 128, 128, 8
    $region21: #{tpu_custom_call.1} parent=1 // pred_fallthru
      _
    // Predicated region
    $region22: #{tpu_custom_call.1} parent=1 // pred_check
      _
    $region23: #{tpu_custom_call.1} parent=1 // pred_check_branch
      %68 = sbr.rel (0) target = $region25
    $region24: #{tpu_custom_call.1} parent=1 // pred_region
      _
    $region25: #{tpu_custom_call.1} parent=1 // pred_fallthru
      _
    // Predicated region
    $region26: #{tpu_custom_call.1} parent=1 // pred_check
      _
    $region27: #{tpu_custom_call.1} parent=1 // pred_check_branch
      %70 = sbr.rel (0) target = $region29
    $region28: #{tpu_custom_call.1} parent=1 // pred_region
      %s72 = ssub.s32 512, 512
      %73 = vsyncadd [#allocation9], %s72
      %s74 = sshll.u32 [#allocation10], 4
      %s75 = int_to_ptr.vmem [resolvable:$true] %s74
      %80 = dma.hbm_to_vmem [thread:$0]  %s6, 512, %s75, [#allocation9], 128, 128, 8
    $region29: #{tpu_custom_call.1} parent=1 // pred_fallthru
      _
    // Predicated region
    $region30: #{tpu_custom_call.1} parent=1 // pred_check
      _
    $region31: #{tpu_custom_call.1} parent=1 // pred_check_branch
      %82 = sbr.rel (0) target = $region33
    $region32: #{tpu_custom_call.1} parent=1 // pred_region
      _
    $region33: #{tpu_custom_call.1} parent=1 // pred_fallthru
      _
    // Predicated region
    $region34: #{tpu_custom_call.1} parent=1 // pred_check
      _
    $region35: #{tpu_custom_call.1} parent=1 // pred_check_branch
      %84 = sbr.rel (0) target = $region37
    $region36: #{tpu_custom_call.1} parent=1 // pred_region
      %85 = dma.done [#allocation3], 256
    $region37: #{tpu_custom_call.1} parent=1 // pred_fallthru
      _
    // Predicated region
    $region38: #{tpu_custom_call.1} parent=1 // pred_check
      _
    $region39: #{tpu_custom_call.1} parent=1 // pred_check_branch
      %87 = sbr.rel (0) target = $region41
    $region40: #{tpu_custom_call.1} parent=1 // pred_region
      %88 = dma.done [#allocation6], 256
    $region41: #{tpu_custom_call.1} parent=1 // pred_fallthru
      _
    // Predicated region
    $region42: #{tpu_custom_call.1} parent=1 // pred_check
      _
    $region43: #{tpu_custom_call.1} parent=1 // pred_check_branch
      %90 = sbr.rel (0) target = $region45
    $region44: #{tpu_custom_call.1} parent=1 // pred_region
      %91 = dma.done [#allocation6], 512
    $region45: #{tpu_custom_call.1} parent=1 // pred_fallthru
      _
    // Predicated region
    $region46: #{tpu_custom_call.1} parent=1 // pred_check
      _
    $region47: #{tpu_custom_call.1} parent=1 // pred_check_branch
      %93 = sbr.rel (0) target = $region49
    $region48: #{tpu_custom_call.1} parent=1 // pred_region
      %94 = dma.done [#allocation9], 512
    $region49: #{tpu_custom_call.1} parent=1 // pred_fallthru
      _
    // Predicated region
    $region50: #{tpu_custom_call.1} parent=1 // pred_check
      _
    $region51: #{tpu_custom_call.1} parent=1 // pred_check_branch
      %96 = sbr.rel (0) target = $region53
    $region52: #{tpu_custom_call.1} parent=1 // pred_region
      %97 = dma.done [#allocation9], 512
    $region53: #{tpu_custom_call.1} parent=1 // pred_fallthru
      _
    %v98 = vld [vmem:[#allocation2] sm:$0xff]
    %v99 = vld [vmem:[#allocation2 + $0x8] sm:$0xff]
    %v100 = vld [vmem:[#allocation5] sm:$0xff]
    %v101 = vld [vmem:[#allocation5 + $0x8] sm:$0xff]
    %v102 = vld [vmem:[#allocation7] sm:$0xff]
    %v103 = vld [vmem:[#allocation7 + $0x8] sm:$0xff]
    %v104 = vld [vmem:[#allocation7 + $0x10] sm:$0xff]
    %v105 = vld [vmem:[#allocation7 + $0x18] sm:$0xff]
    %v106 = vld [vmem:[%s3] sm:$0x1]
    %v108 = vlaneseq
    %v109 = vshrl.u32 %v108, 7
    %v110 = vsub.s32 0, %v109
    %v111 = vrot.slane %v106, %v110
    %vm113 = vcmask 261120
    %v115 = vsel %vm113, %v98, 0
    %v118 = vsel %vm113, %v99, 0
    %120 = vmatprep.subr.mxu0 0.0
    %121 = vmatpush1.msra.mxu0 %v102
    %122 = vmatprep.subr.mxu0 0.0
    %123 = vmatpush1.msra.mxu0 %v103
    %124 = vmatprep.subr.mxu0 0.0
    %125 = vmatpush1.msra.mxu0 %v104
    %126 = vmatprep.subr.mxu0 0.0
    %127 = vmatpush1.msra.mxu0 %v105
    %128 = vmatprep.subr.mxu0 0.0
    %129 = vmatpush1.msra.mxu0 0.0
    %130 = vmatprep.subr.mxu0 0.0
    %131 = vmatpush1.msra.mxu0 0.0
    %132 = vmatprep.subr.mxu0 0.0
    %133 = vmatpush1.msra.mxu0 0.0
    %134 = vmatprep.subr.mxu0 0.0
    %135 = vmatpush1.msra.mxu0 0.0
    %136 = vmatprep.subr.mxu0 0.0
    %137 = vmatpush1.msra.mxu0 0.0
    %138 = vmatprep.subr.mxu0 0.0
    %139 = vmatpush1.msra.mxu0 0.0
    %140 = vmatprep.subr.mxu0 0.0
    %141 = vmatpush1.msra.mxu0 0.0
    %142 = vmatprep.subr.mxu0 0.0
    %143 = vmatpush1.msra.mxu0 0.0
    %144 = vmatprep.subr.mxu0 0.0
    %145 = vmatpush1.msra.mxu0 0.0
    %146 = vmatprep.subr.mxu0 0.0
    %147 = vmatpush1.msra.mxu0 0.0
    %148 = vmatprep.subr.mxu0 0.0
    %149 = vmatpush1.msra.mxu0 0.0
    %150 = vmatprep.subr.mxu0 0.0
    %151 = vmatpush1.msra.mxu0 0.0
    %152 = vmatprep.subr.mxu0 0.0
    %153 = vmatpush1.msra.mxu0 0.0
    %154 = vmatprep.subr.mxu0 0.0
    %155 = vmatpush1.msra.mxu0 0.0
    %156 = vmatprep.subr.mxu0 0.0
    %157 = vmatpush1.msra.mxu0 0.0
    %158 = vmatprep.subr.mxu0 0.0
    %159 = vmatpush1.msra.mxu0 0.0
    %160 = vmatprep.subr.mxu0 0.0
    %161 = vmatpush1.msra.mxu0 0.0
    %162 = vmatprep.subr.mxu0 0.0
    %163 = vmatpush1.msra.mxu0 0.0
    %164 = vmatprep.subr.mxu0 0.0
    %165 = vmatpush1.msra.mxu0 0.0
    %166 = vmatprep.subr.mxu0 0.0
    %167 = vmatpush1.msra.mxu0 0.0
    %168 = vmatprep.subr.mxu0 0.0
    %169 = vmatpush1.msra.mxu0 0.0
    %170 = vmatprep.subr.mxu0 0.0
    %171 = vmatpush1.msra.mxu0 0.0
    %172 = vmatprep.subr.mxu0 0.0
    %173 = vmatpush1.msra.mxu0 0.0
    %174 = vmatprep.subr.mxu0 0.0
    %175 = vmatpush1.msra.mxu0 0.0
    %176 = vmatprep.subr.mxu0 0.0
    %177 = vmatpush1.msra.mxu0 0.0
    %178 = vmatprep.subr.mxu0 0.0
    %179 = vmatpush1.msra.mxu0 0.0
    %180 = vmatprep.subr.mxu0 0.0
    %181 = vmatpush1.msra.mxu0 0.0
    %182 = vmatprep.subr.mxu0 0.0
    %183 = vmatpush1.msra.mxu0 0.0
    %184 = vmatprep.mubr.f32.mxu0 0.0
    %185 = vmatmul.mubr.f32.gmra.mrb[0].mxu0 %v115
    %v186 = vpop.f32.mrb[0].mxu0
    %v187 = vadd.f32 %v111, %v186
    %v188 = vpop.f32.mrb[0].mxu0
    %189 = vmatprep.mubr.f32.mxu0 0.0
    %190 = vmatmul.mubr.f32.gmra.mrb[0].mxu0 %v118
    %v191 = vpop.f32.mrb[0].mxu0
    %v192 = vadd.f32 %v111, %v191
    %v193 = vpop.f32.mrb[0].mxu0
    %194 = vdwg.mxu0
    %v195 = vld [vmem:[#allocation8] sm:$0xff]
    %v196 = vld [vmem:[#allocation8 + $0x8] sm:$0xff]
    %v197 = vld [vmem:[#allocation8 + $0x10] sm:$0xff]
    %v198 = vld [vmem:[#allocation8 + $0x18] sm:$0xff]
    %v199 = vld [vmem:[%s5] sm:$0x1]
    %v201 = vlaneseq
    %v202 = vshrl.u32 %v201, 7
    %v203 = vsub.s32 0, %v202
    %v204 = vrot.slane %v199, %v203
    %v207 = vsel %vm113, %v100, 0
    %v210 = vsel %vm113, %v101, 0
    %212 = vmatprep.subr.mxu0 0.0
    %213 = vmatpush1.msra.mxu0 %v195
    %214 = vmatprep.subr.mxu0 0.0
    %215 = vmatpush1.msra.mxu0 %v196
    %216 = vmatprep.subr.mxu0 0.0
    %217 = vmatpush1.msra.mxu0 %v197
    %218 = vmatprep.subr.mxu0 0.0
    %219 = vmatpush1.msra.mxu0 %v198
    %220 = vmatprep.subr.mxu0 0.0
    %221 = vmatpush1.msra.mxu0 0.0
    %222 = vmatprep.subr.mxu0 0.0
    %223 = vmatpush1.msra.mxu0 0.0
    %224 = vmatprep.subr.mxu0 0.0
    %225 = vmatpush1.msra.mxu0 0.0
    %226 = vmatprep.subr.mxu0 0.0
    %227 = vmatpush1.msra.mxu0 0.0
    %228 = vmatprep.subr.mxu0 0.0
    %229 = vmatpush1.msra.mxu0 0.0
    %230 = vmatprep.subr.mxu0 0.0
    %231 = vmatpush1.msra.mxu0 0.0
    %232 = vmatprep.subr.mxu0 0.0
    %233 = vmatpush1.msra.mxu0 0.0
    %234 = vmatprep.subr.mxu0 0.0
    %235 = vmatpush1.msra.mxu0 0.0
    %236 = vmatprep.subr.mxu0 0.0
    %237 = vmatpush1.msra.mxu0 0.0
    %238 = vmatprep.subr.mxu0 0.0
    %239 = vmatpush1.msra.mxu0 0.0
    %240 = vmatprep.subr.mxu0 0.0
    %241 = vmatpush1.msra.mxu0 0.0
    %242 = vmatprep.subr.mxu0 0.0
    %243 = vmatpush1.msra.mxu0 0.0
    %244 = vmatprep.subr.mxu0 0.0
    %245 = vmatpush1.msra.mxu0 0.0
    %246 = vmatprep.subr.mxu0 0.0
    %247 = vmatpush1.msra.mxu0 0.0
    %248 = vmatprep.subr.mxu0 0.0
    %249 = vmatpush1.msra.mxu0 0.0
    %250 = vmatprep.subr.mxu0 0.0
    %251 = vmatpush1.msra.mxu0 0.0
    %252 = vmatprep.subr.mxu0 0.0
    %253 = vmatpush1.msra.mxu0 0.0
    %254 = vmatprep.subr.mxu0 0.0
    %255 = vmatpush1.msra.mxu0 0.0
    %256 = vmatprep.subr.mxu0 0.0
    %257 = vmatpush1.msra.mxu0 0.0
    %258 = vmatprep.subr.mxu0 0.0
    %259 = vmatpush1.msra.mxu0 0.0
    %260 = vmatprep.subr.mxu0 0.0
    %261 = vmatpush1.msra.mxu0 0.0
    %262 = vmatprep.subr.mxu0 0.0
    %263 = vmatpush1.msra.mxu0 0.0
    %264 = vmatprep.subr.mxu0 0.0
    %265 = vmatpush1.msra.mxu0 0.0
    %266 = vmatprep.subr.mxu0 0.0
    %267 = vmatpush1.msra.mxu0 0.0
    %268 = vmatprep.subr.mxu0 0.0
    %269 = vmatpush1.msra.mxu0 0.0
    %270 = vmatprep.subr.mxu0 0.0
    %271 = vmatpush1.msra.mxu0 0.0
    %272 = vmatprep.subr.mxu0 0.0
    %273 = vmatpush1.msra.mxu0 0.0
    %274 = vmatprep.subr.mxu0 0.0
    %275 = vmatpush1.msra.mxu0 0.0
    %276 = vmatprep.mubr.f32.mxu0 0.0
    %277 = vmatmul.mubr.f32.gmra.mrb[0].mxu0 %v207
    %v278 = vpop.f32.mrb[0].mxu0
    %v279 = vadd.f32 %v204, %v278
    %v280 = vpop.f32.mrb[0].mxu0
    %281 = vmatprep.mubr.f32.mxu0 0.0
    %282 = vmatmul.mubr.f32.gmra.mrb[0].mxu0 %v210
    %v283 = vpop.f32.mrb[0].mxu0
    %v284 = vadd.f32 %v204, %v283
    %v285 = vpop.f32.mrb[0].mxu0
    %286 = vdwg.mxu0
    %v287 = vld [vmem:[#allocation10] sm:$0xff]
    %v288 = vld [vmem:[#allocation10 + $0x8] sm:$0xff]
    %v289 = vld [vmem:[#allocation10 + $0x10] sm:$0xff]
    %v290 = vld [vmem:[#allocation10 + $0x18] sm:$0xff]
    %v291 = vld [vmem:[%s7] sm:$0x1]
    %v293 = vlaneseq
    %v294 = vshrl.u32 %v293, 7
    %v295 = vsub.s32 0, %v294
    %v296 = vrot.slane %v291, %v295
    %298 = vmatprep.subr.mxu0 0.0
    %299 = vmatpush1.msra.mxu0 %v287
    %300 = vmatprep.subr.mxu0 0.0
    %301 = vmatpush1.msra.mxu0 %v288
    %302 = vmatprep.subr.mxu0 0.0
    %303 = vmatpush1.msra.mxu0 %v289
    %304 = vmatprep.subr.mxu0 0.0
    %305 = vmatpush1.msra.mxu0 %v290
    %306 = vmatprep.subr.mxu0 0.0
    %307 = vmatpush1.msra.mxu0 0.0
    %308 = vmatprep.subr.mxu0 0.0
    %309 = vmatpush1.msra.mxu0 0.0
    %310 = vmatprep.subr.mxu0 0.0
    %311 = vmatpush1.msra.mxu0 0.0
    %312 = vmatprep.subr.mxu0 0.0
    %313 = vmatpush1.msra.mxu0 0.0
    %314 = vmatprep.subr.mxu0 0.0
    %315 = vmatpush1.msra.mxu0 0.0
    %316 = vmatprep.subr.mxu0 0.0
    %317 = vmatpush1.msra.mxu0 0.0
    %318 = vmatprep.subr.mxu0 0.0
    %319 = vmatpush1.msra.mxu0 0.0
    %320 = vmatprep.subr.mxu0 0.0
    %321 = vmatpush1.msra.mxu0 0.0
    %322 = vmatprep.subr.mxu0 0.0
    %323 = vmatpush1.msra.mxu0 0.0
    %324 = vmatprep.subr.mxu0 0.0
    %325 = vmatpush1.msra.mxu0 0.0
    %326 = vmatprep.subr.mxu0 0.0
    %327 = vmatpush1.msra.mxu0 0.0
    %328 = vmatprep.subr.mxu0 0.0
    %329 = vmatpush1.msra.mxu0 0.0
    %330 = vmatprep.subr.mxu0 0.0
    %331 = vmatpush1.msra.mxu0 0.0
    %332 = vmatprep.subr.mxu0 0.0
    %333 = vmatpush1.msra.mxu0 0.0
    %334 = vmatprep.subr.mxu0 0.0
    %335 = vmatpush1.msra.mxu0 0.0
    %336 = vmatprep.subr.mxu0 0.0
    %337 = vmatpush1.msra.mxu0 0.0
    %338 = vmatprep.subr.mxu0 0.0
    %339 = vmatpush1.msra.mxu0 0.0
    %340 = vmatprep.subr.mxu0 0.0
    %341 = vmatpush1.msra.mxu0 0.0
    %342 = vmatprep.subr.mxu0 0.0
    %343 = vmatpush1.msra.mxu0 0.0
    %344 = vmatprep.subr.mxu0 0.0
    %345 = vmatpush1.msra.mxu0 0.0
    %346 = vmatprep.subr.mxu0 0.0
    %347 = vmatpush1.msra.mxu0 0.0
    %348 = vmatprep.subr.mxu0 0.0
    %349 = vmatpush1.msra.mxu0 0.0
    %350 = vmatprep.subr.mxu0 0.0
    %351 = vmatpush1.msra.mxu0 0.0
    %352 = vmatprep.subr.mxu0 0.0
    %353 = vmatpush1.msra.mxu0 0.0
    %354 = vmatprep.subr.mxu0 0.0
    %355 = vmatpush1.msra.mxu0 0.0
    %356 = vmatprep.subr.mxu0 0.0
    %357 = vmatpush1.msra.mxu0 0.0
    %358 = vmatprep.subr.mxu0 0.0
    %359 = vmatpush1.msra.mxu0 0.0
    %360 = vmatprep.subr.mxu0 0.0
    %361 = vmatpush1.msra.mxu0 0.0
    %362 = vmatprep.mubr.f32.mxu0 0.0
    %363 = vmatmul.mubr.f32.gmra.mrb[0].mxu0 %v207
    %v364 = vpop.f32.mrb[0].mxu0
    %v365 = vadd.f32 %v296, %v364
    %v366 = vpop.f32.mrb[0].mxu0
    %367 = vmatprep.mubr.f32.mxu0 0.0
    %368 = vmatmul.mubr.f32.gmra.mrb[0].mxu0 %v210
    %v369 = vpop.f32.mrb[0].mxu0
    %v370 = vadd.f32 %v296, %v369
    %v371 = vpop.f32.mrb[0].mxu0
    %372 = vdwg.mxu0
    %v374 = vsel %vm113, %v187, 0
    %v377 = vsel %vm113, %v279, 0
    %379 = vmatprep.subr.mxu0 0.0
    %380 = vmatpush1.xpose.msra.mxu0 %v377
    %381 = vmatprep.subr.mxu0 0.0
    %382 = vmatpush1.xpose.msra.mxu0 0.0
    %383 = vmatprep.subr.mxu0 0.0
    %384 = vmatpush1.xpose.msra.mxu0 0.0
    %385 = vmatprep.subr.mxu0 0.0
    %386 = vmatpush1.xpose.msra.mxu0 0.0
    %387 = vmatprep.subr.mxu0 0.0
    %388 = vmatpush1.xpose.msra.mxu0 0.0
    %389 = vmatprep.subr.mxu0 0.0
    %390 = vmatpush1.xpose.msra.mxu0 0.0
    %391 = vmatprep.subr.mxu0 0.0
    %392 = vmatpush1.xpose.msra.mxu0 0.0
    %393 = vmatprep.subr.mxu0 0.0
    %394 = vmatpush1.xpose.msra.mxu0 0.0
    %395 = vmatprep.subr.mxu0 0.0
    %396 = vmatpush1.xpose.msra.mxu0 0.0
    %397 = vmatprep.subr.mxu0 0.0
    %398 = vmatpush1.xpose.msra.mxu0 0.0
    %399 = vmatprep.subr.mxu0 0.0
    %400 = vmatpush1.xpose.msra.mxu0 0.0
    %401 = vmatprep.subr.mxu0 0.0
    %402 = vmatpush1.xpose.msra.mxu0 0.0
    %403 = vmatprep.subr.mxu0 0.0
    %404 = vmatpush1.xpose.msra.mxu0 0.0
    %405 = vmatprep.subr.mxu0 0.0
    %406 = vmatpush1.xpose.msra.mxu0 0.0
    %407 = vmatprep.subr.mxu0 0.0
    %408 = vmatpush1.xpose.msra.mxu0 0.0
    %409 = vmatprep.subr.mxu0 0.0
    %410 = vmatpush1.xpose.msra.mxu0 0.0
    %411 = vmatprep.subr.mxu0 0.0
    %412 = vmatpush1.xpose.msra.mxu0 0.0
    %413 = vmatprep.subr.mxu0 0.0
    %414 = vmatpush1.xpose.msra.mxu0 0.0
    %415 = vmatprep.subr.mxu0 0.0
    %416 = vmatpush1.xpose.msra.mxu0 0.0
    %417 = vmatprep.subr.mxu0 0.0
    %418 = vmatpush1.xpose.msra.mxu0 0.0
    %419 = vmatprep.subr.mxu0 0.0
    %420 = vmatpush1.xpose.msra.mxu0 0.0
    %421 = vmatprep.subr.mxu0 0.0
    %422 = vmatpush1.xpose.msra.mxu0 0.0
    %423 = vmatprep.subr.mxu0 0.0
    %424 = vmatpush1.xpose.msra.mxu0 0.0
    %425 = vmatprep.subr.mxu0 0.0
    %426 = vmatpush1.xpose.msra.mxu0 0.0
    %427 = vmatprep.subr.mxu0 0.0
    %428 = vmatpush1.xpose.msra.mxu0 0.0
    %429 = vmatprep.subr.mxu0 0.0
    %430 = vmatpush1.xpose.msra.mxu0 0.0
    %431 = vmatprep.subr.mxu0 0.0
    %432 = vmatpush1.xpose.msra.mxu0 0.0
    %433 = vmatprep.subr.mxu0 0.0
    %434 = vmatpush1.xpose.msra.mxu0 0.0
    %435 = vmatprep.subr.mxu0 0.0
    %436 = vmatpush1.xpose.msra.mxu0 0.0
    %437 = vmatprep.subr.mxu0 0.0
    %438 = vmatpush1.xpose.msra.mxu0 0.0
    %439 = vmatprep.subr.mxu0 0.0
    %440 = vmatpush1.xpose.msra.mxu0 0.0
    %441 = vmatprep.subr.mxu0 0.0
    %442 = vmatpush1.xpose.msra.mxu0 0.0
    %443 = vmatprep.mubr.f32.mxu0 0.0
    %444 = vmatmul.mubr.f32.gmra.mrb[0].mxu0 %v374
    %v445 = vpop.f32.mrb[0].mxu0
    %v446 = vadd.f32 0.0, %v445
    %v447 = vpop.f32.mrb[0].mxu0
    %448 = vdwg.mxu0
    %v450 = vsel %vm113, %v192, 0
    %v453 = vsel %vm113, %v284, 0
    %455 = vmatprep.subr.mxu0 0.0
    %456 = vmatpush1.xpose.msra.mxu0 %v453
    %457 = vmatprep.subr.mxu0 0.0
    %458 = vmatpush1.xpose.msra.mxu0 0.0
    %459 = vmatprep.subr.mxu0 0.0
    %460 = vmatpush1.xpose.msra.mxu0 0.0
    %461 = vmatprep.subr.mxu0 0.0
    %462 = vmatpush1.xpose.msra.mxu0 0.0
    %463 = vmatprep.subr.mxu0 0.0
    %464 = vmatpush1.xpose.msra.mxu0 0.0
    %465 = vmatprep.subr.mxu0 0.0
    %466 = vmatpush1.xpose.msra.mxu0 0.0
    %467 = vmatprep.subr.mxu0 0.0
    %468 = vmatpush1.xpose.msra.mxu0 0.0
    %469 = vmatprep.subr.mxu0 0.0
    %470 = vmatpush1.xpose.msra.mxu0 0.0
    %471 = vmatprep.subr.mxu0 0.0
    %472 = vmatpush1.xpose.msra.mxu0 0.0
    %473 = vmatprep.subr.mxu0 0.0
    %474 = vmatpush1.xpose.msra.mxu0 0.0
    %475 = vmatprep.subr.mxu0 0.0
    %476 = vmatpush1.xpose.msra.mxu0 0.0
    %477 = vmatprep.subr.mxu0 0.0
    %478 = vmatpush1.xpose.msra.mxu0 0.0
    %479 = vmatprep.subr.mxu0 0.0
    %480 = vmatpush1.xpose.msra.mxu0 0.0
    %481 = vmatprep.subr.mxu0 0.0
    %482 = vmatpush1.xpose.msra.mxu0 0.0
    %483 = vmatprep.subr.mxu0 0.0
    %484 = vmatpush1.xpose.msra.mxu0 0.0
    %485 = vmatprep.subr.mxu0 0.0
    %486 = vmatpush1.xpose.msra.mxu0 0.0
    %487 = vmatprep.subr.mxu0 0.0
    %488 = vmatpush1.xpose.msra.mxu0 0.0
    %489 = vmatprep.subr.mxu0 0.0
    %490 = vmatpush1.xpose.msra.mxu0 0.0
    %491 = vmatprep.subr.mxu0 0.0
    %492 = vmatpush1.xpose.msra.mxu0 0.0
    %493 = vmatprep.subr.mxu0 0.0
    %494 = vmatpush1.xpose.msra.mxu0 0.0
    %495 = vmatprep.subr.mxu0 0.0
    %496 = vmatpush1.xpose.msra.mxu0 0.0
    %497 = vmatprep.subr.mxu0 0.0
    %498 = vmatpush1.xpose.msra.mxu0 0.0
    %499 = vmatprep.subr.mxu0 0.0
    %500 = vmatpush1.xpose.msra.mxu0 0.0
    %501 = vmatprep.subr.mxu0 0.0
    %502 = vmatpush1.xpose.msra.mxu0 0.0
    %503 = vmatprep.subr.mxu0 0.0
    %504 = vmatpush1.xpose.msra.mxu0 0.0
    %505 = vmatprep.subr.mxu0 0.0
    %506 = vmatpush1.xpose.msra.mxu0 0.0
    %507 = vmatprep.subr.mxu0 0.0
    %508 = vmatpush1.xpose.msra.mxu0 0.0
    %509 = vmatprep.subr.mxu0 0.0
    %510 = vmatpush1.xpose.msra.mxu0 0.0
    %511 = vmatprep.subr.mxu0 0.0
    %512 = vmatpush1.xpose.msra.mxu0 0.0
    %513 = vmatprep.subr.mxu0 0.0
    %514 = vmatpush1.xpose.msra.mxu0 0.0
    %515 = vmatprep.subr.mxu0 0.0
    %516 = vmatpush1.xpose.msra.mxu0 0.0
    %517 = vmatprep.subr.mxu0 0.0
    %518 = vmatpush1.xpose.msra.mxu0 0.0
    %519 = vmatprep.mubr.f32.mxu0 0.0
    %520 = vmatmul.mubr.f32.gmra.mrb[0].mxu0 %v450
    %v521 = vpop.f32.mrb[0].mxu0
    %v522 = vadd.f32 0.0, %v521
    %v523 = vpop.f32.mrb[0].mxu0
    %524 = vdwg.mxu0
    %vm525 = vcmask 64512
    %v526 = vsel %vm525, %v446, -inf
    %527 = vmax.xlane.f32.xlu0 %v526
    %v528 = vpop.xlane.xlu0 %527
    %v529 = vsel %vm525, %v522, -inf
    %530 = vmax.xlane.f32.xlu0 %v529
    %v531 = vpop.xlane.xlu0 %530
    %v532 = vsub.f32 %v446, %v528
    %v533 = vsub.f32 %v522, %v531
    %v534 = vmul.f32 %v532, 1.442695
    %v535 = vpow.pop %v534
    %v536 = vmul.f32 %v533, 1.442695
    %v537 = vpow.pop %v536
    %v538 = vsel %vm525, %v535, 0.0
    %539 = vadd.xlane.f32.xlu0 %v538
    %v540 = vpop.xlane.xlu0 %539
    %v541 = vsel %vm525, %v537, 0.0
    %542 = vadd.xlane.f32.xlu0 %v541
    %v543 = vpop.xlane.xlu0 %542
    %v544 = vrcp.pop %v540
    %v545 = vrcp.pop %v543
    %v546 = vmul.f32 %v540, %v544
    %v547 = vmul.f32 %v543, %v545
    %v548 = vsub.f32 2.0, %v546
    %v549 = vsub.f32 2.0, %v547
    %v550 = vmul.f32 %v544, %v548
    %v551 = vmul.f32 %v545, %v549
    %v552 = vmul.f32 %v540, %v550
    %v553 = vmul.f32 %v543, %v551
    %v554 = vsub.f32 2.0, %v552
    %v555 = vsub.f32 2.0, %v553
    %v556 = vmul.f32 %v550, %v554
    %v557 = vmul.f32 %v551, %v555
    %v558 = vmul.f32 %v535, %v556
    %v559 = vmul.f32 %v537, %v557
    %v561 = vsel %vm525, %v558, 0
    %563 = vmatprep.subr.mxu0 0.0
    %564 = vmatpush1.msra.mxu0 %v365
    %565 = vmatprep.subr.mxu0 0.0
    %566 = vmatpush1.msra.mxu0 0.0
    %567 = vmatprep.subr.mxu0 0.0
    %568 = vmatpush1.msra.mxu0 0.0
    %569 = vmatprep.subr.mxu0 0.0
    %570 = vmatpush1.msra.mxu0 0.0
    %571 = vmatprep.subr.mxu0 0.0
    %572 = vmatpush1.msra.mxu0 0.0
    %573 = vmatprep.subr.mxu0 0.0
    %574 = vmatpush1.msra.mxu0 0.0
    %575 = vmatprep.subr.mxu0 0.0
    %576 = vmatpush1.msra.mxu0 0.0
    %577 = vmatprep.subr.mxu0 0.0
    %578 = vmatpush1.msra.mxu0 0.0
    %579 = vmatprep.subr.mxu0 0.0
    %580 = vmatpush1.msra.mxu0 0.0
    %581 = vmatprep.subr.mxu0 0.0
    %582 = vmatpush1.msra.mxu0 0.0
    %583 = vmatprep.subr.mxu0 0.0
    %584 = vmatpush1.msra.mxu0 0.0
    %585 = vmatprep.subr.mxu0 0.0
    %586 = vmatpush1.msra.mxu0 0.0
    %587 = vmatprep.subr.mxu0 0.0
    %588 = vmatpush1.msra.mxu0 0.0
    %589 = vmatprep.subr.mxu0 0.0
    %590 = vmatpush1.msra.mxu0 0.0
    %591 = vmatprep.subr.mxu0 0.0
    %592 = vmatpush1.msra.mxu0 0.0
    %593 = vmatprep.subr.mxu0 0.0
    %594 = vmatpush1.msra.mxu0 0.0
    %595 = vmatprep.subr.mxu0 0.0
    %596 = vmatpush1.msra.mxu0 0.0
    %597 = vmatprep.subr.mxu0 0.0
    %598 = vmatpush1.msra.mxu0 0.0
    %599 = vmatprep.subr.mxu0 0.0
    %600 = vmatpush1.msra.mxu0 0.0
    %601 = vmatprep.subr.mxu0 0.0
    %602 = vmatpush1.msra.mxu0 0.0
    %603 = vmatprep.subr.mxu0 0.0
    %604 = vmatpush1.msra.mxu0 0.0
    %605 = vmatprep.subr.mxu0 0.0
    %606 = vmatpush1.msra.mxu0 0.0
    %607 = vmatprep.subr.mxu0 0.0
    %608 = vmatpush1.msra.mxu0 0.0
    %609 = vmatprep.subr.mxu0 0.0
    %610 = vmatpush1.msra.mxu0 0.0
    %611 = vmatprep.subr.mxu0 0.0
    %612 = vmatpush1.msra.mxu0 0.0
    %613 = vmatprep.subr.mxu0 0.0
    %614 = vmatpush1.msra.mxu0 0.0
    %615 = vmatprep.subr.mxu0 0.0
    %616 = vmatpush1.msra.mxu0 0.0
    %617 = vmatprep.subr.mxu0 0.0
    %618 = vmatpush1.msra.mxu0 0.0
    %619 = vmatprep.subr.mxu0 0.0
    %620 = vmatpush1.msra.mxu0 0.0
    %621 = vmatprep.subr.mxu0 0.0
    %622 = vmatpush1.msra.mxu0 0.0
    %623 = vmatprep.subr.mxu0 0.0
    %624 = vmatpush1.msra.mxu0 0.0
    %625 = vmatprep.subr.mxu0 0.0
    %626 = vmatpush1.msra.mxu0 0.0
    %627 = vmatprep.mubr.f32.mxu0 0.0
    %628 = vmatmul.mubr.f32.gmra.mrb[0].mxu0 %v561
    %v629 = vpop.f32.mrb[0].mxu0
    %v630 = vadd.f32 0.0, %v629
    %v631 = vpop.f32.mrb[0].mxu0
    %632 = vdwg.mxu0
    %v634 = vsel %vm525, %v559, 0
    %636 = vmatprep.subr.mxu0 0.0
    %637 = vmatpush1.msra.mxu0 %v370
    %638 = vmatprep.subr.mxu0 0.0
    %639 = vmatpush1.msra.mxu0 0.0
    %640 = vmatprep.subr.mxu0 0.0
    %641 = vmatpush1.msra.mxu0 0.0
    %642 = vmatprep.subr.mxu0 0.0
    %643 = vmatpush1.msra.mxu0 0.0
    %644 = vmatprep.subr.mxu0 0.0
    %645 = vmatpush1.msra.mxu0 0.0
    %646 = vmatprep.subr.mxu0 0.0
    %647 = vmatpush1.msra.mxu0 0.0
    %648 = vmatprep.subr.mxu0 0.0
    %649 = vmatpush1.msra.mxu0 0.0
    %650 = vmatprep.subr.mxu0 0.0
    %651 = vmatpush1.msra.mxu0 0.0
    %652 = vmatprep.subr.mxu0 0.0
    %653 = vmatpush1.msra.mxu0 0.0
    %654 = vmatprep.subr.mxu0 0.0
    %655 = vmatpush1.msra.mxu0 0.0
    %656 = vmatprep.subr.mxu0 0.0
    %657 = vmatpush1.msra.mxu0 0.0
    %658 = vmatprep.subr.mxu0 0.0
    %659 = vmatpush1.msra.mxu0 0.0
    %660 = vmatprep.subr.mxu0 0.0
    %661 = vmatpush1.msra.mxu0 0.0
    %662 = vmatprep.subr.mxu0 0.0
    %663 = vmatpush1.msra.mxu0 0.0
    %664 = vmatprep.subr.mxu0 0.0
    %665 = vmatpush1.msra.mxu0 0.0
    %666 = vmatprep.subr.mxu0 0.0
    %667 = vmatpush1.msra.mxu0 0.0
    %668 = vmatprep.subr.mxu0 0.0
    %669 = vmatpush1.msra.mxu0 0.0
    %670 = vmatprep.subr.mxu0 0.0
    %671 = vmatpush1.msra.mxu0 0.0
    %672 = vmatprep.subr.mxu0 0.0
    %673 = vmatpush1.msra.mxu0 0.0
    %674 = vmatprep.subr.mxu0 0.0
    %675 = vmatpush1.msra.mxu0 0.0
    %676 = vmatprep.subr.mxu0 0.0
    %677 = vmatpush1.msra.mxu0 0.0
    %678 = vmatprep.subr.mxu0 0.0
    %679 = vmatpush1.msra.mxu0 0.0
    %680 = vmatprep.subr.mxu0 0.0
    %681 = vmatpush1.msra.mxu0 0.0
    %682 = vmatprep.subr.mxu0 0.0
    %683 = vmatpush1.msra.mxu0 0.0
    %684 = vmatprep.subr.mxu0 0.0
    %685 = vmatpush1.msra.mxu0 0.0
    %686 = vmatprep.subr.mxu0 0.0
    %687 = vmatpush1.msra.mxu0 0.0
    %688 = vmatprep.subr.mxu0 0.0
    %689 = vmatpush1.msra.mxu0 0.0
    %690 = vmatprep.subr.mxu0 0.0
    %691 = vmatpush1.msra.mxu0 0.0
    %692 = vmatprep.subr.mxu0 0.0
    %693 = vmatpush1.msra.mxu0 0.0
    %694 = vmatprep.subr.mxu0 0.0
    %695 = vmatpush1.msra.mxu0 0.0
    %696 = vmatprep.subr.mxu0 0.0
    %697 = vmatpush1.msra.mxu0 0.0
    %698 = vmatprep.subr.mxu0 0.0
    %699 = vmatpush1.msra.mxu0 0.0
    %700 = vmatprep.mubr.f32.mxu0 0.0
    %701 = vmatmul.mubr.f32.gmra.mrb[0].mxu0 %v634
    %v702 = vpop.f32.mrb[0].mxu0
    %v703 = vadd.f32 0.0, %v702
    %v704 = vpop.f32.mrb[0].mxu0
    %705 = vdwg.mxu0
    %706 = vst.msk [vmem:[#allocation11] sm:$0xff] %vm113, %v630
    %707 = vst.msk [vmem:[#allocation11 + $0x8] sm:$0xff] %vm113, %v703
    // Predicated region
    $region54: #{tpu_custom_call.1} parent=1 // pred_check
      _
    $region55: #{tpu_custom_call.1} parent=1 // pred_check_branch
      %709 = sbr.rel (0) target = $region57
    $region56: #{tpu_custom_call.1} parent=1 // pred_region
      %s711 = ssub.s32 256, 256
      %712 = vsyncadd [#allocation4], %s711
      %s713 = sshll.u32 [#allocation11], 4
      %s714 = int_to_ptr.vmem [resolvable:$true] %s713
      %719 = dma.vmem_to_hbm [thread:$0]  %s714, 256, %s8, [#allocation4], 128, 128, 8
    $region57: #{tpu_custom_call.1} parent=1 // pred_fallthru
      _
    // Predicated region
    $region58: #{tpu_custom_call.1} parent=1 // pred_check
      _
    $region59: #{tpu_custom_call.1} parent=1 // pred_check_branch
      %721 = sbr.rel (0) target = $region61
    $region60: #{tpu_custom_call.1} parent=1 // pred_region
      %722 = dma.done [#allocation4], 256
    $region61: #{tpu_custom_call.1} parent=1 // pred_fallthru
      _
    %723 = vsyncpa [#allocation3], 1
    %724 = vsyncpa [#allocation6], 1
    %725 = vsyncpa [#allocation9], 1
    %726 = vsyncpa [#allocation4], 1

</llo_original>
